<compile_context>
chip_gen: v7x
topology: tpu7x:2x2x1
jax: 0.10.0
libtpu: 0.0.40
codegen_flags: <defaults>
</compile_context>

<pallas_src>
import math

import jax
import jax.numpy as jnp
import numpy as np
from jax import lax
from jax.experimental import pallas as pl
from jax.experimental.pallas import tpu as pltpu

# ----------------------------- config ---------------------------------------
VOCAB = 128
D = 64            # n_embd
S = 16            # n_tokens (sequence length)
H = 4             # n_head
DH = D // H       # head dim
L = 2             # number of CLIPLayers
B = 2             # batch
N = B * S         # rows processed per kernel invocation (batch folded in)
EPS = 1e-5        # nn.LayerNorm default eps
SCALE = 1.0 / math.sqrt(DH)
MASK_NEG = -1e9   # additive mask value (underflows to exactly 0 after exp)


# ----------------------------- kernel ----------------------------------------
def _layernorm(x, g, b):
    mu = jnp.mean(x, axis=-1, keepdims=True)
    var = jnp.mean((x - mu) ** 2, axis=-1, keepdims=True)
    return (x - mu) * lax.rsqrt(var + EPS) * g + b


def clip_fused_kernel(
        x0_ref, bias_ref,                          # (N,D) embedded input, (N,N) mask
        ln1g_ref, ln1b_ref,                        # (1,D)
        wqkv_ref, bqkv_ref,                        # (D,3D), (1,3D) fused in_proj
        wo_ref, bo_ref,                            # (D,D), (1,D)
        ln2g_ref, ln2b_ref,                        # (1,D)
        w1_ref, b1_ref, w2_ref, b2_ref,            # (D,4D),(1,4D),(4D,D),(1,D)
        fg_ref, fb_ref,                            # (1,D)
        o_ref,                                     # (N,D) output (resident, written once)
        x_ref,                                     # (N,D) VMEM scratch, persists over layers
        q_sc, k_sc, v_sc,                          # (H,N,DH) head-split scratch
        ctx_sc):                                   # (N,D) head-merge scratch
    layer = pl.program_id(0)

    # ---- load the embedded input once (step 0) ------------------------------
    @pl.when(layer == 0)
    def _():
        x_ref[...] = x0_ref[...]

    x = x_ref[...]                                 # (N,D) resident hidden state

    # ---- attention block: x += SelfAttn(LN1(x), block-causal) ---------------
    xn = _layernorm(x, ln1g_ref[...], ln1b_ref[...])
    # one lane-dense fused QKV matmul: (N,D) @ (D,3D)
    qkv = jnp.dot(xn, wqkv_ref[...], preferred_element_type=jnp.float32) + bqkv_ref[...]

    # head split via small static stores (single relayout, no shallow-K matmuls)
    for h in range(H):
        q_sc[h] = qkv[:, h * DH:(h + 1) * DH] * SCALE         # scale folded into q
        k_sc[h] = qkv[:, D + h * DH:D + (h + 1) * DH]
        v_sc[h] = qkv[:, 2 * D + h * DH:2 * D + (h + 1) * DH]
    q = q_sc[...]                                  # (H,N,DH)
    k = k_sc[...]
    v = v_sc[...]

    s = jnp.einsum("hqe,hke->hqk", q, k, preferred_element_type=jnp.float32)
    s = s + bias_ref[...]                          # block-diag causal additive mask
    m = jnp.max(s, axis=-1, keepdims=True)
    e = jnp.exp(s - m)
    p = e / jnp.sum(e, axis=-1, keepdims=True)     # exact division (tight numerics)

    o = jnp.einsum("hqk,hke->hqe", p, v, preferred_element_type=jnp.float32)  # (H,N,DH)

    # head merge back to (N,D), then one lane-dense (D,D) output projection
    for h in range(H):
        ctx_sc[:, h * DH:(h + 1) * DH] = o[h]
    x = x + jnp.dot(ctx_sc[...], wo_ref[...],
                    preferred_element_type=jnp.float32) + bo_ref[...]

    # ---- MLP block: x += Linear2(QuickGELU(Linear1(LN2(x)))) ----------------
    xn = _layernorm(x, ln2g_ref[...], ln2b_ref[...])
    h1 = jnp.dot(xn, w1_ref[...], preferred_element_type=jnp.float32) + b1_ref[...]
    h1 = h1 * jax.nn.sigmoid(1.702 * h1)
    x = x + jnp.dot(h1, w2_ref[...], preferred_element_type=jnp.float32) + b2_ref[...]

    x_ref[...] = x

    # ---- final LayerNorm, single HBM write (last step only) -----------------
    @pl.when(layer == pl.num_programs(0) - 1)
    def _():
        o_ref[...] = _layernorm(x, fg_ref[...], fb_ref[...])


# ----------------------------- pallas wrapper --------------------------------
def _attn_bias():
    """Additive mask combining causality and batch separation on flattened rows."""
    idx = jnp.arange(N, dtype=jnp.int32)
    row = idx[:, None]
    col = idx[None, :]
    allowed = (col <= row) & ((col // S) == (row // S))
    return jnp.where(allowed, 0.0, MASK_NEG).astype(jnp.float32)


def clip_forward(tokens, params):
    tok_emb, pos_emb, lp, fg, fb = params
    # Embedding outside the kernel: a single XLA gather + add.  Scales to the
    # real VOCAB=49408 (table never enters VMEM).
    x0 = (tok_emb[tokens] + pos_emb[None]).reshape(N, D).astype(jnp.float32)
    bias = _attn_bias()

    def full(arr):
        nd = arr.ndim
        return pl.BlockSpec(arr.shape, lambda l, _nd=nd: (0,) * _nd)

    def per_layer(arr):                 # stacked (L, ...) weight -> layer slice
        nd = arr.ndim
        return pl.BlockSpec((None,) + arr.shape[1:],
                            lambda l, _nd=nd: (l,) + (0,) * (_nd - 1))

    w_order = ("ln1_g", "ln1_b", "wqkv", "bqkv", "wo", "bo",
               "ln2_g", "ln2_b", "w1", "b1", "w2", "b2")
    weights = [lp[k] for k in w_order]

    in_specs = ([full(x0), full(bias)]
                + [per_layer(w) for w in weights]
                + [full(fg), full(fb)])

    out = pl.pallas_call(
        clip_fused_kernel,
        out_shape=jax.ShapeDtypeStruct((N, D), jnp.float32),
        grid_spec=pltpu.PrefetchScalarGridSpec(
            num_scalar_prefetch=0,
            grid=(L,),
            in_specs=in_specs,
            out_specs=pl.BlockSpec((N, D), lambda l: (0, 0)),
            scratch_shapes=[
                pltpu.VMEM((N, D), jnp.float32),    # resident hidden state
                pltpu.VMEM((H, N, DH), jnp.float32),  # q heads
                pltpu.VMEM((H, N, DH), jnp.float32),  # k heads
                pltpu.VMEM((H, N, DH), jnp.float32),  # v heads
                pltpu.VMEM((N, D), jnp.float32),    # merged attention context
            ],
        ),
        compiler_params=pltpu.CompilerParams(
            dimension_semantics=("arbitrary",)),   # layers are sequentially dependent
    )(x0, bias, *weights, fg, fb)
    return out.reshape(B, S, D)


# ----------------------------- params + reference ----------------------------
def init_params(key):
    scale = 0.02
    ks = jax.random.split(key, 12)
    tok_emb = jax.random.normal(ks[0], (VOCAB, D), jnp.float32) * scale
    # PyTorch inits positional_embedding to zeros; small randoms give a
    # non-trivial numerical test (semantics identical: it is just added).
    pos_emb = jax.random.normal(ks[1], (S, D), jnp.float32) * scale
    lp = dict(
        ln1_g=jnp.ones((L, 1, D), jnp.float32),
        ln1_b=jnp.zeros((L, 1, D), jnp.float32),
        # fused in_proj: y = x @ wqkv + bqkv, columns = [q | k | v]
        wqkv=jax.random.normal(ks[2], (L, D, 3 * D), jnp.float32) * scale,
        bqkv=jax.random.normal(ks[3], (L, 1, 3 * D), jnp.float32) * scale,
        # out_proj: y = ctx @ wo + bo
        wo=jax.random.normal(ks[4], (L, D, D), jnp.float32) * scale,
        bo=jax.random.normal(ks[5], (L, 1, D), jnp.float32) * scale,
        ln2_g=jnp.ones((L, 1, D), jnp.float32),
        ln2_b=jnp.zeros((L, 1, D), jnp.float32),
        w1=jax.random.normal(ks[6], (L, D, 4 * D), jnp.float32) * scale,
        b1=jax.random.normal(ks[7], (L, 1, 4 * D), jnp.float32) * scale,
        w2=jax.random.normal(ks[8], (L, 4 * D, D), jnp.float32) * scale,
        b2=jax.random.normal(ks[9], (L, 1, D), jnp.float32) * scale,
    )
    fg = jnp.ones((1, D), jnp.float32)
    fb = jnp.zeros((1, D), jnp.float32)
    return tok_emb, pos_emb, lp, fg, fb


def _ref_ln(x, g, b):
    mu = x.mean(-1, keepdims=True)
    var = ((x - mu) ** 2).mean(-1, keepdims=True)
    return (x - mu) / jnp.sqrt(var + EPS) * g + b


def ref_forward(tokens, params):
    """Pure-JAX reference mirroring the PyTorch forward (same param layout)."""
    tok_emb, pos_emb, p, fg, fb = params
    x = tok_emb[tokens] + pos_emb[None]                            # (B, S, D)
    mask = jnp.triu(jnp.ones((S, S), bool), 1)                     # causal (triu(1))
    for l in range(L):
        res = x
        xn = _ref_ln(x, p["ln1_g"][l], p["ln1_b"][l])
        qkv = xn @ p["wqkv"][l] + p["bqkv"][l]                     # (B, S, 3D)
        q, k, v = jnp.split(qkv, 3, axis=-1)
        q = q.reshape(B, S, H, DH).transpose(0, 2, 1, 3)
        k = k.reshape(B, S, H, DH).transpose(0, 2, 1, 3)
        v = v.reshape(B, S, H, DH).transpose(0, 2, 1, 3)
        s = jnp.einsum("bhqe,bhke->bhqk", q, k) / math.sqrt(DH)
        s = jnp.where(mask, -jnp.inf, s)
        pw = jax.nn.softmax(s, axis=-1)
        o = jnp.einsum("bhqk,bhke->bhqe", pw, v)
        o = o.transpose(0, 2, 1, 3).reshape(B, S, D)
        x = res + o @ p["wo"][l] + p["bo"][l]
        res = x
        xn = _ref_ln(x, p["ln2_g"][l], p["ln2_b"][l])
        h1 = xn @ p["w1"][l] + p["b1"][l]
        h1 = h1 * jax.nn.sigmoid(1.702 * h1)
        x = res + (h1 @ p["w2"][l] + p["b2"][l])
    return _ref_ln(x, fg, fb)


# ----------------------------- main ------------------------------------------
if __name__ == "__main__":
    key = jax.random.PRNGKey(0)
    k_par, k_tok = jax.random.split(key)
    params = init_params(k_par)
    tokens = jax.random.randint(k_tok, (B, S), 0, VOCAB, dtype=jnp.int32)

    out = jax.jit(clip_forward)(tokens, params)
    out = jax.block_until_ready(out)

    ref = ref_forward(tokens, params)
    np.testing.assert_allclose(np.asarray(out), np.asarray(ref),
                               rtol=1e-4, atol=1e-4)
    assert out.shape == (B, S, D) and out.dtype == jnp.float32
    print("KERNEL_OK")
</pallas_src>

<mosaic_0001>
module attributes {stable_mosaic.version = 11 : i64} {
  func.func @clip_fused_kernel(%arg0: i32, %arg1: memref<32x64xf32, #tpu.memory_space<vmem>>, %arg2: memref<32x32xf32, #tpu.memory_space<vmem>>, %arg3: memref<1x1x64xf32, #tpu.memory_space<vmem>>, %arg4: memref<1x1x64xf32, #tpu.memory_space<vmem>>, %arg5: memref<1x64x192xf32, #tpu.memory_space<vmem>>, %arg6: memref<1x1x192xf32, #tpu.memory_space<vmem>>, %arg7: memref<1x64x64xf32, #tpu.memory_space<vmem>>, %arg8: memref<1x1x64xf32, #tpu.memory_space<vmem>>, %arg9: memref<1x1x64xf32, #tpu.memory_space<vmem>>, %arg10: memref<1x1x64xf32, #tpu.memory_space<vmem>>, %arg11: memref<1x64x256xf32, #tpu.memory_space<vmem>>, %arg12: memref<1x1x256xf32, #tpu.memory_space<vmem>>, %arg13: memref<1x256x64xf32, #tpu.memory_space<vmem>>, %arg14: memref<1x1x64xf32, #tpu.memory_space<vmem>>, %arg15: memref<1x64xf32, #tpu.memory_space<vmem>>, %arg16: memref<1x64xf32, #tpu.memory_space<vmem>>, %arg17: memref<32x64xf32, #tpu.memory_space<vmem>>, %arg18: memref<32x64xf32, #tpu.memory_space<vmem>>, %arg19: memref<4x32x16xf32, #tpu.memory_space<vmem>>, %arg20: memref<4x32x16xf32, #tpu.memory_space<vmem>>, %arg21: memref<4x32x16xf32, #tpu.memory_space<vmem>>, %arg22: memref<32x64xf32, #tpu.memory_space<vmem>>) attributes {dimension_semantics = [#tpu.dimension_semantics<arbitrary>], iteration_bounds = array<i64: 2>, scalar_prefetch = 0 : i64, scratch_operands = 5 : i64, tpu.core_type = #tpu.core_type<tc>, window_params = [{pipeline_mode = #tpu.pipeline_mode<synchronous>, transform_indices = @transform_0, window_bounds = array<i64: 32, 64>}, {pipeline_mode = #tpu.pipeline_mode<synchronous>, transform_indices = @transform_1, window_bounds = array<i64: 32, 32>}, {transform_indices = @transform_2, window_bounds = array<i64: 1, 1, 64>}, {transform_indices = @transform_3, window_bounds = array<i64: 1, 1, 64>}, {transform_indices = @transform_4, window_bounds = array<i64: 1, 64, 192>}, {transform_indices = @transform_5, window_bounds = array<i64: 1, 1, 192>}, {transform_indices = @transform_6, window_bounds = array<i64: 1, 64, 64>}, {transform_indices = @transform_7, window_bounds = array<i64: 1, 1, 64>}, {transform_indices = @transform_8, window_bounds = array<i64: 1, 1, 64>}, {transform_indices = @transform_9, window_bounds = array<i64: 1, 1, 64>}, {transform_indices = @transform_10, window_bounds = array<i64: 1, 64, 256>}, {transform_indices = @transform_11, window_bounds = array<i64: 1, 1, 256>}, {transform_indices = @transform_12, window_bounds = array<i64: 1, 256, 64>}, {transform_indices = @transform_13, window_bounds = array<i64: 1, 1, 64>}, {pipeline_mode = #tpu.pipeline_mode<synchronous>, transform_indices = @transform_14, window_bounds = array<i64: 1, 64>}, {pipeline_mode = #tpu.pipeline_mode<synchronous>, transform_indices = @transform_15, window_bounds = array<i64: 1, 64>}, {pipeline_mode = #tpu.pipeline_mode<synchronous>, transform_indices = @transform_16, window_bounds = array<i64: 32, 64>}]} {
    %c0_i32 = arith.constant 0 : i32
    %0 = arith.cmpi eq, %arg0, %c0_i32 : i32
    %1 = arith.extui %0 : i1 to i32
    %c0_i32_0 = arith.constant 0 : i32
    %2 = arith.cmpi ne, %1, %c0_i32_0 : i32
    scf.if %2 {
      %c0_115 = arith.constant 0 : index
      %c0_116 = arith.constant 0 : index
      %185 = vector.load %arg1[%c0_115, %c0_116] : memref<32x64xf32, #tpu.memory_space<vmem>>, vector<32x64xf32>
      %c0_117 = arith.constant 0 : index
      %c0_118 = arith.constant 0 : index
      %186 = vector.load %arg18[%c0_117, %c0_118] : memref<32x64xf32, #tpu.memory_space<vmem>>, vector<32x64xf32>
      tpu.vector_store %arg18[%c0_117, %c0_118], %185 {strides = array<i32>} : memref<32x64xf32, #tpu.memory_space<vmem>>, vector<32x64xf32>,
    } else {
    }
    %c0 = arith.constant 0 : index
    %c0_1 = arith.constant 0 : index
    %3 = vector.load %arg18[%c0, %c0_1] : memref<32x64xf32, #tpu.memory_space<vmem>>, vector<32x64xf32>
    %c0_2 = arith.constant 0 : index
    %c0_3 = arith.constant 0 : index
    %c0_4 = arith.constant 0 : index
    %4 = vector.load %arg3[%c0_2, %c0_3, %c0_4] : memref<1x1x64xf32, #tpu.memory_space<vmem>>, vector<1x1x64xf32>
    %5 = vector.shape_cast %4 : vector<1x1x64xf32> to vector<1x64xf32>
    %c0_5 = arith.constant 0 : index
    %c0_6 = arith.constant 0 : index
    %c0_7 = arith.constant 0 : index
    %6 = vector.load %arg4[%c0_5, %c0_6, %c0_7] : memref<1x1x64xf32, #tpu.memory_space<vmem>>, vector<1x1x64xf32>
    %7 = vector.shape_cast %6 : vector<1x1x64xf32> to vector<1x64xf32>
    %cst = arith.constant dense<0.000000e+00> : vector<32xf32>
    %8 = vector.multi_reduction <add>, %3, %cst [1] : vector<32x64xf32> to vector<32xf32>
    %9 = vector.shape_cast %8 : vector<32xf32> to vector<32x1xf32>
    %cst_8 = arith.constant 6.400000e+01 : f32
    %10 = vector.broadcast %cst_8 : f32 to vector<32x1xf32>
    %11 = arith.divf %9, %10 : vector<32x1xf32>
    %12 = vector.broadcast %11 : vector<32x1xf32> to vector<32x64xf32>
    %13 = arith.subf %3, %12 : vector<32x64xf32>
    %14 = arith.mulf %13, %13 : vector<32x64xf32>
    %cst_9 = arith.constant dense<0.000000e+00> : vector<32xf32>
    %15 = vector.multi_reduction <add>, %14, %cst_9 [1] : vector<32x64xf32> to vector<32xf32>
    %16 = vector.shape_cast %15 : vector<32xf32> to vector<32x1xf32>
    %cst_10 = arith.constant 6.400000e+01 : f32
    %17 = vector.broadcast %cst_10 : f32 to vector<32x1xf32>
    %18 = arith.divf %16, %17 : vector<32x1xf32>
    %19 = vector.broadcast %11 : vector<32x1xf32> to vector<32x64xf32>
    %20 = arith.subf %3, %19 : vector<32x64xf32>
    %cst_11 = arith.constant 9.99999974E-6 : f32
    %21 = vector.broadcast %cst_11 : f32 to vector<32x1xf32>
    %22 = arith.addf %18, %21 : vector<32x1xf32>
    %23 = math.rsqrt %22 : vector<32x1xf32>
    %24 = vector.broadcast %23 : vector<32x1xf32> to vector<32x64xf32>
    %25 = arith.mulf %20, %24 : vector<32x64xf32>
    %26 = vector.broadcast %5 : vector<1x64xf32> to vector<32x64xf32>
    %27 = arith.mulf %25, %26 : vector<32x64xf32>
    %28 = vector.broadcast %7 : vector<1x64xf32> to vector<32x64xf32>
    %29 = arith.addf %27, %28 : vector<32x64xf32>
    %c0_12 = arith.constant 0 : index
    %c0_13 = arith.constant 0 : index
    %c0_14 = arith.constant 0 : index
    %30 = vector.load %arg5[%c0_12, %c0_13, %c0_14] : memref<1x64x192xf32, #tpu.memory_space<vmem>>, vector<1x64x192xf32>
    %31 = vector.shape_cast %30 : vector<1x64x192xf32> to vector<64x192xf32>
    %cst_15 = arith.constant dense<0.000000e+00> : vector<32x192xf32>
    %32 = tpu.matmul %29, %31, %cst_15 {dimension_numbers = #tpu.dot_dimension_numbers<[1], [0], [0], [1], [0, 0, 1, 1], [], []>} : vector<32x64xf32>, vector<64x192xf32>, vector<32x192xf32> -> vector<32x192xf32>
    %c0_16 = arith.constant 0 : index
    %c0_17 = arith.constant 0 : index
    %c0_18 = arith.constant 0 : index
    %33 = vector.load %arg6[%c0_16, %c0_17, %c0_18] : memref<1x1x192xf32, #tpu.memory_space<vmem>>, vector<1x1x192xf32>
    %34 = vector.shape_cast %33 : vector<1x1x192xf32> to vector<1x192xf32>
    %35 = vector.broadcast %34 : vector<1x192xf32> to vector<32x192xf32>
    %36 = arith.addf %32, %35 : vector<32x192xf32>
    %37 = vector.extract_strided_slice %36 {offsets = [0, 0], sizes = [32, 16], strides = [1, 1]} : vector<32x192xf32> to vector<32x16xf32>
    %cst_19 = arith.constant 2.500000e-01 : f32
    %38 = vector.broadcast %cst_19 : f32 to vector<32x16xf32>
    %39 = arith.mulf %37, %38 : vector<32x16xf32>
    %c0_20 = arith.constant 0 : index
    %c0_21 = arith.constant 0 : index
    %c0_22 = arith.constant 0 : index
    %40 = vector.load %arg19[%c0_20, %c0_21, %c0_22] : memref<4x32x16xf32, #tpu.memory_space<vmem>>, vector<1x32x16xf32>
    %41 = vector.shape_cast %40 : vector<1x32x16xf32> to vector<32x16xf32>
    %42 = vector.shape_cast %39 : vector<32x16xf32> to vector<1x32x16xf32>
    tpu.vector_store %arg19[%c0_20, %c0_21, %c0_22], %42 {strides = array<i32>} : memref<4x32x16xf32, #tpu.memory_space<vmem>>, vector<1x32x16xf32>,
    %43 = vector.extract_strided_slice %36 {offsets = [0, 64], sizes = [32, 16], strides = [1, 1]} : vector<32x192xf32> to vector<32x16xf32>
    %c0_23 = arith.constant 0 : index
    %c0_24 = arith.constant 0 : index
    %c0_25 = arith.constant 0 : index
    %44 = vector.load %arg20[%c0_23, %c0_24, %c0_25] : memref<4x32x16xf32, #tpu.memory_space<vmem>>, vector<1x32x16xf32>
    %45 = vector.shape_cast %44 : vector<1x32x16xf32> to vector<32x16xf32>
    %46 = vector.shape_cast %43 : vector<32x16xf32> to vector<1x32x16xf32>
    tpu.vector_store %arg20[%c0_23, %c0_24, %c0_25], %46 {strides = array<i32>} : memref<4x32x16xf32, #tpu.memory_space<vmem>>, vector<1x32x16xf32>,
    %47 = vector.extract_strided_slice %36 {offsets = [0, 128], sizes = [32, 16], strides = [1, 1]} : vector<32x192xf32> to vector<32x16xf32>
    %c0_26 = arith.constant 0 : index
    %c0_27 = arith.constant 0 : index
    %c0_28 = arith.constant 0 : index
    %48 = vector.load %arg21[%c0_26, %c0_27, %c0_28] : memref<4x32x16xf32, #tpu.memory_space<vmem>>, vector<1x32x16xf32>
    %49 = vector.shape_cast %48 : vector<1x32x16xf32> to vector<32x16xf32>
    %50 = vector.shape_cast %47 : vector<32x16xf32> to vector<1x32x16xf32>
    tpu.vector_store %arg21[%c0_26, %c0_27, %c0_28], %50 {strides = array<i32>} : memref<4x32x16xf32, #tpu.memory_space<vmem>>, vector<1x32x16xf32>,
    %51 = vector.extract_strided_slice %36 {offsets = [0, 16], sizes = [32, 16], strides = [1, 1]} : vector<32x192xf32> to vector<32x16xf32>
    %cst_29 = arith.constant 2.500000e-01 : f32
    %52 = vector.broadcast %cst_29 : f32 to vector<32x16xf32>
    %53 = arith.mulf %51, %52 : vector<32x16xf32>
    %c1 = arith.constant 1 : index
    %c0_30 = arith.constant 0 : index
    %c0_31 = arith.constant 0 : index
    %54 = vector.load %arg19[%c1, %c0_30, %c0_31] : memref<4x32x16xf32, #tpu.memory_space<vmem>>, vector<1x32x16xf32>
    %55 = vector.shape_cast %54 : vector<1x32x16xf32> to vector<32x16xf32>
    %56 = vector.shape_cast %53 : vector<32x16xf32> to vector<1x32x16xf32>
    tpu.vector_store %arg19[%c1, %c0_30, %c0_31], %56 {strides = array<i32>} : memref<4x32x16xf32, #tpu.memory_space<vmem>>, vector<1x32x16xf32>,
    %57 = vector.extract_strided_slice %36 {offsets = [0, 80], sizes = [32, 16], strides = [1, 1]} : vector<32x192xf32> to vector<32x16xf32>
    %c1_32 = arith.constant 1 : index
    %c0_33 = arith.constant 0 : index
    %c0_34 = arith.constant 0 : index
    %58 = vector.load %arg20[%c1_32, %c0_33, %c0_34] : memref<4x32x16xf32, #tpu.memory_space<vmem>>, vector<1x32x16xf32>
    %59 = vector.shape_cast %58 : vector<1x32x16xf32> to vector<32x16xf32>
    %60 = vector.shape_cast %57 : vector<32x16xf32> to vector<1x32x16xf32>
    tpu.vector_store %arg20[%c1_32, %c0_33, %c0_34], %60 {strides = array<i32>} : memref<4x32x16xf32, #tpu.memory_space<vmem>>, vector<1x32x16xf32>,
    %61 = vector.extract_strided_slice %36 {offsets = [0, 144], sizes = [32, 16], strides = [1, 1]} : vector<32x192xf32> to vector<32x16xf32>
    %c1_35 = arith.constant 1 : index
    %c0_36 = arith.constant 0 : index
    %c0_37 = arith.constant 0 : index
    %62 = vector.load %arg21[%c1_35, %c0_36, %c0_37] : memref<4x32x16xf32, #tpu.memory_space<vmem>>, vector<1x32x16xf32>
    %63 = vector.shape_cast %62 : vector<1x32x16xf32> to vector<32x16xf32>
    %64 = vector.shape_cast %61 : vector<32x16xf32> to vector<1x32x16xf32>
    tpu.vector_store %arg21[%c1_35, %c0_36, %c0_37], %64 {strides = array<i32>} : memref<4x32x16xf32, #tpu.memory_space<vmem>>, vector<1x32x16xf32>,
    %65 = vector.extract_strided_slice %36 {offsets = [0, 32], sizes = [32, 16], strides = [1, 1]} : vector<32x192xf32> to vector<32x16xf32>
    %cst_38 = arith.constant 2.500000e-01 : f32
    %66 = vector.broadcast %cst_38 : f32 to vector<32x16xf32>
    %67 = arith.mulf %65, %66 : vector<32x16xf32>
    %c2 = arith.constant 2 : index
    %c0_39 = arith.constant 0 : index
    %c0_40 = arith.constant 0 : index
    %68 = vector.load %arg19[%c2, %c0_39, %c0_40] : memref<4x32x16xf32, #tpu.memory_space<vmem>>, vector<1x32x16xf32>
    %69 = vector.shape_cast %68 : vector<1x32x16xf32> to vector<32x16xf32>
    %70 = vector.shape_cast %67 : vector<32x16xf32> to vector<1x32x16xf32>
    tpu.vector_store %arg19[%c2, %c0_39, %c0_40], %70 {strides = array<i32>} : memref<4x32x16xf32, #tpu.memory_space<vmem>>, vector<1x32x16xf32>,
    %71 = vector.extract_strided_slice %36 {offsets = [0, 96], sizes = [32, 16], strides = [1, 1]} : vector<32x192xf32> to vector<32x16xf32>
    %c2_41 = arith.constant 2 : index
    %c0_42 = arith.constant 0 : index
    %c0_43 = arith.constant 0 : index
    %72 = vector.load %arg20[%c2_41, %c0_42, %c0_43] : memref<4x32x16xf32, #tpu.memory_space<vmem>>, vector<1x32x16xf32>
    %73 = vector.shape_cast %72 : vector<1x32x16xf32> to vector<32x16xf32>
    %74 = vector.shape_cast %71 : vector<32x16xf32> to vector<1x32x16xf32>
    tpu.vector_store %arg20[%c2_41, %c0_42, %c0_43], %74 {strides = array<i32>} : memref<4x32x16xf32, #tpu.memory_space<vmem>>, vector<1x32x16xf32>,
    %75 = vector.extract_strided_slice %36 {offsets = [0, 160], sizes = [32, 16], strides = [1, 1]} : vector<32x192xf32> to vector<32x16xf32>
    %c2_44 = arith.constant 2 : index
    %c0_45 = arith.constant 0 : index
    %c0_46 = arith.constant 0 : index
    %76 = vector.load %arg21[%c2_44, %c0_45, %c0_46] : memref<4x32x16xf32, #tpu.memory_space<vmem>>, vector<1x32x16xf32>
    %77 = vector.shape_cast %76 : vector<1x32x16xf32> to vector<32x16xf32>
    %78 = vector.shape_cast %75 : vector<32x16xf32> to vector<1x32x16xf32>
    tpu.vector_store %arg21[%c2_44, %c0_45, %c0_46], %78 {strides = array<i32>} : memref<4x32x16xf32, #tpu.memory_space<vmem>>, vector<1x32x16xf32>,
    %79 = vector.extract_strided_slice %36 {offsets = [0, 48], sizes = [32, 16], strides = [1, 1]} : vector<32x192xf32> to vector<32x16xf32>
    %cst_47 = arith.constant 2.500000e-01 : f32
    %80 = vector.broadcast %cst_47 : f32 to vector<32x16xf32>
    %81 = arith.mulf %79, %80 : vector<32x16xf32>
    %c3 = arith.constant 3 : index
    %c0_48 = arith.constant 0 : index
    %c0_49 = arith.constant 0 : index
    %82 = vector.load %arg19[%c3, %c0_48, %c0_49] : memref<4x32x16xf32, #tpu.memory_space<vmem>>, vector<1x32x16xf32>
    %83 = vector.shape_cast %82 : vector<1x32x16xf32> to vector<32x16xf32>
    %84 = vector.shape_cast %81 : vector<32x16xf32> to vector<1x32x16xf32>
    tpu.vector_store %arg19[%c3, %c0_48, %c0_49], %84 {strides = array<i32>} : memref<4x32x16xf32, #tpu.memory_space<vmem>>, vector<1x32x16xf32>,
    %85 = vector.extract_strided_slice %36 {offsets = [0, 112], sizes = [32, 16], strides = [1, 1]} : vector<32x192xf32> to vector<32x16xf32>
    %c3_50 = arith.constant 3 : index
    %c0_51 = arith.constant 0 : index
    %c0_52 = arith.constant 0 : index
    %86 = vector.load %arg20[%c3_50, %c0_51, %c0_52] : memref<4x32x16xf32, #tpu.memory_space<vmem>>, vector<1x32x16xf32>
    %87 = vector.shape_cast %86 : vector<1x32x16xf32> to vector<32x16xf32>
    %88 = vector.shape_cast %85 : vector<32x16xf32> to vector<1x32x16xf32>
    tpu.vector_store %arg20[%c3_50, %c0_51, %c0_52], %88 {strides = array<i32>} : memref<4x32x16xf32, #tpu.memory_space<vmem>>, vector<1x32x16xf32>,
    %89 = vector.extract_strided_slice %36 {offsets = [0, 176], sizes = [32, 16], strides = [1, 1]} : vector<32x192xf32> to vector<32x16xf32>
    %c3_53 = arith.constant 3 : index
    %c0_54 = arith.constant 0 : index
    %c0_55 = arith.constant 0 : index
    %90 = vector.load %arg21[%c3_53, %c0_54, %c0_55] : memref<4x32x16xf32, #tpu.memory_space<vmem>>, vector<1x32x16xf32>
    %91 = vector.shape_cast %90 : vector<1x32x16xf32> to vector<32x16xf32>
    %92 = vector.shape_cast %89 : vector<32x16xf32> to vector<1x32x16xf32>
    tpu.vector_store %arg21[%c3_53, %c0_54, %c0_55], %92 {strides = array<i32>} : memref<4x32x16xf32, #tpu.memory_space<vmem>>, vector<1x32x16xf32>,
    %c0_56 = arith.constant 0 : index
    %c0_57 = arith.constant 0 : index
    %c0_58 = arith.constant 0 : index
    %93 = vector.load %arg19[%c0_56, %c0_57, %c0_58] : memref<4x32x16xf32, #tpu.memory_space<vmem>>, vector<4x32x16xf32>
    %c0_59 = arith.constant 0 : index
    %c0_60 = arith.constant 0 : index
    %c0_61 = arith.constant 0 : index
    %94 = vector.load %arg20[%c0_59, %c0_60, %c0_61] : memref<4x32x16xf32, #tpu.memory_space<vmem>>, vector<4x32x16xf32>
    %c0_62 = arith.constant 0 : index
    %c0_63 = arith.constant 0 : index
    %c0_64 = arith.constant 0 : index
    %95 = vector.load %arg21[%c0_62, %c0_63, %c0_64] : memref<4x32x16xf32, #tpu.memory_space<vmem>>, vector<4x32x16xf32>
    "tpu.trace_start"() <{level = 10 : i32, message = "hqe,hke->hqk"}> : () -> ()
    %cst_65 = arith.constant dense<0.000000e+00> : vector<4x32x32xf32>
    %96 = tpu.matmul %93, %94, %cst_65 {dimension_numbers = #tpu.dot_dimension_numbers<[2], [2], [1], [1], [0, 0, 0, 1, 1, 1], [0], [0]>} : vector<4x32x16xf32>, vector<4x32x16xf32>, vector<4x32x32xf32> -> vector<4x32x32xf32>
    "tpu.trace_stop"() : () -> ()
    %c0_66 = arith.constant 0 : index
    %c0_67 = arith.constant 0 : index
    %97 = vector.load %arg2[%c0_66, %c0_67] : memref<32x32xf32, #tpu.memory_space<vmem>>, vector<32x32xf32>
    %98 = vector.shape_cast %97 : vector<32x32xf32> to vector<1x32x32xf32>
    %99 = vector.broadcast %98 : vector<1x32x32xf32> to vector<4x32x32xf32>
    %100 = arith.addf %96, %99 : vector<4x32x32xf32>
    %cst_68 = arith.constant dense<0xFF800000> : vector<4x32xf32>
    %101 = vector.multi_reduction <maximumf>, %100, %cst_68 [2] : vector<4x32x32xf32> to vector<4x32xf32>
    %102 = vector.shape_cast %101 : vector<4x32xf32> to vector<4x32x1xf32>
    %103 = vector.broadcast %102 : vector<4x32x1xf32> to vector<4x32x32xf32>
    %104 = arith.subf %100, %103 : vector<4x32x32xf32>
    %105 = math.exp %104 : vector<4x32x32xf32>
    %cst_69 = arith.constant dense<0.000000e+00> : vector<4x32xf32>
    %106 = vector.multi_reduction <add>, %105, %cst_69 [2] : vector<4x32x32xf32> to vector<4x32xf32>
    %107 = vector.shape_cast %106 : vector<4x32xf32> to vector<4x32x1xf32>
    %108 = vector.broadcast %107 : vector<4x32x1xf32> to vector<4x32x32xf32>
    %109 = arith.divf %105, %108 : vector<4x32x32xf32>
    "tpu.trace_start"() <{level = 10 : i32, message = "hqk,hke->hqe"}> : () -> ()
    %cst_70 = arith.constant dense<0.000000e+00> : vector<4x32x16xf32>
    %110 = tpu.matmul %109, %95, %cst_70 {dimension_numbers = #tpu.dot_dimension_numbers<[2], [1], [1], [2], [0, 0, 0, 1, 1, 2], [0], [0]>} : vector<4x32x32xf32>, vector<4x32x16xf32>, vector<4x32x16xf32> -> vector<4x32x16xf32>
    "tpu.trace_stop"() : () -> ()
    %111 = vector.extract_strided_slice %110 {offsets = [0, 0, 0], sizes = [1, 32, 16], strides = [1, 1, 1]} : vector<4x32x16xf32> to vector<1x32x16xf32>
    %112 = vector.shape_cast %111 : vector<1x32x16xf32> to vector<32x16xf32>
    %c0_71 = arith.constant 0 : index
    %c0_72 = arith.constant 0 : index
    %113 = vector.load %arg22[%c0_71, %c0_72] : memref<32x64xf32, #tpu.memory_space<vmem>>, vector<32x16xf32>
    tpu.vector_store %arg22[%c0_71, %c0_72], %112 {strides = array<i32>} : memref<32x64xf32, #tpu.memory_space<vmem>>, vector<32x16xf32>,
    %114 = vector.extract_strided_slice %110 {offsets = [1, 0, 0], sizes = [1, 32, 16], strides = [1, 1, 1]} : vector<4x32x16xf32> to vector<1x32x16xf32>
    %115 = vector.shape_cast %114 : vector<1x32x16xf32> to vector<32x16xf32>
    %c0_73 = arith.constant 0 : index
    %c16 = arith.constant 16 : index
    %116 = vector.load %arg22[%c0_73, %c16] : memref<32x64xf32, #tpu.memory_space<vmem>>, vector<32x16xf32>
    tpu.vector_store %arg22[%c0_73, %c16], %115 {strides = array<i32>} : memref<32x64xf32, #tpu.memory_space<vmem>>, vector<32x16xf32>,
    %117 = vector.extract_strided_slice %110 {offsets = [2, 0, 0], sizes = [1, 32, 16], strides = [1, 1, 1]} : vector<4x32x16xf32> to vector<1x32x16xf32>
    %118 = vector.shape_cast %117 : vector<1x32x16xf32> to vector<32x16xf32>
    %c0_74 = arith.constant 0 : index
    %c32 = arith.constant 32 : index
    %119 = vector.load %arg22[%c0_74, %c32] : memref<32x64xf32, #tpu.memory_space<vmem>>, vector<32x16xf32>
    tpu.vector_store %arg22[%c0_74, %c32], %118 {strides = array<i32>} : memref<32x64xf32, #tpu.memory_space<vmem>>, vector<32x16xf32>,
    %120 = vector.extract_strided_slice %110 {offsets = [3, 0, 0], sizes = [1, 32, 16], strides = [1, 1, 1]} : vector<4x32x16xf32> to vector<1x32x16xf32>
    %121 = vector.shape_cast %120 : vector<1x32x16xf32> to vector<32x16xf32>
    %c0_75 = arith.constant 0 : index
    %c48 = arith.constant 48 : index
    %122 = vector.load %arg22[%c0_75, %c48] : memref<32x64xf32, #tpu.memory_space<vmem>>, vector<32x16xf32>
    tpu.vector_store %arg22[%c0_75, %c48], %121 {strides = array<i32>} : memref<32x64xf32, #tpu.memory_space<vmem>>, vector<32x16xf32>,
    %c0_76 = arith.constant 0 : index
    %c0_77 = arith.constant 0 : index
    %123 = vector.load %arg22[%c0_76, %c0_77] : memref<32x64xf32, #tpu.memory_space<vmem>>, vector<32x64xf32>
    %c0_78 = arith.constant 0 : index
    %c0_79 = arith.constant 0 : index
    %c0_80 = arith.constant 0 : index
    %124 = vector.load %arg7[%c0_78, %c0_79, %c0_80] : memref<1x64x64xf32, #tpu.memory_space<vmem>>, vector<1x64x64xf32>
    %125 = vector.shape_cast %124 : vector<1x64x64xf32> to vector<64x64xf32>
    %cst_81 = arith.constant dense<0.000000e+00> : vector<32x64xf32>
    %126 = tpu.matmul %123, %125, %cst_81 {dimension_numbers = #tpu.dot_dimension_numbers<[1], [0], [0], [1], [0, 0, 1, 1], [], []>} : vector<32x64xf32>, vector<64x64xf32>, vector<32x64xf32> -> vector<32x64xf32>
    %127 = arith.addf %3, %126 : vector<32x64xf32>
    %c0_82 = arith.constant 0 : index
    %c0_83 = arith.constant 0 : index
    %c0_84 = arith.constant 0 : index
    %128 = vector.load %arg8[%c0_82, %c0_83, %c0_84] : memref<1x1x64xf32, #tpu.memory_space<vmem>>, vector<1x1x64xf32>
    %129 = vector.shape_cast %128 : vector<1x1x64xf32> to vector<1x64xf32>
    %130 = vector.broadcast %129 : vector<1x64xf32> to vector<32x64xf32>
    %131 = arith.addf %127, %130 : vector<32x64xf32>
    %c0_85 = arith.constant 0 : index
    %c0_86 = arith.constant 0 : index
    %c0_87 = arith.constant 0 : index
    %132 = vector.load %arg9[%c0_85, %c0_86, %c0_87] : memref<1x1x64xf32, #tpu.memory_space<vmem>>, vector<1x1x64xf32>
    %133 = vector.shape_cast %132 : vector<1x1x64xf32> to vector<1x64xf32>
    %c0_88 = arith.constant 0 : index
    %c0_89 = arith.constant 0 : index
    %c0_90 = arith.constant 0 : index
    %134 = vector.load %arg10[%c0_88, %c0_89, %c0_90] : memref<1x1x64xf32, #tpu.memory_space<vmem>>, vector<1x1x64xf32>
    %135 = vector.shape_cast %134 : vector<1x1x64xf32> to vector<1x64xf32>
    %cst_91 = arith.constant dense<0.000000e+00> : vector<32xf32>
    %136 = vector.multi_reduction <add>, %131, %cst_91 [1] : vector<32x64xf32> to vector<32xf32>
    %137 = vector.shape_cast %136 : vector<32xf32> to vector<32x1xf32>
    %cst_92 = arith.constant 6.400000e+01 : f32
    %138 = vector.broadcast %cst_92 : f32 to vector<32x1xf32>
    %139 = arith.divf %137, %138 : vector<32x1xf32>
    %140 = vector.broadcast %139 : vector<32x1xf32> to vector<32x64xf32>
    %141 = arith.subf %131, %140 : vector<32x64xf32>
    %142 = arith.mulf %141, %141 : vector<32x64xf32>
    %cst_93 = arith.constant dense<0.000000e+00> : vector<32xf32>
    %143 = vector.multi_reduction <add>, %142, %cst_93 [1] : vector<32x64xf32> to vector<32xf32>
    %144 = vector.shape_cast %143 : vector<32xf32> to vector<32x1xf32>
    %cst_94 = arith.constant 6.400000e+01 : f32
    %145 = vector.broadcast %cst_94 : f32 to vector<32x1xf32>
    %146 = arith.divf %144, %145 : vector<32x1xf32>
    %147 = vector.broadcast %139 : vector<32x1xf32> to vector<32x64xf32>
    %148 = arith.subf %131, %147 : vector<32x64xf32>
    %cst_95 = arith.constant 9.99999974E-6 : f32
    %149 = vector.broadcast %cst_95 : f32 to vector<32x1xf32>
    %150 = arith.addf %146, %149 : vector<32x1xf32>
    %151 = math.rsqrt %150 : vector<32x1xf32>
    %152 = vector.broadcast %151 : vector<32x1xf32> to vector<32x64xf32>
    %153 = arith.mulf %148, %152 : vector<32x64xf32>
    %154 = vector.broadcast %133 : vector<1x64xf32> to vector<32x64xf32>
    %155 = arith.mulf %153, %154 : vector<32x64xf32>
    %156 = vector.broadcast %135 : vector<1x64xf32> to vector<32x64xf32>
    %157 = arith.addf %155, %156 : vector<32x64xf32>
    %c0_96 = arith.constant 0 : index
    %c0_97 = arith.constant 0 : index
    %c0_98 = arith.constant 0 : index
    %158 = vector.load %arg11[%c0_96, %c0_97, %c0_98] : memref<1x64x256xf32, #tpu.memory_space<vmem>>, vector<1x64x256xf32>
    %159 = vector.shape_cast %158 : vector<1x64x256xf32> to vector<64x256xf32>
    %cst_99 = arith.constant dense<0.000000e+00> : vector<32x256xf32>
    %160 = tpu.matmul %157, %159, %cst_99 {dimension_numbers = #tpu.dot_dimension_numbers<[1], [0], [0], [1], [0, 0, 1, 1], [], []>} : vector<32x64xf32>, vector<64x256xf32>, vector<32x256xf32> -> vector<32x256xf32>
    %c0_100 = arith.constant 0 : index
    %c0_101 = arith.constant 0 : index
    %c0_102 = arith.constant 0 : index
    %161 = vector.load %arg12[%c0_100, %c0_101, %c0_102] : memref<1x1x256xf32, #tpu.memory_space<vmem>>, vector<1x1x256xf32>
    %162 = vector.shape_cast %161 : vector<1x1x256xf32> to vector<1x256xf32>
    %163 = vector.broadcast %162 : vector<1x256xf32> to vector<32x256xf32>
    %164 = arith.addf %160, %163 : vector<32x256xf32>
    %cst_103 = arith.constant 1.702000e+00 : f32
    %165 = vector.broadcast %cst_103 : f32 to vector<32x256xf32>
    %166 = arith.mulf %165, %164 : vector<32x256xf32>
    %167 = arith.negf %166 : vector<32x256xf32>
    %168 = math.exp %167 : vector<32x256xf32>
    %cst_104 = arith.constant 1.000000e+00 : f32
    %169 = vector.broadcast %cst_104 : f32 to vector<32x256xf32>
    %170 = arith.addf %169, %168 : vector<32x256xf32>
    %171 = arith.divf %169, %170 : vector<32x256xf32>
    %172 = arith.mulf %164, %171 : vector<32x256xf32>
    %c0_105 = arith.constant 0 : index
    %c0_106 = arith.constant 0 : index
    %c0_107 = arith.constant 0 : index
    %173 = vector.load %arg13[%c0_105, %c0_106, %c0_107] : memref<1x256x64xf32, #tpu.memory_space<vmem>>, vector<1x256x64xf32>
    %174 = vector.shape_cast %173 : vector<1x256x64xf32> to vector<256x64xf32>
    %cst_108 = arith.constant dense<0.000000e+00> : vector<32x64xf32>
    %175 = tpu.matmul %172, %174, %cst_108 {dimension_numbers = #tpu.dot_dimension_numbers<[1], [0], [0], [1], [0, 0, 1, 1], [], []>} : vector<32x256xf32>, vector<256x64xf32>, vector<32x64xf32> -> vector<32x64xf32>
    %176 = arith.addf %131, %175 : vector<32x64xf32>
    %c0_109 = arith.constant 0 : index
    %c0_110 = arith.constant 0 : index
    %c0_111 = arith.constant 0 : index
    %177 = vector.load %arg14[%c0_109, %c0_110, %c0_111] : memref<1x1x64xf32, #tpu.memory_space<vmem>>, vector<1x1x64xf32>
    %178 = vector.shape_cast %177 : vector<1x1x64xf32> to vector<1x64xf32>
    %179 = vector.broadcast %178 : vector<1x64xf32> to vector<32x64xf32>
    %180 = arith.addf %176, %179 : vector<32x64xf32>
    %c0_112 = arith.constant 0 : index
    %c0_113 = arith.constant 0 : index
    %181 = vector.load %arg18[%c0_112, %c0_113] : memref<32x64xf32, #tpu.memory_space<vmem>>, vector<32x64xf32>
    tpu.vector_store %arg18[%c0_112, %c0_113], %180 {strides = array<i32>} : memref<32x64xf32, #tpu.memory_space<vmem>>, vector<32x64xf32>,
    %c1_i32 = arith.constant 1 : i32
    %182 = arith.cmpi eq, %arg0, %c1_i32 : i32
    %183 = arith.extui %182 : i1 to i32
    %c0_i32_114 = arith.constant 0 : i32
    %184 = arith.cmpi ne, %183, %c0_i32_114 : i32
    scf.if %184 {
      %c0_115 = arith.constant 0 : index
      %c0_116 = arith.constant 0 : index
      %185 = vector.load %arg15[%c0_115, %c0_116] : memref<1x64xf32, #tpu.memory_space<vmem>>, vector<1x64xf32>
      %c0_117 = arith.constant 0 : index
      %c0_118 = arith.constant 0 : index
      %186 = vector.load %arg16[%c0_117, %c0_118] : memref<1x64xf32, #tpu.memory_space<vmem>>, vector<1x64xf32>
      %cst_119 = arith.constant dense<0.000000e+00> : vector<32xf32>
      %187 = vector.multi_reduction <add>, %180, %cst_119 [1] : vector<32x64xf32> to vector<32xf32>
      %188 = vector.shape_cast %187 : vector<32xf32> to vector<32x1xf32>
      %cst_120 = arith.constant 6.400000e+01 : f32
      %189 = vector.broadcast %cst_120 : f32 to vector<32x1xf32>
      %190 = arith.divf %188, %189 : vector<32x1xf32>
      %191 = vector.broadcast %190 : vector<32x1xf32> to vector<32x64xf32>
      %192 = arith.subf %180, %191 : vector<32x64xf32>
      %193 = arith.mulf %192, %192 : vector<32x64xf32>
      %cst_121 = arith.constant dense<0.000000e+00> : vector<32xf32>
      %194 = vector.multi_reduction <add>, %193, %cst_121 [1] : vector<32x64xf32> to vector<32xf32>
      %195 = vector.shape_cast %194 : vector<32xf32> to vector<32x1xf32>
      %cst_122 = arith.constant 6.400000e+01 : f32
      %196 = vector.broadcast %cst_122 : f32 to vector<32x1xf32>
      %197 = arith.divf %195, %196 : vector<32x1xf32>
      %198 = vector.broadcast %190 : vector<32x1xf32> to vector<32x64xf32>
      %199 = arith.subf %180, %198 : vector<32x64xf32>
      %cst_123 = arith.constant 9.99999974E-6 : f32
      %200 = vector.broadcast %cst_123 : f32 to vector<32x1xf32>
      %201 = arith.addf %197, %200 : vector<32x1xf32>
      %202 = math.rsqrt %201 : vector<32x1xf32>
      %203 = vector.broadcast %202 : vector<32x1xf32> to vector<32x64xf32>
      %204 = arith.mulf %199, %203 : vector<32x64xf32>
      %205 = vector.broadcast %185 : vector<1x64xf32> to vector<32x64xf32>
      %206 = arith.mulf %204, %205 : vector<32x64xf32>
      %207 = vector.broadcast %186 : vector<1x64xf32> to vector<32x64xf32>
      %208 = arith.addf %206, %207 : vector<32x64xf32>
      %c0_124 = arith.constant 0 : index
      %c0_125 = arith.constant 0 : index
      %209 = vector.load %arg17[%c0_124, %c0_125] : memref<32x64xf32, #tpu.memory_space<vmem>>, vector<32x64xf32>
      tpu.vector_store %arg17[%c0_124, %c0_125], %208 {strides = array<i32>} : memref<32x64xf32, #tpu.memory_space<vmem>>, vector<32x64xf32>,
    } else {
    }
    return
  }
  func.func @transform_0(%arg0: i32) -> (i32, i32) {
    %c0_i32 = arith.constant 0 : i32
    %c0_i32_0 = arith.constant 0 : i32
    %c0_i32_1 = arith.constant 0 : i32
    return %c0_i32, %c0_i32_0 : i32, i32
  }
  func.func @transform_1(%arg0: i32) -> (i32, i32) {
    %c0_i32 = arith.constant 0 : i32
    %c0_i32_0 = arith.constant 0 : i32
    %c0_i32_1 = arith.constant 0 : i32
    return %c0_i32, %c0_i32_0 : i32, i32
  }
  func.func @transform_2(%arg0: i32) -> (i32, i32, i32) {
    %c0_i32 = arith.constant 0 : i32
    %c0_i32_0 = arith.constant 0 : i32
    %c0_i32_1 = arith.constant 0 : i32
    return %arg0, %c0_i32, %c0_i32_0 : i32, i32, i32
  }
  func.func @transform_3(%arg0: i32) -> (i32, i32, i32) {
    %c0_i32 = arith.constant 0 : i32
    %c0_i32_0 = arith.constant 0 : i32
    %c0_i32_1 = arith.constant 0 : i32
    return %arg0, %c0_i32, %c0_i32_0 : i32, i32, i32
  }
  func.func @transform_4(%arg0: i32) -> (i32, i32, i32) {
    %c0_i32 = arith.constant 0 : i32
    %c0_i32_0 = arith.constant 0 : i32
    %c0_i32_1 = arith.constant 0 : i32
    return %arg0, %c0_i32, %c0_i32_0 : i32, i32, i32
  }
  func.func @transform_5(%arg0: i32) -> (i32, i32, i32) {
    %c0_i32 = arith.constant 0 : i32
    %c0_i32_0 = arith.constant 0 : i32
    %c0_i32_1 = arith.constant 0 : i32
    return %arg0, %c0_i32, %c0_i32_0 : i32, i32, i32
  }
  func.func @transform_6(%arg0: i32) -> (i32, i32, i32) {
    %c0_i32 = arith.constant 0 : i32
    %c0_i32_0 = arith.constant 0 : i32
    %c0_i32_1 = arith.constant 0 : i32
    return %arg0, %c0_i32, %c0_i32_0 : i32, i32, i32
  }
  func.func @transform_7(%arg0: i32) -> (i32, i32, i32) {
    %c0_i32 = arith.constant 0 : i32
    %c0_i32_0 = arith.constant 0 : i32
    %c0_i32_1 = arith.constant 0 : i32
    return %arg0, %c0_i32, %c0_i32_0 : i32, i32, i32
  }
  func.func @transform_8(%arg0: i32) -> (i32, i32, i32) {
    %c0_i32 = arith.constant 0 : i32
    %c0_i32_0 = arith.constant 0 : i32
    %c0_i32_1 = arith.constant 0 : i32
    return %arg0, %c0_i32, %c0_i32_0 : i32, i32, i32
  }
  func.func @transform_9(%arg0: i32) -> (i32, i32, i32) {
    %c0_i32 = arith.constant 0 : i32
    %c0_i32_0 = arith.constant 0 : i32
    %c0_i32_1 = arith.constant 0 : i32
    return %arg0, %c0_i32, %c0_i32_0 : i32, i32, i32
  }
  func.func @transform_10(%arg0: i32) -> (i32, i32, i32) {
    %c0_i32 = arith.constant 0 : i32
    %c0_i32_0 = arith.constant 0 : i32
    %c0_i32_1 = arith.constant 0 : i32
    return %arg0, %c0_i32, %c0_i32_0 : i32, i32, i32
  }
  func.func @transform_11(%arg0: i32) -> (i32, i32, i32) {
    %c0_i32 = arith.constant 0 : i32
    %c0_i32_0 = arith.constant 0 : i32
    %c0_i32_1 = arith.constant 0 : i32
    return %arg0, %c0_i32, %c0_i32_0 : i32, i32, i32
  }
  func.func @transform_12(%arg0: i32) -> (i32, i32, i32) {
    %c0_i32 = arith.constant 0 : i32
    %c0_i32_0 = arith.constant 0 : i32
    %c0_i32_1 = arith.constant 0 : i32
    return %arg0, %c0_i32, %c0_i32_0 : i32, i32, i32
  }
  func.func @transform_13(%arg0: i32) -> (i32, i32, i32) {
    %c0_i32 = arith.constant 0 : i32
    %c0_i32_0 = arith.constant 0 : i32
    %c0_i32_1 = arith.constant 0 : i32
    return %arg0, %c0_i32, %c0_i32_0 : i32, i32, i32
  }
  func.func @transform_14(%arg0: i32) -> (i32, i32) {
    %c0_i32 = arith.constant 0 : i32
    %c0_i32_0 = arith.constant 0 : i32
    %c0_i32_1 = arith.constant 0 : i32
    return %c0_i32, %c0_i32_0 : i32, i32
  }
  func.func @transform_15(%arg0: i32) -> (i32, i32) {
    %c0_i32 = arith.constant 0 : i32
    %c0_i32_0 = arith.constant 0 : i32
    %c0_i32_1 = arith.constant 0 : i32
    return %c0_i32, %c0_i32_0 : i32, i32
  }
  func.func @transform_16(%arg0: i32) -> (i32, i32) {
    %c0_i32 = arith.constant 0 : i32
    %c0_i32_0 = arith.constant 0 : i32
    %c0_i32_1 = arith.constant 0 : i32
    return %c0_i32, %c0_i32_0 : i32, i32
  }
}

</mosaic_0001>

<llo_original>
// kernel: clip_forward.1
$region0: #{clip_forward.1}
  #allocation0 [shape = 'u32[]', space=smem, size = 0x4, offset = 0x4, fixed_abs, tag = 'smem constant byte address 0x4 - core index']
  #allocation1 [shape = 'u32[144,128]{1,0:T(1,128)}', space=vmem, size = 0x12000, scoped, tag = 'internal scratch']
  #allocation2 [shape = 'f32[32,64]{1,0:T(8,128)}', space=vmem, size = 0x4000, scoped, tag = 'scratch operand']
  #allocation3 [shape = 'f32[4,32,16]{2,1,0:T(8,128)}', space=vmem, size = 0x10000, scoped, tag = 'scratch operand']
  #allocation4 [shape = 'f32[4,32,16]{2,1,0:T(8,128)}', space=vmem, size = 0x10000, scoped, tag = 'scratch operand']
  #allocation5 [shape = 'f32[4,32,16]{2,1,0:T(8,128)}', space=vmem, size = 0x10000, scoped, tag = 'scratch operand']
  #allocation6 [shape = 'f32[32,64]{1,0:T(8,128)}', space=vmem, size = 0x4000, scoped, tag = 'scratch operand']
  %s0 = inlined_call_operand.vmem [shape: f32[32,64], index: 0, kind: input, shape index: {}]
  %s1 = inlined_call_operand.vmem [shape: f32[32,32], index: 1, kind: input, shape index: {}]
  %s2 = inlined_call_operand.vmem [shape: f32[2,1,64], index: 2, kind: input, shape index: {}]
  %s3 = inlined_call_operand.vmem [shape: f32[2,1,64], index: 3, kind: input, shape index: {}]
  %s4 = inlined_call_operand.vmem [shape: f32[2,64,192], index: 4, kind: input, shape index: {}]
  %s5 = inlined_call_operand.vmem [shape: f32[2,1,192], index: 5, kind: input, shape index: {}]
  %s6 = inlined_call_operand.vmem [shape: f32[2,64,64], index: 6, kind: input, shape index: {}]
  %s7 = inlined_call_operand.vmem [shape: f32[2,1,64], index: 7, kind: input, shape index: {}]
  %s8 = inlined_call_operand.vmem [shape: f32[2,1,64], index: 8, kind: input, shape index: {}]
  %s9 = inlined_call_operand.vmem [shape: f32[2,1,64], index: 9, kind: input, shape index: {}]
  %s10 = inlined_call_operand.vmem [shape: f32[2,64,256], index: 10, kind: input, shape index: {}]
  %s11 = inlined_call_operand.vmem [shape: f32[2,1,256], index: 11, kind: input, shape index: {}]
  %s12 = inlined_call_operand.vmem [shape: f32[2,256,64], index: 12, kind: input, shape index: {}]
  %s13 = inlined_call_operand.vmem [shape: f32[2,1,64], index: 13, kind: input, shape index: {}]
  %s14 = inlined_call_operand.vmem [shape: f32[1,64], index: 14, kind: input, shape index: {}]
  %s15 = inlined_call_operand.vmem [shape: f32[1,64], index: 15, kind: input, shape index: {}]
  %s16 = inlined_call_operand.hbm [shape: f32[32,64], index: 16, kind: output, shape index: {}]
  %s17 = sld [smem:[#allocation0]]
  $region105: #{clip_forward.1} parent=0
    _
  %s19 = ssub.s32 1, %s17
  %s20 = scalar_select 0, %s19, %s17
  $region1: #{clip_forward.1} parent=0
    #allocation7 [shape = 'u8[16384]{0}', space=vmem, size = 0x4000, scoped, tag = 'output window, operand 0, single buffered']
    #allocation8 [shape = 's32[2]{0}', space=sflag, size = 0x8, scoped, tag = 'scoped memory for clip_forward.1']
    %21 = vsyncpa [#allocation8], 0
    loop: start=0, step=1, limit=4
    $region2: #{clip_forward.1} parent=1 // loop_pre_header
      _
    $region3: #{clip_forward.1} parent=1 // loop_header
      %s23 = sphi 0, %s27
      %p24 = scmp.ge.s32.totalorder %s23, 4
      %s31 = sphi 0, %s31
      %s33 = sphi 0, %s31
      %s34 = sphi 0, %s33
      %s48 = sphi 0, %s34
      %s52 = sphi 0, %s52
      %s54 = sphi 0, %s52
      %s55 = sphi 0, %s54
      %s69 = sphi 0, %s55
      %s75 = sphi 0, %s77
      %s78 = sphi 0, %s75
      %s79 = sphi 0, %s78
      %s95 = sphi 0, %s79
      %s101 = sphi 0, %s103
      %s104 = sphi 0, %s101
      %s105 = sphi 0, %s104
      %s121 = sphi 0, %s105
      %s127 = sphi 0, %s129
      %s130 = sphi 0, %s127
      %s131 = sphi 0, %s130
      %s147 = sphi 0, %s131
      %s153 = sphi 0, %s155
      %s156 = sphi 0, %s153
      %s157 = sphi 0, %s156
      %s173 = sphi 0, %s157
      %s179 = sphi 0, %s181
      %s182 = sphi 0, %s179
      %s183 = sphi 0, %s182
      %s199 = sphi 0, %s183
      %s205 = sphi 0, %s207
      %s208 = sphi 0, %s205
      %s209 = sphi 0, %s208
      %s225 = sphi 0, %s209
      %s231 = sphi 0, %s233
      %s234 = sphi 0, %s231
      %s235 = sphi 0, %s234
      %s251 = sphi 0, %s235
      %s257 = sphi 0, %s259
      %s260 = sphi 0, %s257
      %s261 = sphi 0, %s260
      %s277 = sphi 0, %s261
      %s283 = sphi 0, %s285
      %s286 = sphi 0, %s283
      %s287 = sphi 0, %s286
      %s303 = sphi 0, %s287
      %s309 = sphi 0, %s311
      %s312 = sphi 0, %s309
      %s313 = sphi 0, %s312
      %s329 = sphi 0, %s313
      %s335 = sphi 0, %s337
      %s338 = sphi 0, %s335
      %s339 = sphi 0, %s338
      %s355 = sphi 0, %s339
      %s361 = sphi 0, %s363
      %s364 = sphi 0, %s361
      %s365 = sphi 0, %s364
      %s381 = sphi 0, %s365
      %s385 = sphi 0, %s385
      %s387 = sphi 0, %s385
      %s388 = sphi 0, %s387
      %s402 = sphi 0, %s388
      %s406 = sphi 0, %s406
      %s408 = sphi 0, %s406
      %s409 = sphi 0, %s408
      %s423 = sphi 0, %s409
      %s427 = sphi 0, %s427
      %s429 = sphi 0, %s427
      %s430 = sphi 0, %s429
      %s444 = sphi 0, %s430
    $region4: #{clip_forward.1} parent=1 // loop_header_branch
      %26 = sbr.rel (%p24) target = $region8
    $region5: #{clip_forward.1} parent=1 // loop_body
      %s28 = ssub.s32 %s23, 1
      %s29 = ssub.s32 %s23, 2
      %s30 = sadd.s32 %s23, 1
      %s32 = sadd.s32 %s31, 1
      %p35 = scmp.eq.s32.totalorder %s23, 1
      %p36 = scmp.ne.s32.totalorder %s31, %s33
      %p37 = scmp.eq.s32.totalorder %s23, 0
      %p38 = por %p36, %p37
      %p39 = scmp.ne.s32.totalorder %s31, %s33
      %p40 = scmp.eq.s32.totalorder %s28, 1
      %p41 = por %p39, %p40
      %p42 = scmp.ne.s32.totalorder %s33, %s34
      %p43 = scmp.eq.s32.totalorder %s28, 0
      %p44 = por %p42, %p43
      %p45 = scmp.ne.s32.totalorder %s33, %s34
      %p46 = scmp.eq.s32.totalorder %s29, 1
      %p47 = por %p45, %p46
      %p49 = scmp.ne.s32.totalorder %s34, %s48
      %p50 = scmp.eq.s32.totalorder %s29, 0
      %p51 = por %p49, %p50
      %s53 = sadd.s32 %s52, 1
      %p56 = scmp.eq.s32.totalorder %s23, 1
      %p57 = scmp.ne.s32.totalorder %s52, %s54
      %p58 = scmp.eq.s32.totalorder %s23, 0
      %p59 = por %p57, %p58
      %p60 = scmp.ne.s32.totalorder %s52, %s54
      %p61 = scmp.eq.s32.totalorder %s28, 1
      %p62 = por %p60, %p61
      %p63 = scmp.ne.s32.totalorder %s54, %s55
      %p64 = scmp.eq.s32.totalorder %s28, 0
      %p65 = por %p63, %p64
      %p66 = scmp.ne.s32.totalorder %s54, %s55
      %p67 = scmp.eq.s32.totalorder %s29, 1
      %p68 = por %p66, %p67
      %p70 = scmp.ne.s32.totalorder %s55, %s69
      %p71 = scmp.eq.s32.totalorder %s29, 0
      %p72 = por %p70, %p71
      %s73 = ssub.s32 %s23, %s30
      %p74 = scmp.eq.s32.totalorder %s73, 0
      %s76 = sadd.s32 %s75, 1
      %s77 = scalar_select %p74, %s75, %s76
      %p80 = pneg %p74
      %p81 = scmp.eq.s32.totalorder %s23, 1
      %p82 = por %p80, %p81
      %p83 = scmp.ne.s32.totalorder %s75, %s78
      %p84 = scmp.eq.s32.totalorder %s23, 0
      %p85 = por %p83, %p84
      %p86 = scmp.ne.s32.totalorder %s75, %s78
      %p87 = scmp.eq.s32.totalorder %s28, 1
      %p88 = por %p86, %p87
      %p89 = scmp.ne.s32.totalorder %s78, %s79
      %p90 = scmp.eq.s32.totalorder %s28, 0
      %p91 = por %p89, %p90
      %p92 = scmp.ne.s32.totalorder %s78, %s79
      %p93 = scmp.eq.s32.totalorder %s29, 1
      %p94 = por %p92, %p93
      %p96 = scmp.ne.s32.totalorder %s79, %s95
      %p97 = scmp.eq.s32.totalorder %s29, 0
      %p98 = por %p96, %p97
      %s99 = ssub.s32 %s23, %s30
      %p100 = scmp.eq.s32.totalorder %s99, 0
      %s102 = sadd.s32 %s101, 1
      %s103 = scalar_select %p100, %s101, %s102
      %p106 = pneg %p100
      %p107 = scmp.eq.s32.totalorder %s23, 1
      %p108 = por %p106, %p107
      %p109 = scmp.ne.s32.totalorder %s101, %s104
      %p110 = scmp.eq.s32.totalorder %s23, 0
      %p111 = por %p109, %p110
      %p112 = scmp.ne.s32.totalorder %s101, %s104
      %p113 = scmp.eq.s32.totalorder %s28, 1
      %p114 = por %p112, %p113
      %p115 = scmp.ne.s32.totalorder %s104, %s105
      %p116 = scmp.eq.s32.totalorder %s28, 0
      %p117 = por %p115, %p116
      %p118 = scmp.ne.s32.totalorder %s104, %s105
      %p119 = scmp.eq.s32.totalorder %s29, 1
      %p120 = por %p118, %p119
      %p122 = scmp.ne.s32.totalorder %s105, %s121
      %p123 = scmp.eq.s32.totalorder %s29, 0
      %p124 = por %p122, %p123
      %s125 = ssub.s32 %s23, %s30
      %p126 = scmp.eq.s32.totalorder %s125, 0
      %s128 = sadd.s32 %s127, 1
      %s129 = scalar_select %p126, %s127, %s128
      %p132 = pneg %p126
      %p133 = scmp.eq.s32.totalorder %s23, 1
      %p134 = por %p132, %p133
      %p135 = scmp.ne.s32.totalorder %s127, %s130
      %p136 = scmp.eq.s32.totalorder %s23, 0
      %p137 = por %p135, %p136
      %p138 = scmp.ne.s32.totalorder %s127, %s130
      %p139 = scmp.eq.s32.totalorder %s28, 1
      %p140 = por %p138, %p139
      %p141 = scmp.ne.s32.totalorder %s130, %s131
      %p142 = scmp.eq.s32.totalorder %s28, 0
      %p143 = por %p141, %p142
      %p144 = scmp.ne.s32.totalorder %s130, %s131
      %p145 = scmp.eq.s32.totalorder %s29, 1
      %p146 = por %p144, %p145
      %p148 = scmp.ne.s32.totalorder %s131, %s147
      %p149 = scmp.eq.s32.totalorder %s29, 0
      %p150 = por %p148, %p149
      %s151 = ssub.s32 %s23, %s30
      %p152 = scmp.eq.s32.totalorder %s151, 0
      %s154 = sadd.s32 %s153, 1
      %s155 = scalar_select %p152, %s153, %s154
      %p158 = pneg %p152
      %p159 = scmp.eq.s32.totalorder %s23, 1
      %p160 = por %p158, %p159
      %p161 = scmp.ne.s32.totalorder %s153, %s156
      %p162 = scmp.eq.s32.totalorder %s23, 0
      %p163 = por %p161, %p162
      %p164 = scmp.ne.s32.totalorder %s153, %s156
      %p165 = scmp.eq.s32.totalorder %s28, 1
      %p166 = por %p164, %p165
      %p167 = scmp.ne.s32.totalorder %s156, %s157
      %p168 = scmp.eq.s32.totalorder %s28, 0
      %p169 = por %p167, %p168
      %p170 = scmp.ne.s32.totalorder %s156, %s157
      %p171 = scmp.eq.s32.totalorder %s29, 1
      %p172 = por %p170, %p171
      %p174 = scmp.ne.s32.totalorder %s157, %s173
      %p175 = scmp.eq.s32.totalorder %s29, 0
      %p176 = por %p174, %p175
      %s177 = ssub.s32 %s23, %s30
      %p178 = scmp.eq.s32.totalorder %s177, 0
      %s180 = sadd.s32 %s179, 1
      %s181 = scalar_select %p178, %s179, %s180
      %p184 = pneg %p178
      %p185 = scmp.eq.s32.totalorder %s23, 1
      %p186 = por %p184, %p185
      %p187 = scmp.ne.s32.totalorder %s179, %s182
      %p188 = scmp.eq.s32.totalorder %s23, 0
      %p189 = por %p187, %p188
      %p190 = scmp.ne.s32.totalorder %s179, %s182
      %p191 = scmp.eq.s32.totalorder %s28, 1
      %p192 = por %p190, %p191
      %p193 = scmp.ne.s32.totalorder %s182, %s183
      %p194 = scmp.eq.s32.totalorder %s28, 0
      %p195 = por %p193, %p194
      %p196 = scmp.ne.s32.totalorder %s182, %s183
      %p197 = scmp.eq.s32.totalorder %s29, 1
      %p198 = por %p196, %p197
      %p200 = scmp.ne.s32.totalorder %s183, %s199
      %p201 = scmp.eq.s32.totalorder %s29, 0
      %p202 = por %p200, %p201
      %s203 = ssub.s32 %s23, %s30
      %p204 = scmp.eq.s32.totalorder %s203, 0
      %s206 = sadd.s32 %s205, 1
      %s207 = scalar_select %p204, %s205, %s206
      %p210 = pneg %p204
      %p211 = scmp.eq.s32.totalorder %s23, 1
      %p212 = por %p210, %p211
      %p213 = scmp.ne.s32.totalorder %s205, %s208
      %p214 = scmp.eq.s32.totalorder %s23, 0
      %p215 = por %p213, %p214
      %p216 = scmp.ne.s32.totalorder %s205, %s208
      %p217 = scmp.eq.s32.totalorder %s28, 1
      %p218 = por %p216, %p217
      %p219 = scmp.ne.s32.totalorder %s208, %s209
      %p220 = scmp.eq.s32.totalorder %s28, 0
      %p221 = por %p219, %p220
      %p222 = scmp.ne.s32.totalorder %s208, %s209
      %p223 = scmp.eq.s32.totalorder %s29, 1
      %p224 = por %p222, %p223
      %p226 = scmp.ne.s32.totalorder %s209, %s225
      %p227 = scmp.eq.s32.totalorder %s29, 0
      %p228 = por %p226, %p227
      %s229 = ssub.s32 %s23, %s30
      %p230 = scmp.eq.s32.totalorder %s229, 0
      %s232 = sadd.s32 %s231, 1
      %s233 = scalar_select %p230, %s231, %s232
      %p236 = pneg %p230
      %p237 = scmp.eq.s32.totalorder %s23, 1
      %p238 = por %p236, %p237
      %p239 = scmp.ne.s32.totalorder %s231, %s234
      %p240 = scmp.eq.s32.totalorder %s23, 0
      %p241 = por %p239, %p240
      %p242 = scmp.ne.s32.totalorder %s231, %s234
      %p243 = scmp.eq.s32.totalorder %s28, 1
      %p244 = por %p242, %p243
      %p245 = scmp.ne.s32.totalorder %s234, %s235
      %p246 = scmp.eq.s32.totalorder %s28, 0
      %p247 = por %p245, %p246
      %p248 = scmp.ne.s32.totalorder %s234, %s235
      %p249 = scmp.eq.s32.totalorder %s29, 1
      %p250 = por %p248, %p249
      %p252 = scmp.ne.s32.totalorder %s235, %s251
      %p253 = scmp.eq.s32.totalorder %s29, 0
      %p254 = por %p252, %p253
      %s255 = ssub.s32 %s23, %s30
      %p256 = scmp.eq.s32.totalorder %s255, 0
      %s258 = sadd.s32 %s257, 1
      %s259 = scalar_select %p256, %s257, %s258
      %p262 = pneg %p256
      %p263 = scmp.eq.s32.totalorder %s23, 1
      %p264 = por %p262, %p263
      %p265 = scmp.ne.s32.totalorder %s257, %s260
      %p266 = scmp.eq.s32.totalorder %s23, 0
      %p267 = por %p265, %p266
      %p268 = scmp.ne.s32.totalorder %s257, %s260
      %p269 = scmp.eq.s32.totalorder %s28, 1
      %p270 = por %p268, %p269
      %p271 = scmp.ne.s32.totalorder %s260, %s261
      %p272 = scmp.eq.s32.totalorder %s28, 0
      %p273 = por %p271, %p272
      %p274 = scmp.ne.s32.totalorder %s260, %s261
      %p275 = scmp.eq.s32.totalorder %s29, 1
      %p276 = por %p274, %p275
      %p278 = scmp.ne.s32.totalorder %s261, %s277
      %p279 = scmp.eq.s32.totalorder %s29, 0
      %p280 = por %p278, %p279
      %s281 = ssub.s32 %s23, %s30
      %p282 = scmp.eq.s32.totalorder %s281, 0
      %s284 = sadd.s32 %s283, 1
      %s285 = scalar_select %p282, %s283, %s284
      %p288 = pneg %p282
      %p289 = scmp.eq.s32.totalorder %s23, 1
      %p290 = por %p288, %p289
      %p291 = scmp.ne.s32.totalorder %s283, %s286
      %p292 = scmp.eq.s32.totalorder %s23, 0
      %p293 = por %p291, %p292
      %p294 = scmp.ne.s32.totalorder %s283, %s286
      %p295 = scmp.eq.s32.totalorder %s28, 1
      %p296 = por %p294, %p295
      %p297 = scmp.ne.s32.totalorder %s286, %s287
      %p298 = scmp.eq.s32.totalorder %s28, 0
      %p299 = por %p297, %p298
      %p300 = scmp.ne.s32.totalorder %s286, %s287
      %p301 = scmp.eq.s32.totalorder %s29, 1
      %p302 = por %p300, %p301
      %p304 = scmp.ne.s32.totalorder %s287, %s303
      %p305 = scmp.eq.s32.totalorder %s29, 0
      %p306 = por %p304, %p305
      %s307 = ssub.s32 %s23, %s30
      %p308 = scmp.eq.s32.totalorder %s307, 0
      %s310 = sadd.s32 %s309, 1
      %s311 = scalar_select %p308, %s309, %s310
      %p314 = pneg %p308
      %p315 = scmp.eq.s32.totalorder %s23, 1
      %p316 = por %p314, %p315
      %p317 = scmp.ne.s32.totalorder %s309, %s312
      %p318 = scmp.eq.s32.totalorder %s23, 0
      %p319 = por %p317, %p318
      %p320 = scmp.ne.s32.totalorder %s309, %s312
      %p321 = scmp.eq.s32.totalorder %s28, 1
      %p322 = por %p320, %p321
      %p323 = scmp.ne.s32.totalorder %s312, %s313
      %p324 = scmp.eq.s32.totalorder %s28, 0
      %p325 = por %p323, %p324
      %p326 = scmp.ne.s32.totalorder %s312, %s313
      %p327 = scmp.eq.s32.totalorder %s29, 1
      %p328 = por %p326, %p327
      %p330 = scmp.ne.s32.totalorder %s313, %s329
      %p331 = scmp.eq.s32.totalorder %s29, 0
      %p332 = por %p330, %p331
      %s333 = ssub.s32 %s23, %s30
      %p334 = scmp.eq.s32.totalorder %s333, 0
      %s336 = sadd.s32 %s335, 1
      %s337 = scalar_select %p334, %s335, %s336
      %p340 = pneg %p334
      %p341 = scmp.eq.s32.totalorder %s23, 1
      %p342 = por %p340, %p341
      %p343 = scmp.ne.s32.totalorder %s335, %s338
      %p344 = scmp.eq.s32.totalorder %s23, 0
      %p345 = por %p343, %p344
      %p346 = scmp.ne.s32.totalorder %s335, %s338
      %p347 = scmp.eq.s32.totalorder %s28, 1
      %p348 = por %p346, %p347
      %p349 = scmp.ne.s32.totalorder %s338, %s339
      %p350 = scmp.eq.s32.totalorder %s28, 0
      %p351 = por %p349, %p350
      %p352 = scmp.ne.s32.totalorder %s338, %s339
      %p353 = scmp.eq.s32.totalorder %s29, 1
      %p354 = por %p352, %p353
      %p356 = scmp.ne.s32.totalorder %s339, %s355
      %p357 = scmp.eq.s32.totalorder %s29, 0
      %p358 = por %p356, %p357
      %s359 = ssub.s32 %s23, %s30
      %p360 = scmp.eq.s32.totalorder %s359, 0
      %s362 = sadd.s32 %s361, 1
      %s363 = scalar_select %p360, %s361, %s362
      %p366 = pneg %p360
      %p367 = scmp.eq.s32.totalorder %s23, 1
      %p368 = por %p366, %p367
      %p369 = scmp.ne.s32.totalorder %s361, %s364
      %p370 = scmp.eq.s32.totalorder %s23, 0
      %p371 = por %p369, %p370
      %p372 = scmp.ne.s32.totalorder %s361, %s364
      %p373 = scmp.eq.s32.totalorder %s28, 1
      %p374 = por %p372, %p373
      %p375 = scmp.ne.s32.totalorder %s364, %s365
      %p376 = scmp.eq.s32.totalorder %s28, 0
      %p377 = por %p375, %p376
      %p378 = scmp.ne.s32.totalorder %s364, %s365
      %p379 = scmp.eq.s32.totalorder %s29, 1
      %p380 = por %p378, %p379
      %p382 = scmp.ne.s32.totalorder %s365, %s381
      %p383 = scmp.eq.s32.totalorder %s29, 0
      %p384 = por %p382, %p383
      %s386 = sadd.s32 %s385, 1
      %p389 = scmp.eq.s32.totalorder %s23, 1
      %p390 = scmp.ne.s32.totalorder %s385, %s387
      %p391 = scmp.eq.s32.totalorder %s23, 0
      %p392 = por %p390, %p391
      %p393 = scmp.ne.s32.totalorder %s385, %s387
      %p394 = scmp.eq.s32.totalorder %s28, 1
      %p395 = por %p393, %p394
      %p396 = scmp.ne.s32.totalorder %s387, %s388
      %p397 = scmp.eq.s32.totalorder %s28, 0
      %p398 = por %p396, %p397
      %p399 = scmp.ne.s32.totalorder %s387, %s388
      %p400 = scmp.eq.s32.totalorder %s29, 1
      %p401 = por %p399, %p400
      %p403 = scmp.ne.s32.totalorder %s388, %s402
      %p404 = scmp.eq.s32.totalorder %s29, 0
      %p405 = por %p403, %p404
      %s407 = sadd.s32 %s406, 1
      %p410 = scmp.eq.s32.totalorder %s23, 1
      %p411 = scmp.ne.s32.totalorder %s406, %s408
      %p412 = scmp.eq.s32.totalorder %s23, 0
      %p413 = por %p411, %p412
      %p414 = scmp.ne.s32.totalorder %s406, %s408
      %p415 = scmp.eq.s32.totalorder %s28, 1
      %p416 = por %p414, %p415
      %p417 = scmp.ne.s32.totalorder %s408, %s409
      %p418 = scmp.eq.s32.totalorder %s28, 0
      %p419 = por %p417, %p418
      %p420 = scmp.ne.s32.totalorder %s408, %s409
      %p421 = scmp.eq.s32.totalorder %s29, 1
      %p422 = por %p420, %p421
      %p424 = scmp.ne.s32.totalorder %s409, %s423
      %p425 = scmp.eq.s32.totalorder %s29, 0
      %p426 = por %p424, %p425
      %s428 = sadd.s32 %s427, 1
      %p431 = scmp.eq.s32.totalorder %s23, 1
      %p432 = scmp.ne.s32.totalorder %s427, %s429
      %p433 = scmp.eq.s32.totalorder %s23, 0
      %p434 = por %p432, %p433
      %p435 = scmp.ne.s32.totalorder %s427, %s429
      %p436 = scmp.eq.s32.totalorder %s28, 1
      %p437 = por %p435, %p436
      %p438 = scmp.ne.s32.totalorder %s429, %s430
      %p439 = scmp.eq.s32.totalorder %s28, 0
      %p440 = por %p438, %p439
      %p441 = scmp.ne.s32.totalorder %s429, %s430
      %p442 = scmp.eq.s32.totalorder %s29, 1
      %p443 = por %p441, %p442
      %p445 = scmp.ne.s32.totalorder %s430, %s444
      %p446 = scmp.eq.s32.totalorder %s29, 0
      %p447 = por %p445, %p446
      %p448 = scmp.le.s32.totalorder 1, %s23
      %p449 = scmp.lt.s32.totalorder %s23, 3
      %p450 = pnand %p448, %p449
      %p451 = pneg %p450
      // Predicated region
      $region9: #{clip_forward.1} parent=5 // pred_check
        _
      $region10: #{clip_forward.1} parent=5 // pred_check_branch
        %453 = sbr.rel (%p450) target = $region12
      $region11: #{clip_forward.1} parent=5 // pred_region
        %s454 = ssub.s32 %s23, 1
        // Predicated region
        $region13: #{clip_forward.1} parent=11 // pred_check
          %p455 = pneg %p44
        $region14: #{clip_forward.1} parent=11 // pred_check_branch
          %457 = sbr.rel (%p455) target = $region16
        $region15: #{clip_forward.1} parent=11 // pred_region
          _
        $region16: #{clip_forward.1} parent=11 // pred_fallthru
          _
        // Predicated region
        $region17: #{clip_forward.1} parent=11 // pred_check
          %p458 = pneg %p65
        $region18: #{clip_forward.1} parent=11 // pred_check_branch
          %460 = sbr.rel (%p458) target = $region20
        $region19: #{clip_forward.1} parent=11 // pred_region
          _
        $region20: #{clip_forward.1} parent=11 // pred_fallthru
          _
        // Predicated region
        $region21: #{clip_forward.1} parent=11 // pred_check
          %p461 = pneg %p398
        $region22: #{clip_forward.1} parent=11 // pred_check_branch
          %463 = sbr.rel (%p461) target = $region24
        $region23: #{clip_forward.1} parent=11 // pred_region
          _
        $region24: #{clip_forward.1} parent=11 // pred_fallthru
          _
        // Predicated region
        $region25: #{clip_forward.1} parent=11 // pred_check
          %p464 = pneg %p419
        $region26: #{clip_forward.1} parent=11 // pred_check_branch
          %466 = sbr.rel (%p464) target = $region28
        $region27: #{clip_forward.1} parent=11 // pred_region
          _
        $region28: #{clip_forward.1} parent=11 // pred_fallthru
          _
      $region12: #{clip_forward.1} parent=5 // pred_fallthru
        _
      %p467 = scmp.lt.s32.totalorder %s23, 2
      // Predicated region
      $region29: #{clip_forward.1} parent=5 // pred_check
        %p468 = pneg %p467
      $region30: #{clip_forward.1} parent=5 // pred_check_branch
        %470 = sbr.rel (%p468) target = $region32
      $region31: #{clip_forward.1} parent=5 // pred_region
        // Predicated region
        $region33: #{clip_forward.1} parent=31 // pred_check
          %p471 = pneg %p85
        $region34: #{clip_forward.1} parent=31 // pred_check_branch
          %473 = sbr.rel (%p471) target = $region36
        $region35: #{clip_forward.1} parent=31 // pred_region
          %p474 = scmp.lt.s32.totalorder %s23, 1
          %s475 = scalar_select %p474, %s23, 1
          %s476 = scalar_lea.vmem %s2, %s475
        $region36: #{clip_forward.1} parent=31 // pred_fallthru
          _
        // Predicated region
        $region37: #{clip_forward.1} parent=31 // pred_check
          %p477 = pneg %p111
        $region38: #{clip_forward.1} parent=31 // pred_check_branch
          %479 = sbr.rel (%p477) target = $region40
        $region39: #{clip_forward.1} parent=31 // pred_region
          %p480 = scmp.lt.s32.totalorder %s23, 1
          %s481 = scalar_select %p480, %s23, 1
          %s482 = scalar_lea.vmem %s3, %s481
        $region40: #{clip_forward.1} parent=31 // pred_fallthru
          _
        // Predicated region
        $region41: #{clip_forward.1} parent=31 // pred_check
          %p483 = pneg %p137
        $region42: #{clip_forward.1} parent=31 // pred_check_branch
          %485 = sbr.rel (%p483) target = $region44
        $region43: #{clip_forward.1} parent=31 // pred_region
          %p486 = scmp.lt.s32.totalorder %s23, 1
          %s487 = scalar_select %p486, %s23, 1
          %s488 = smul.addr %s487, 16
          %s489 = smul.addr %s488, 8
          %s490 = scalar_lea.vmem %s4, %s489
        $region44: #{clip_forward.1} parent=31 // pred_fallthru
          _
        // Predicated region
        $region45: #{clip_forward.1} parent=31 // pred_check
          %p491 = pneg %p163
        $region46: #{clip_forward.1} parent=31 // pred_check_branch
          %493 = sbr.rel (%p491) target = $region48
        $region47: #{clip_forward.1} parent=31 // pred_region
          %p494 = scmp.lt.s32.totalorder %s23, 1
          %s495 = scalar_select %p494, %s23, 1
          %s496 = smul.addr %s495, 2
          %s497 = scalar_lea.vmem %s5, %s496
        $region48: #{clip_forward.1} parent=31 // pred_fallthru
          _
        // Predicated region
        $region49: #{clip_forward.1} parent=31 // pred_check
          %p498 = pneg %p189
        $region50: #{clip_forward.1} parent=31 // pred_check_branch
          %500 = sbr.rel (%p498) target = $region52
        $region51: #{clip_forward.1} parent=31 // pred_region
          %p501 = scmp.lt.s32.totalorder %s23, 1
          %s502 = scalar_select %p501, %s23, 1
          %s503 = smul.addr %s502, 8
          %s504 = smul.addr %s503, 8
          %s505 = scalar_lea.vmem %s6, %s504
        $region52: #{clip_forward.1} parent=31 // pred_fallthru
          _
        // Predicated region
        $region53: #{clip_forward.1} parent=31 // pred_check
          %p506 = pneg %p215
        $region54: #{clip_forward.1} parent=31 // pred_check_branch
          %508 = sbr.rel (%p506) target = $region56
        $region55: #{clip_forward.1} parent=31 // pred_region
          %p509 = scmp.lt.s32.totalorder %s23, 1
          %s510 = scalar_select %p509, %s23, 1
          %s511 = scalar_lea.vmem %s7, %s510
        $region56: #{clip_forward.1} parent=31 // pred_fallthru
          _
        // Predicated region
        $region57: #{clip_forward.1} parent=31 // pred_check
          %p512 = pneg %p241
        $region58: #{clip_forward.1} parent=31 // pred_check_branch
          %514 = sbr.rel (%p512) target = $region60
        $region59: #{clip_forward.1} parent=31 // pred_region
          %p515 = scmp.lt.s32.totalorder %s23, 1
          %s516 = scalar_select %p515, %s23, 1
          %s517 = scalar_lea.vmem %s8, %s516
        $region60: #{clip_forward.1} parent=31 // pred_fallthru
          _
        // Predicated region
        $region61: #{clip_forward.1} parent=31 // pred_check
          %p518 = pneg %p267
        $region62: #{clip_forward.1} parent=31 // pred_check_branch
          %520 = sbr.rel (%p518) target = $region64
        $region63: #{clip_forward.1} parent=31 // pred_region
          %p521 = scmp.lt.s32.totalorder %s23, 1
          %s522 = scalar_select %p521, %s23, 1
          %s523 = scalar_lea.vmem %s9, %s522
        $region64: #{clip_forward.1} parent=31 // pred_fallthru
          _
        // Predicated region
        $region65: #{clip_forward.1} parent=31 // pred_check
          %p524 = pneg %p293
        $region66: #{clip_forward.1} parent=31 // pred_check_branch
          %526 = sbr.rel (%p524) target = $region68
        $region67: #{clip_forward.1} parent=31 // pred_region
          %p527 = scmp.lt.s32.totalorder %s23, 1
          %s528 = scalar_select %p527, %s23, 1
          %s529 = smul.addr %s528, 16
          %s530 = smul.addr %s529, 8
          %s531 = scalar_lea.vmem %s10, %s530
        $region68: #{clip_forward.1} parent=31 // pred_fallthru
          _
        // Predicated region
        $region69: #{clip_forward.1} parent=31 // pred_check
          %p532 = pneg %p319
        $region70: #{clip_forward.1} parent=31 // pred_check_branch
          %534 = sbr.rel (%p532) target = $region72
        $region71: #{clip_forward.1} parent=31 // pred_region
          %p535 = scmp.lt.s32.totalorder %s23, 1
          %s536 = scalar_select %p535, %s23, 1
          %s537 = smul.addr %s536, 2
          %s538 = scalar_lea.vmem %s11, %s537
        $region72: #{clip_forward.1} parent=31 // pred_fallthru
          _
        // Predicated region
        $region73: #{clip_forward.1} parent=31 // pred_check
          %p539 = pneg %p345
        $region74: #{clip_forward.1} parent=31 // pred_check_branch
          %541 = sbr.rel (%p539) target = $region76
        $region75: #{clip_forward.1} parent=31 // pred_region
          %p542 = scmp.lt.s32.totalorder %s23, 1
          %s543 = scalar_select %p542, %s23, 1
          %s544 = smul.addr %s543, 32
          %s545 = smul.addr %s544, 8
          %s546 = scalar_lea.vmem %s12, %s545
        $region76: #{clip_forward.1} parent=31 // pred_fallthru
          _
        // Predicated region
        $region77: #{clip_forward.1} parent=31 // pred_check
          %p547 = pneg %p371
        $region78: #{clip_forward.1} parent=31 // pred_check_branch
          %549 = sbr.rel (%p547) target = $region80
        $region79: #{clip_forward.1} parent=31 // pred_region
          %p550 = scmp.lt.s32.totalorder %s23, 1
          %s551 = scalar_select %p550, %s23, 1
          %s552 = scalar_lea.vmem %s13, %s551
        $region80: #{clip_forward.1} parent=31 // pred_fallthru
          _
      $region32: #{clip_forward.1} parent=5 // pred_fallthru
        _
      %p553 = scmp.le.s32.totalorder 1, %s23
      %p554 = scmp.lt.s32.totalorder %s23, 3
      %p555 = pnand %p553, %p554
      %p556 = pneg %p555
      // Predicated region
      $region81: #{clip_forward.1} parent=5 // pred_check
        _
      $region82: #{clip_forward.1} parent=5 // pred_check_branch
        %558 = sbr.rel (%p555) target = $region84
      $region83: #{clip_forward.1} parent=5 // pred_region
        %s559 = ssub.s32 %s23, 1
        %p560 = pneg %p44
        %p561 = pneg %p41
        %p562 = pneg %p65
        %p563 = pneg %p62
        %p564 = scmp.lt.s32.totalorder %s28, 1
        %s565 = scalar_select %p564, %s28, 1
        %s566 = scalar_lea.vmem %s2, %s565
        %p567 = pneg %p91
        %p568 = pneg %p88
        %p569 = scmp.lt.s32.totalorder %s28, 1
        %s570 = scalar_select %p569, %s28, 1
        %s571 = scalar_lea.vmem %s3, %s570
        %p572 = pneg %p117
        %p573 = pneg %p114
        %p574 = scmp.lt.s32.totalorder %s28, 1
        %s575 = scalar_select %p574, %s28, 1
        %s576 = smul.addr %s575, 16
        %s577 = smul.addr %s576, 8
        %s578 = scalar_lea.vmem %s4, %s577
        %p579 = pneg %p143
        %p580 = pneg %p140
        %p581 = scmp.lt.s32.totalorder %s28, 1
        %s582 = scalar_select %p581, %s28, 1
        %s583 = smul.addr %s582, 2
        %s584 = scalar_lea.vmem %s5, %s583
        %p585 = pneg %p169
        %p586 = pneg %p166
        %p587 = scmp.lt.s32.totalorder %s28, 1
        %s588 = scalar_select %p587, %s28, 1
        %s589 = smul.addr %s588, 8
        %s590 = smul.addr %s589, 8
        %s591 = scalar_lea.vmem %s6, %s590
        %p592 = pneg %p195
        %p593 = pneg %p192
        %p594 = scmp.lt.s32.totalorder %s28, 1
        %s595 = scalar_select %p594, %s28, 1
        %s596 = scalar_lea.vmem %s7, %s595
        %p597 = pneg %p221
        %p598 = pneg %p218
        %p599 = scmp.lt.s32.totalorder %s28, 1
        %s600 = scalar_select %p599, %s28, 1
        %s601 = scalar_lea.vmem %s8, %s600
        %p602 = pneg %p247
        %p603 = pneg %p244
        %p604 = scmp.lt.s32.totalorder %s28, 1
        %s605 = scalar_select %p604, %s28, 1
        %s606 = scalar_lea.vmem %s9, %s605
        %p607 = pneg %p273
        %p608 = pneg %p270
        %p609 = scmp.lt.s32.totalorder %s28, 1
        %s610 = scalar_select %p609, %s28, 1
        %s611 = smul.addr %s610, 16
        %s612 = smul.addr %s611, 8
        %s613 = scalar_lea.vmem %s10, %s612
        %p614 = pneg %p299
        %p615 = pneg %p296
        %p616 = scmp.lt.s32.totalorder %s28, 1
        %s617 = scalar_select %p616, %s28, 1
        %s618 = smul.addr %s617, 2
        %s619 = scalar_lea.vmem %s11, %s618
        %p620 = pneg %p325
        %p621 = pneg %p322
        %p622 = scmp.lt.s32.totalorder %s28, 1
        %s623 = scalar_select %p622, %s28, 1
        %s624 = smul.addr %s623, 32
        %s625 = smul.addr %s624, 8
        %s626 = scalar_lea.vmem %s12, %s625
        %p627 = pneg %p351
        %p628 = pneg %p348
        %p629 = scmp.lt.s32.totalorder %s28, 1
        %s630 = scalar_select %p629, %s28, 1
        %s631 = scalar_lea.vmem %s13, %s630
        %p632 = pneg %p377
        %p633 = pneg %p374
        %p634 = pneg %p398
        %p635 = pneg %p395
        %p636 = pneg %p419
        %p637 = pneg %p416
        %p638 = pneg %p440
        %p639 = pneg %p437
        %p640 = scmp.lt.s32.totalorder %s28, 1
        %s641 = scalar_select %p640, %s28, 1
        %s642 = scalar_lea.vmem %s2, %s641
        %p643 = scmp.lt.s32.totalorder %s28, 1
        %s644 = scalar_select %p643, %s28, 1
        %s645 = scalar_lea.vmem %s3, %s644
        %p646 = scmp.lt.s32.totalorder %s28, 1
        %s647 = scalar_select %p646, %s28, 1
        %s648 = smul.addr %s647, 16
        %s649 = smul.addr %s648, 8
        %s650 = scalar_lea.vmem %s4, %s649
        %p651 = scmp.lt.s32.totalorder %s28, 1
        %s652 = scalar_select %p651, %s28, 1
        %s653 = smul.addr %s652, 2
        %s654 = scalar_lea.vmem %s5, %s653
        %p655 = scmp.lt.s32.totalorder %s28, 1
        %s656 = scalar_select %p655, %s28, 1
        %s657 = smul.addr %s656, 8
        %s658 = smul.addr %s657, 8
        %s659 = scalar_lea.vmem %s6, %s658
        %p660 = scmp.lt.s32.totalorder %s28, 1
        %s661 = scalar_select %p660, %s28, 1
        %s662 = scalar_lea.vmem %s7, %s661
        %p663 = scmp.lt.s32.totalorder %s28, 1
        %s664 = scalar_select %p663, %s28, 1
        %s665 = scalar_lea.vmem %s8, %s664
        %p666 = scmp.lt.s32.totalorder %s28, 1
        %s667 = scalar_select %p666, %s28, 1
        %s668 = scalar_lea.vmem %s9, %s667
        %p669 = scmp.lt.s32.totalorder %s28, 1
        %s670 = scalar_select %p669, %s28, 1
        %s671 = smul.addr %s670, 16
        %s672 = smul.addr %s671, 8
        %s673 = scalar_lea.vmem %s10, %s672
        %p674 = scmp.lt.s32.totalorder %s28, 1
        %s675 = scalar_select %p674, %s28, 1
        %s676 = smul.addr %s675, 2
        %s677 = scalar_lea.vmem %s11, %s676
        %p678 = scmp.lt.s32.totalorder %s28, 1
        %s679 = scalar_select %p678, %s28, 1
        %s680 = smul.addr %s679, 32
        %s681 = smul.addr %s680, 8
        %s682 = scalar_lea.vmem %s12, %s681
        %p683 = scmp.lt.s32.totalorder %s28, 1
        %s684 = scalar_select %p683, %s28, 1
        %s685 = scalar_lea.vmem %s13, %s684
        %p686 = scmp.eq.s32.totalorder %s28, 0
        // Predicated region
        $region85: #{clip_forward.1} parent=83 // pred_check
          %p687 = pneg %p686
        $region86: #{clip_forward.1} parent=83 // pred_check_branch
          %689 = sbr.rel (%p687) target = $region88
        $region87: #{clip_forward.1} parent=83 // pred_region
          %v690 = vld [vmem:[%s0] sm:$0xff]
          %v691 = vld [vmem:[%s0 + $0x8] sm:$0xff]
          %v692 = vld [vmem:[%s0 + $0x10] sm:$0xff]
          %v693 = vld [vmem:[%s0 + $0x18] sm:$0xff]
          %vm694 = vcmask 523264
          %695 = vst.msk [vmem:[#allocation2] sm:$0xff] %vm694, %v690
          %696 = vst.msk [vmem:[#allocation2 + $0x8] sm:$0xff] %vm694, %v691
          %697 = vst.msk [vmem:[#allocation2 + $0x10] sm:$0xff] %vm694, %v692
          %698 = vst.msk [vmem:[#allocation2 + $0x18] sm:$0xff] %vm694, %v693
        $region88: #{clip_forward.1} parent=83 // pred_fallthru
          _
        %v699 = vld [vmem:[#allocation2] sm:$0xff]
        %v700 = vld [vmem:[#allocation2 + $0x8] sm:$0xff]
        %v701 = vld [vmem:[#allocation2 + $0x10] sm:$0xff]
        %v702 = vld [vmem:[#allocation2 + $0x18] sm:$0xff]
        %v703 = vld [vmem:[%s642] sm:$0x1]
        %v704 = vld [vmem:[%s645] sm:$0x1]
        %vm705 = vcmask 523264
        %v706 = vsel %vm705, %v699, 0.0
        %707 = vadd.xlane.f32.xlu0 %v706
        %v708 = vpop.xlane.xlu0 %707
        %v709 = vsel %vm705, %v700, 0.0
        %710 = vadd.xlane.f32.xlu0 %v709
        %v711 = vpop.xlane.xlu0 %710
        %v712 = vsel %vm705, %v701, 0.0
        %713 = vadd.xlane.f32.xlu0 %v712
        %v714 = vpop.xlane.xlu0 %713
        %v715 = vsel %vm705, %v702, 0.0
        %716 = vadd.xlane.f32.xlu0 %v715
        %v717 = vpop.xlane.xlu0 %716
        %v718 = vrcp.pop 64.0
        %v719 = vmul.f32 %v708, %v718
        %v720 = vmul.f32 %v711, %v718
        %v721 = vmul.f32 %v714, %v718
        %v722 = vmul.f32 %v717, %v718
        %v723 = vsub.f32 %v699, %v719
        %v724 = vsub.f32 %v700, %v720
        %v725 = vsub.f32 %v701, %v721
        %v726 = vsub.f32 %v702, %v722
        %v727 = vmul.f32 %v723, %v723
        %v728 = vmul.f32 %v724, %v724
        %v729 = vmul.f32 %v725, %v725
        %v730 = vmul.f32 %v726, %v726
        %v731 = vsel %vm705, %v727, 0.0
        %732 = vadd.xlane.f32.xlu0 %v731
        %v733 = vpop.xlane.xlu0 %732
        %v734 = vsel %vm705, %v728, 0.0
        %735 = vadd.xlane.f32.xlu0 %v734
        %v736 = vpop.xlane.xlu0 %735
        %v737 = vsel %vm705, %v729, 0.0
        %738 = vadd.xlane.f32.xlu0 %v737
        %v739 = vpop.xlane.xlu0 %738
        %v740 = vsel %vm705, %v730, 0.0
        %741 = vadd.xlane.f32.xlu0 %v740
        %v742 = vpop.xlane.xlu0 %741
        %v743 = vmul.f32 %v733, %v718
        %v744 = vmul.f32 %v736, %v718
        %v745 = vmul.f32 %v739, %v718
        %v746 = vmul.f32 %v742, %v718
        %v747 = vadd.f32 %v743, 1e-05
        %v748 = vadd.f32 %v744, 1e-05
        %v749 = vadd.f32 %v745, 1e-05
        %v750 = vadd.f32 %v746, 1e-05
        %v751 = vrsqrt.pop %v747
        %v752 = vrsqrt.pop %v748
        %v753 = vrsqrt.pop %v749
        %v754 = vrsqrt.pop %v750
        %v755 = vmul.f32 %v723, %v751
        %v756 = vmul.f32 %v724, %v752
        %v757 = vmul.f32 %v725, %v753
        %v758 = vmul.f32 %v726, %v754
        %v760 = vlaneseq
        %v761 = vshrl.u32 %v760, 7
        %v762 = vsub.s32 0, %v761
        %v763 = vrot.slane %v703, %v762
        %v765 = vmul.f32 %v755, %v763
        %v766 = vmul.f32 %v756, %v763
        %v767 = vmul.f32 %v757, %v763
        %v768 = vmul.f32 %v758, %v763
        %v770 = vlaneseq
        %v771 = vshrl.u32 %v770, 7
        %v772 = vsub.s32 0, %v771
        %v773 = vrot.slane %v704, %v772
        %v775 = vadd.f32 %v765, %v773
        %v776 = vadd.f32 %v766, %v773
        %v777 = vadd.f32 %v767, %v773
        %v778 = vadd.f32 %v768, %v773
        %v779 = vld [vmem:[%s650] sm:$0xff]
        %v780 = vld [vmem:[%s650 + $0x8] sm:$0xff]
        %v781 = vld [vmem:[%s650 + $0x10] sm:$0xff]
        %v782 = vld [vmem:[%s650 + $0x18] sm:$0xff]
        %v783 = vld [vmem:[%s650 + $0x20] sm:$0xff]
        %v784 = vld [vmem:[%s650 + $0x28] sm:$0xff]
        %v785 = vld [vmem:[%s650 + $0x30] sm:$0xff]
        %v786 = vld [vmem:[%s650 + $0x38] sm:$0xff]
        %v787 = vld [vmem:[%s650 + $0x40] sm:$0xff]
        %v788 = vld [vmem:[%s650 + $0x48] sm:$0xff]
        %v789 = vld [vmem:[%s650 + $0x50] sm:$0xff]
        %v790 = vld [vmem:[%s650 + $0x58] sm:$0xff]
        %v791 = vld [vmem:[%s650 + $0x60] sm:$0xff]
        %v792 = vld [vmem:[%s650 + $0x68] sm:$0xff]
        %v793 = vld [vmem:[%s650 + $0x70] sm:$0xff]
        %v794 = vld [vmem:[%s650 + $0x78] sm:$0xff]
        %v795 = vld [vmem:[%s654] sm:$0x3]
        %v797 = vlaneseq
        %v798 = vshrl.u32 %v797, 7
        %v799 = vsub.s32 0, %v798
        %v800 = vrot.slane %v795, %v799
        %v801 = vlaneseq
        %v802 = vshrl.u32 %v801, 7
        %v803 = vsub.s32 1, %v802
        %v804 = vrot.slane %v795, %v803
        %v808 = vsel %vm705, %v775, 0
        %v811 = vsel %vm705, %v776, 0
        %v814 = vsel %vm705, %v777, 0
        %v817 = vsel %vm705, %v778, 0
        %819 = vmatprep.subr.mxu0 %v780
        %820 = vmatpush1.msra.mxu0 %v779
        %821 = vmatprep.subr.mxu0 %v782
        %822 = vmatpush1.msra.mxu0 %v781
        %823 = vmatprep.subr.mxu0 %v784
        %824 = vmatpush1.msra.mxu0 %v783
        %825 = vmatprep.subr.mxu0 %v786
        %826 = vmatpush1.msra.mxu0 %v785
        %827 = vmatprep.subr.mxu0 %v788
        %828 = vmatpush1.msra.mxu0 %v787
        %829 = vmatprep.subr.mxu0 %v790
        %830 = vmatpush1.msra.mxu0 %v789
        %831 = vmatprep.subr.mxu0 %v792
        %832 = vmatpush1.msra.mxu0 %v791
        %833 = vmatprep.subr.mxu0 %v794
        %834 = vmatpush1.msra.mxu0 %v793
        %835 = vmatprep.subr.mxu0 0.0
        %836 = vmatpush1.msra.mxu0 0.0
        %837 = vmatprep.subr.mxu0 0.0
        %838 = vmatpush1.msra.mxu0 0.0
        %839 = vmatprep.subr.mxu0 0.0
        %840 = vmatpush1.msra.mxu0 0.0
        %841 = vmatprep.subr.mxu0 0.0
        %842 = vmatpush1.msra.mxu0 0.0
        %843 = vmatprep.subr.mxu0 0.0
        %844 = vmatpush1.msra.mxu0 0.0
        %845 = vmatprep.subr.mxu0 0.0
        %846 = vmatpush1.msra.mxu0 0.0
        %847 = vmatprep.subr.mxu0 0.0
        %848 = vmatpush1.msra.mxu0 0.0
        %849 = vmatprep.subr.mxu0 0.0
        %850 = vmatpush1.msra.mxu0 0.0
        %851 = vmatprep.subr.mxu0 0.0
        %852 = vmatpush1.msra.mxu0 0.0
        %853 = vmatprep.subr.mxu0 0.0
        %854 = vmatpush1.msra.mxu0 0.0
        %855 = vmatprep.subr.mxu0 0.0
        %856 = vmatpush1.msra.mxu0 0.0
        %857 = vmatprep.subr.mxu0 0.0
        %858 = vmatpush1.msra.mxu0 0.0
        %859 = vmatprep.subr.mxu0 0.0
        %860 = vmatpush1.msra.mxu0 0.0
        %861 = vmatprep.subr.mxu0 0.0
        %862 = vmatpush1.msra.mxu0 0.0
        %863 = vmatprep.subr.mxu0 0.0
        %864 = vmatpush1.msra.mxu0 0.0
        %865 = vmatprep.subr.mxu0 0.0
        %866 = vmatpush1.msra.mxu0 0.0
        %867 = vmatprep.subr.mxu0 0.0
        %868 = vmatpush1.msra.mxu0 0.0
        %869 = vmatprep.subr.mxu0 0.0
        %870 = vmatpush1.msra.mxu0 0.0
        %871 = vmatprep.subr.mxu0 0.0
        %872 = vmatpush1.msra.mxu0 0.0
        %873 = vmatprep.subr.mxu0 0.0
        %874 = vmatpush1.msra.mxu0 0.0
        %875 = vmatprep.subr.mxu0 0.0
        %876 = vmatpush1.msra.mxu0 0.0
        %877 = vmatprep.subr.mxu0 0.0
        %878 = vmatpush1.msra.mxu0 0.0
        %879 = vmatprep.subr.mxu0 0.0
        %880 = vmatpush1.msra.mxu0 0.0
        %881 = vmatprep.subr.mxu0 0.0
        %882 = vmatpush1.msra.mxu0 0.0
        %883 = vmatprep.mubr.f32.mxu0 0.0
        %884 = vmatmul.mubr.f32.gmra.mrb[0].mxu0 %v808
        %v885 = vpop.f32.mrb[0].mxu0
        %v886 = vadd.f32 %v800, %v885
        %v887 = vpop.f32.mrb[0].mxu0
        %v888 = vadd.f32 %v804, %v887
        %889 = vmatprep.mubr.f32.mxu0 0.0
        %890 = vmatmul.mubr.f32.gmra.mrb[0].mxu0 %v811
        %v891 = vpop.f32.mrb[0].mxu0
        %v892 = vadd.f32 %v800, %v891
        %v893 = vpop.f32.mrb[0].mxu0
        %v894 = vadd.f32 %v804, %v893
        %895 = vmatprep.mubr.f32.mxu0 0.0
        %896 = vmatmul.mubr.f32.gmra.mrb[0].mxu0 %v814
        %v897 = vpop.f32.mrb[0].mxu0
        %v898 = vadd.f32 %v800, %v897
        %v899 = vpop.f32.mrb[0].mxu0
        %v900 = vadd.f32 %v804, %v899
        %901 = vmatprep.mubr.f32.mxu0 0.0
        %902 = vmatmul.mubr.f32.gmra.mrb[0].mxu0 %v817
        %v903 = vpop.f32.mrb[0].mxu0
        %v904 = vadd.f32 %v800, %v903
        %v905 = vpop.f32.mrb[0].mxu0
        %v906 = vadd.f32 %v804, %v905
        %907 = vdwg.mxu0
        %v908 = vmul.f32 %v886, 0.25
        %v909 = vmul.f32 %v892, 0.25
        %v910 = vmul.f32 %v898, 0.25
        %v911 = vmul.f32 %v904, 0.25
        %vm912 = vcmask 130048
        %913 = vst.msk [vmem:[#allocation3] sm:$0xff] %vm912, %v908
        %914 = vst.msk [vmem:[#allocation3 + $0x8] sm:$0xff] %vm912, %v909
        %915 = vst.msk [vmem:[#allocation3 + $0x10] sm:$0xff] %vm912, %v910
        %916 = vst.msk [vmem:[#allocation3 + $0x18] sm:$0xff] %vm912, %v911
        %921 = vrot.lane.b32.xlu0 %v886, 64
        %v922 = vpop.permute.xlu0 %921
        %923 = vrot.lane.b32.xlu0 %v892, 64
        %v924 = vpop.permute.xlu0 %923
        %925 = vrot.lane.b32.xlu0 %v898, 64
        %v926 = vpop.permute.xlu0 %925
        %927 = vrot.lane.b32.xlu0 %v904, 64
        %v928 = vpop.permute.xlu0 %927
        %933 = vst.msk [vmem:[#allocation4] sm:$0xff] %vm912, %v922
        %934 = vst.msk [vmem:[#allocation4 + $0x8] sm:$0xff] %vm912, %v924
        %935 = vst.msk [vmem:[#allocation4 + $0x10] sm:$0xff] %vm912, %v926
        %936 = vst.msk [vmem:[#allocation4 + $0x18] sm:$0xff] %vm912, %v928
        %937 = vst.msk [vmem:[#allocation5] sm:$0xff] %vm912, %v888
        %938 = vst.msk [vmem:[#allocation5 + $0x8] sm:$0xff] %vm912, %v894
        %939 = vst.msk [vmem:[#allocation5 + $0x10] sm:$0xff] %vm912, %v900
        %940 = vst.msk [vmem:[#allocation5 + $0x18] sm:$0xff] %vm912, %v906
        %945 = vrot.lane.b32.xlu0 %v908, 112
        %v946 = vpop.permute.xlu0 %945
        %947 = vrot.lane.b32.xlu0 %v909, 112
        %v948 = vpop.permute.xlu0 %947
        %949 = vrot.lane.b32.xlu0 %v910, 112
        %v950 = vpop.permute.xlu0 %949
        %951 = vrot.lane.b32.xlu0 %v911, 112
        %v952 = vpop.permute.xlu0 %951
        %s957 = scalar_lea.vmem [#allocation3], 32
        %958 = vst.msk [vmem:[%s957] sm:$0xff] %vm912, %v946
        %959 = vst.msk [vmem:[%s957 + $0x8] sm:$0xff] %vm912, %v948
        %960 = vst.msk [vmem:[%s957 + $0x10] sm:$0xff] %vm912, %v950
        %961 = vst.msk [vmem:[%s957 + $0x18] sm:$0xff] %vm912, %v952
        %962 = vrot.lane.b32.xlu0 %v886, 48
        %v963 = vpop.permute.xlu0 %962
        %964 = vrot.lane.b32.xlu0 %v892, 48
        %v965 = vpop.permute.xlu0 %964
        %966 = vrot.lane.b32.xlu0 %v898, 48
        %v967 = vpop.permute.xlu0 %966
        %968 = vrot.lane.b32.xlu0 %v904, 48
        %v969 = vpop.permute.xlu0 %968
        %s974 = scalar_lea.vmem [#allocation4], 32
        %975 = vst.msk [vmem:[%s974] sm:$0xff] %vm912, %v963
        %976 = vst.msk [vmem:[%s974 + $0x8] sm:$0xff] %vm912, %v965
        %977 = vst.msk [vmem:[%s974 + $0x10] sm:$0xff] %vm912, %v967
        %978 = vst.msk [vmem:[%s974 + $0x18] sm:$0xff] %vm912, %v969
        %983 = vrot.lane.b32.xlu0 %v888, 112
        %v984 = vpop.permute.xlu0 %983
        %985 = vrot.lane.b32.xlu0 %v894, 112
        %v986 = vpop.permute.xlu0 %985
        %987 = vrot.lane.b32.xlu0 %v900, 112
        %v988 = vpop.permute.xlu0 %987
        %989 = vrot.lane.b32.xlu0 %v906, 112
        %v990 = vpop.permute.xlu0 %989
        %s995 = scalar_lea.vmem [#allocation5], 32
        %996 = vst.msk [vmem:[%s995] sm:$0xff] %vm912, %v984
        %997 = vst.msk [vmem:[%s995 + $0x8] sm:$0xff] %vm912, %v986
        %998 = vst.msk [vmem:[%s995 + $0x10] sm:$0xff] %vm912, %v988
        %999 = vst.msk [vmem:[%s995 + $0x18] sm:$0xff] %vm912, %v990
        %1000 = vrot.lane.b32.xlu0 %v908, 96
        %v1001 = vpop.permute.xlu0 %1000
        %1002 = vrot.lane.b32.xlu0 %v909, 96
        %v1003 = vpop.permute.xlu0 %1002
        %1004 = vrot.lane.b32.xlu0 %v910, 96
        %v1005 = vpop.permute.xlu0 %1004
        %1006 = vrot.lane.b32.xlu0 %v911, 96
        %v1007 = vpop.permute.xlu0 %1006
        %s1012 = scalar_lea.vmem [#allocation3], 64
        %1013 = vst.msk [vmem:[%s1012] sm:$0xff] %vm912, %v1001
        %1014 = vst.msk [vmem:[%s1012 + $0x8] sm:$0xff] %vm912, %v1003
        %1015 = vst.msk [vmem:[%s1012 + $0x10] sm:$0xff] %vm912, %v1005
        %1016 = vst.msk [vmem:[%s1012 + $0x18] sm:$0xff] %vm912, %v1007
        %1017 = vrot.lane.b32.xlu0 %v886, 32
        %v1018 = vpop.permute.xlu0 %1017
        %1019 = vrot.lane.b32.xlu0 %v892, 32
        %v1020 = vpop.permute.xlu0 %1019
        %1021 = vrot.lane.b32.xlu0 %v898, 32
        %v1022 = vpop.permute.xlu0 %1021
        %1023 = vrot.lane.b32.xlu0 %v904, 32
        %v1024 = vpop.permute.xlu0 %1023
        %s1029 = scalar_lea.vmem [#allocation4], 64
        %1030 = vst.msk [vmem:[%s1029] sm:$0xff] %vm912, %v1018
        %1031 = vst.msk [vmem:[%s1029 + $0x8] sm:$0xff] %vm912, %v1020
        %1032 = vst.msk [vmem:[%s1029 + $0x10] sm:$0xff] %vm912, %v1022
        %1033 = vst.msk [vmem:[%s1029 + $0x18] sm:$0xff] %vm912, %v1024
        %1034 = vrot.lane.b32.xlu0 %v888, 96
        %v1035 = vpop.permute.xlu0 %1034
        %1036 = vrot.lane.b32.xlu0 %v894, 96
        %v1037 = vpop.permute.xlu0 %1036
        %1038 = vrot.lane.b32.xlu0 %v900, 96
        %v1039 = vpop.permute.xlu0 %1038
        %1040 = vrot.lane.b32.xlu0 %v906, 96
        %v1041 = vpop.permute.xlu0 %1040
        %s1046 = scalar_lea.vmem [#allocation5], 64
        %1047 = vst.msk [vmem:[%s1046] sm:$0xff] %vm912, %v1035
        %1048 = vst.msk [vmem:[%s1046 + $0x8] sm:$0xff] %vm912, %v1037
        %1049 = vst.msk [vmem:[%s1046 + $0x10] sm:$0xff] %vm912, %v1039
        %1050 = vst.msk [vmem:[%s1046 + $0x18] sm:$0xff] %vm912, %v1041
        %1051 = vrot.lane.b32.xlu0 %v908, 80
        %v1052 = vpop.permute.xlu0 %1051
        %1053 = vrot.lane.b32.xlu0 %v909, 80
        %v1054 = vpop.permute.xlu0 %1053
        %1055 = vrot.lane.b32.xlu0 %v910, 80
        %v1056 = vpop.permute.xlu0 %1055
        %1057 = vrot.lane.b32.xlu0 %v911, 80
        %v1058 = vpop.permute.xlu0 %1057
        %s1063 = scalar_lea.vmem [#allocation3], 96
        %1064 = vst.msk [vmem:[%s1063] sm:$0xff] %vm912, %v1052
        %1065 = vst.msk [vmem:[%s1063 + $0x8] sm:$0xff] %vm912, %v1054
        %1066 = vst.msk [vmem:[%s1063 + $0x10] sm:$0xff] %vm912, %v1056
        %1067 = vst.msk [vmem:[%s1063 + $0x18] sm:$0xff] %vm912, %v1058
        %1068 = vrot.lane.b32.xlu0 %v886, 16
        %v1069 = vpop.permute.xlu0 %1068
        %1070 = vrot.lane.b32.xlu0 %v892, 16
        %v1071 = vpop.permute.xlu0 %1070
        %1072 = vrot.lane.b32.xlu0 %v898, 16
        %v1073 = vpop.permute.xlu0 %1072
        %1074 = vrot.lane.b32.xlu0 %v904, 16
        %v1075 = vpop.permute.xlu0 %1074
        %s1080 = scalar_lea.vmem [#allocation4], 96
        %1081 = vst.msk [vmem:[%s1080] sm:$0xff] %vm912, %v1069
        %1082 = vst.msk [vmem:[%s1080 + $0x8] sm:$0xff] %vm912, %v1071
        %1083 = vst.msk [vmem:[%s1080 + $0x10] sm:$0xff] %vm912, %v1073
        %1084 = vst.msk [vmem:[%s1080 + $0x18] sm:$0xff] %vm912, %v1075
        %1085 = vrot.lane.b32.xlu0 %v888, 80
        %v1086 = vpop.permute.xlu0 %1085
        %1087 = vrot.lane.b32.xlu0 %v894, 80
        %v1088 = vpop.permute.xlu0 %1087
        %1089 = vrot.lane.b32.xlu0 %v900, 80
        %v1090 = vpop.permute.xlu0 %1089
        %1091 = vrot.lane.b32.xlu0 %v906, 80
        %v1092 = vpop.permute.xlu0 %1091
        %s1097 = scalar_lea.vmem [#allocation5], 96
        %1098 = vst.msk [vmem:[%s1097] sm:$0xff] %vm912, %v1086
        %1099 = vst.msk [vmem:[%s1097 + $0x8] sm:$0xff] %vm912, %v1088
        %1100 = vst.msk [vmem:[%s1097 + $0x10] sm:$0xff] %vm912, %v1090
        %1101 = vst.msk [vmem:[%s1097 + $0x18] sm:$0xff] %vm912, %v1092
        %v1102 = vld [vmem:[#allocation3] sm:$0xff]
        %v1103 = vld [vmem:[#allocation3 + $0x8] sm:$0xff]
        %v1104 = vld [vmem:[#allocation3 + $0x10] sm:$0xff]
        %v1105 = vld [vmem:[#allocation3 + $0x18] sm:$0xff]
        %v1106 = vld [vmem:[#allocation3 + $0x20] sm:$0xff]
        %v1107 = vld [vmem:[#allocation3 + $0x28] sm:$0xff]
        %v1108 = vld [vmem:[#allocation3 + $0x30] sm:$0xff]
        %v1109 = vld [vmem:[#allocation3 + $0x38] sm:$0xff]
        %v1110 = vld [vmem:[#allocation3 + $0x40] sm:$0xff]
        %v1111 = vld [vmem:[#allocation3 + $0x48] sm:$0xff]
        %v1112 = vld [vmem:[#allocation3 + $0x50] sm:$0xff]
        %v1113 = vld [vmem:[#allocation3 + $0x58] sm:$0xff]
        %v1114 = vld [vmem:[#allocation3 + $0x60] sm:$0xff]
        %v1115 = vld [vmem:[#allocation3 + $0x68] sm:$0xff]
        %v1116 = vld [vmem:[#allocation3 + $0x70] sm:$0xff]
        %v1117 = vld [vmem:[#allocation3 + $0x78] sm:$0xff]
        %v1118 = vld [vmem:[#allocation4] sm:$0xff]
        %v1119 = vld [vmem:[#allocation4 + $0x8] sm:$0xff]
        %v1120 = vld [vmem:[#allocation4 + $0x10] sm:$0xff]
        %v1121 = vld [vmem:[#allocation4 + $0x18] sm:$0xff]
        %v1122 = vld [vmem:[#allocation4 + $0x20] sm:$0xff]
        %v1123 = vld [vmem:[#allocation4 + $0x28] sm:$0xff]
        %v1124 = vld [vmem:[#allocation4 + $0x30] sm:$0xff]
        %v1125 = vld [vmem:[#allocation4 + $0x38] sm:$0xff]
        %v1126 = vld [vmem:[#allocation4 + $0x40] sm:$0xff]
        %v1127 = vld [vmem:[#allocation4 + $0x48] sm:$0xff]
        %v1128 = vld [vmem:[#allocation4 + $0x50] sm:$0xff]
        %v1129 = vld [vmem:[#allocation4 + $0x58] sm:$0xff]
        %v1130 = vld [vmem:[#allocation4 + $0x60] sm:$0xff]
        %v1131 = vld [vmem:[#allocation4 + $0x68] sm:$0xff]
        %v1132 = vld [vmem:[#allocation4 + $0x70] sm:$0xff]
        %v1133 = vld [vmem:[#allocation4 + $0x78] sm:$0xff]
        %v1134 = vld [vmem:[#allocation5] sm:$0xff]
        %v1135 = vld [vmem:[#allocation5 + $0x8] sm:$0xff]
        %v1136 = vld [vmem:[#allocation5 + $0x10] sm:$0xff]
        %v1137 = vld [vmem:[#allocation5 + $0x18] sm:$0xff]
        %v1138 = vld [vmem:[#allocation5 + $0x20] sm:$0xff]
        %v1139 = vld [vmem:[#allocation5 + $0x28] sm:$0xff]
        %v1140 = vld [vmem:[#allocation5 + $0x30] sm:$0xff]
        %v1141 = vld [vmem:[#allocation5 + $0x38] sm:$0xff]
        %v1142 = vld [vmem:[#allocation5 + $0x40] sm:$0xff]
        %v1143 = vld [vmem:[#allocation5 + $0x48] sm:$0xff]
        %v1144 = vld [vmem:[#allocation5 + $0x50] sm:$0xff]
        %v1145 = vld [vmem:[#allocation5 + $0x58] sm:$0xff]
        %v1146 = vld [vmem:[#allocation5 + $0x60] sm:$0xff]
        %v1147 = vld [vmem:[#allocation5 + $0x68] sm:$0xff]
        %v1148 = vld [vmem:[#allocation5 + $0x70] sm:$0xff]
        %v1149 = vld [vmem:[#allocation5 + $0x78] sm:$0xff]
        %v1150 = vld [vmem:[%s1] sm:$0xff]
        %v1151 = vld [vmem:[%s1 + $0x8] sm:$0xff]
        %v1152 = vld [vmem:[%s1 + $0x10] sm:$0xff]
        %v1153 = vld [vmem:[%s1 + $0x18] sm:$0xff]
        %v1155 = vsel %vm912, %v1102, 0
        %v1158 = vsel %vm912, %v1103, 0
        %v1161 = vsel %vm912, %v1104, 0
        %v1164 = vsel %vm912, %v1105, 0
        %v1167 = vsel %vm912, %v1118, 0
        %v1170 = vsel %vm912, %v1119, 0
        %v1173 = vsel %vm912, %v1120, 0
        %v1176 = vsel %vm912, %v1121, 0
        %1178 = vmatprep.subr.mxu0 0.0
        %1179 = vmatpush1.xpose.msra.mxu0 %v1167
        %1180 = vmatprep.subr.mxu0 0.0
        %1181 = vmatpush1.xpose.msra.mxu0 %v1170
        %1182 = vmatprep.subr.mxu0 0.0
        %1183 = vmatpush1.xpose.msra.mxu0 %v1173
        %1184 = vmatprep.subr.mxu0 0.0
        %1185 = vmatpush1.xpose.msra.mxu0 %v1176
        %1186 = vmatprep.subr.mxu0 0.0
        %1187 = vmatpush1.xpose.msra.mxu0 0.0
        %1188 = vmatprep.subr.mxu0 0.0
        %1189 = vmatpush1.xpose.msra.mxu0 0.0
        %1190 = vmatprep.subr.mxu0 0.0
        %1191 = vmatpush1.xpose.msra.mxu0 0.0
        %1192 = vmatprep.subr.mxu0 0.0
        %1193 = vmatpush1.xpose.msra.mxu0 0.0
        %1194 = vmatprep.subr.mxu0 0.0
        %1195 = vmatpush1.xpose.msra.mxu0 0.0
        %1196 = vmatprep.subr.mxu0 0.0
        %1197 = vmatpush1.xpose.msra.mxu0 0.0
        %1198 = vmatprep.subr.mxu0 0.0
        %1199 = vmatpush1.xpose.msra.mxu0 0.0
        %1200 = vmatprep.subr.mxu0 0.0
        %1201 = vmatpush1.xpose.msra.mxu0 0.0
        %1202 = vmatprep.subr.mxu0 0.0
        %1203 = vmatpush1.xpose.msra.mxu0 0.0
        %1204 = vmatprep.subr.mxu0 0.0
        %1205 = vmatpush1.xpose.msra.mxu0 0.0
        %1206 = vmatprep.subr.mxu0 0.0
        %1207 = vmatpush1.xpose.msra.mxu0 0.0
        %1208 = vmatprep.subr.mxu0 0.0
        %1209 = vmatpush1.xpose.msra.mxu0 0.0
        %1210 = vmatprep.subr.mxu0 0.0
        %1211 = vmatpush1.xpose.msra.mxu0 0.0
        %1212 = vmatprep.subr.mxu0 0.0
        %1213 = vmatpush1.xpose.msra.mxu0 0.0
        %1214 = vmatprep.subr.mxu0 0.0
        %1215 = vmatpush1.xpose.msra.mxu0 0.0
        %1216 = vmatprep.subr.mxu0 0.0
        %1217 = vmatpush1.xpose.msra.mxu0 0.0
        %1218 = vmatprep.subr.mxu0 0.0
        %1219 = vmatpush1.xpose.msra.mxu0 0.0
        %1220 = vmatprep.subr.mxu0 0.0
        %1221 = vmatpush1.xpose.msra.mxu0 0.0
        %1222 = vmatprep.subr.mxu0 0.0
        %1223 = vmatpush1.xpose.msra.mxu0 0.0
        %1224 = vmatprep.subr.mxu0 0.0
        %1225 = vmatpush1.xpose.msra.mxu0 0.0
        %1226 = vmatprep.subr.mxu0 0.0
        %1227 = vmatpush1.xpose.msra.mxu0 0.0
        %1228 = vmatprep.subr.mxu0 0.0
        %1229 = vmatpush1.xpose.msra.mxu0 0.0
        %1230 = vmatprep.subr.mxu0 0.0
        %1231 = vmatpush1.xpose.msra.mxu0 0.0
        %1232 = vmatprep.subr.mxu0 0.0
        %1233 = vmatpush1.xpose.msra.mxu0 0.0
        %1234 = vmatprep.subr.mxu0 0.0
        %1235 = vmatpush1.xpose.msra.mxu0 0.0
        %1236 = vmatprep.subr.mxu0 0.0
        %1237 = vmatpush1.xpose.msra.mxu0 0.0
        %1238 = vmatprep.subr.mxu0 0.0
        %1239 = vmatpush1.xpose.msra.mxu0 0.0
        %1240 = vmatprep.subr.mxu0 0.0
        %1241 = vmatpush1.xpose.msra.mxu0 0.0
        %1242 = vmatprep.mubr.f32.mxu0 0.0
        %1243 = vmatmul.mubr.f32.gmra.mrb[0].mxu0 %v1155
        %v1244 = vpop.f32.mrb[0].mxu0
        %v1245 = vadd.f32 %v1150, %v1244
        %v1246 = vpop.f32.mrb[0].mxu0
        %1247 = vmatprep.mubr.f32.mxu0 0.0
        %1248 = vmatmul.mubr.f32.gmra.mrb[0].mxu0 %v1158
        %v1249 = vpop.f32.mrb[0].mxu0
        %v1250 = vadd.f32 %v1151, %v1249
        %v1251 = vpop.f32.mrb[0].mxu0
        %1252 = vmatprep.mubr.f32.mxu0 0.0
        %1253 = vmatmul.mubr.f32.gmra.mrb[0].mxu0 %v1161
        %v1254 = vpop.f32.mrb[0].mxu0
        %v1255 = vadd.f32 %v1152, %v1254
        %v1256 = vpop.f32.mrb[0].mxu0
        %1257 = vmatprep.mubr.f32.mxu0 0.0
        %1258 = vmatmul.mubr.f32.gmra.mrb[0].mxu0 %v1164
        %v1259 = vpop.f32.mrb[0].mxu0
        %v1260 = vadd.f32 %v1153, %v1259
        %v1261 = vpop.f32.mrb[0].mxu0
        %1262 = vdwg.mxu0
        %v1264 = vsel %vm912, %v1106, 0
        %v1267 = vsel %vm912, %v1107, 0
        %v1270 = vsel %vm912, %v1108, 0
        %v1273 = vsel %vm912, %v1109, 0
        %v1276 = vsel %vm912, %v1122, 0
        %v1279 = vsel %vm912, %v1123, 0
        %v1282 = vsel %vm912, %v1124, 0
        %v1285 = vsel %vm912, %v1125, 0
        %1287 = vmatprep.subr.mxu0 0.0
        %1288 = vmatpush1.xpose.msra.mxu0 %v1276
        %1289 = vmatprep.subr.mxu0 0.0
        %1290 = vmatpush1.xpose.msra.mxu0 %v1279
        %1291 = vmatprep.subr.mxu0 0.0
        %1292 = vmatpush1.xpose.msra.mxu0 %v1282
        %1293 = vmatprep.subr.mxu0 0.0
        %1294 = vmatpush1.xpose.msra.mxu0 %v1285
        %1295 = vmatprep.subr.mxu0 0.0
        %1296 = vmatpush1.xpose.msra.mxu0 0.0
        %1297 = vmatprep.subr.mxu0 0.0
        %1298 = vmatpush1.xpose.msra.mxu0 0.0
        %1299 = vmatprep.subr.mxu0 0.0
        %1300 = vmatpush1.xpose.msra.mxu0 0.0
        %1301 = vmatprep.subr.mxu0 0.0
        %1302 = vmatpush1.xpose.msra.mxu0 0.0
        %1303 = vmatprep.subr.mxu0 0.0
        %1304 = vmatpush1.xpose.msra.mxu0 0.0
        %1305 = vmatprep.subr.mxu0 0.0
        %1306 = vmatpush1.xpose.msra.mxu0 0.0
        %1307 = vmatprep.subr.mxu0 0.0
        %1308 = vmatpush1.xpose.msra.mxu0 0.0
        %1309 = vmatprep.subr.mxu0 0.0
        %1310 = vmatpush1.xpose.msra.mxu0 0.0
        %1311 = vmatprep.subr.mxu0 0.0
        %1312 = vmatpush1.xpose.msra.mxu0 0.0
        %1313 = vmatprep.subr.mxu0 0.0
        %1314 = vmatpush1.xpose.msra.mxu0 0.0
        %1315 = vmatprep.subr.mxu0 0.0
        %1316 = vmatpush1.xpose.msra.mxu0 0.0
        %1317 = vmatprep.subr.mxu0 0.0
        %1318 = vmatpush1.xpose.msra.mxu0 0.0
        %1319 = vmatprep.subr.mxu0 0.0
        %1320 = vmatpush1.xpose.msra.mxu0 0.0
        %1321 = vmatprep.subr.mxu0 0.0
        %1322 = vmatpush1.xpose.msra.mxu0 0.0
        %1323 = vmatprep.subr.mxu0 0.0
        %1324 = vmatpush1.xpose.msra.mxu0 0.0
        %1325 = vmatprep.subr.mxu0 0.0
        %1326 = vmatpush1.xpose.msra.mxu0 0.0
        %1327 = vmatprep.subr.mxu0 0.0
        %1328 = vmatpush1.xpose.msra.mxu0 0.0
        %1329 = vmatprep.subr.mxu0 0.0
        %1330 = vmatpush1.xpose.msra.mxu0 0.0
        %1331 = vmatprep.subr.mxu0 0.0
        %1332 = vmatpush1.xpose.msra.mxu0 0.0
        %1333 = vmatprep.subr.mxu0 0.0
        %1334 = vmatpush1.xpose.msra.mxu0 0.0
        %1335 = vmatprep.subr.mxu0 0.0
        %1336 = vmatpush1.xpose.msra.mxu0 0.0
        %1337 = vmatprep.subr.mxu0 0.0
        %1338 = vmatpush1.xpose.msra.mxu0 0.0
        %1339 = vmatprep.subr.mxu0 0.0
        %1340 = vmatpush1.xpose.msra.mxu0 0.0
        %1341 = vmatprep.subr.mxu0 0.0
        %1342 = vmatpush1.xpose.msra.mxu0 0.0
        %1343 = vmatprep.subr.mxu0 0.0
        %1344 = vmatpush1.xpose.msra.mxu0 0.0
        %1345 = vmatprep.subr.mxu0 0.0
        %1346 = vmatpush1.xpose.msra.mxu0 0.0
        %1347 = vmatprep.subr.mxu0 0.0
        %1348 = vmatpush1.xpose.msra.mxu0 0.0
        %1349 = vmatprep.subr.mxu0 0.0
        %1350 = vmatpush1.xpose.msra.mxu0 0.0
        %1351 = vmatprep.mubr.f32.mxu0 0.0
        %1352 = vmatmul.mubr.f32.gmra.mrb[0].mxu0 %v1264
        %v1353 = vpop.f32.mrb[0].mxu0
        %v1354 = vadd.f32 %v1150, %v1353
        %v1355 = vpop.f32.mrb[0].mxu0
        %1356 = vmatprep.mubr.f32.mxu0 0.0
        %1357 = vmatmul.mubr.f32.gmra.mrb[0].mxu0 %v1267
        %v1358 = vpop.f32.mrb[0].mxu0
        %v1359 = vadd.f32 %v1151, %v1358
        %v1360 = vpop.f32.mrb[0].mxu0
        %1361 = vmatprep.mubr.f32.mxu0 0.0
        %1362 = vmatmul.mubr.f32.gmra.mrb[0].mxu0 %v1270
        %v1363 = vpop.f32.mrb[0].mxu0
        %v1364 = vadd.f32 %v1152, %v1363
        %v1365 = vpop.f32.mrb[0].mxu0
        %1366 = vmatprep.mubr.f32.mxu0 0.0
        %1367 = vmatmul.mubr.f32.gmra.mrb[0].mxu0 %v1273
        %v1368 = vpop.f32.mrb[0].mxu0
        %v1369 = vadd.f32 %v1153, %v1368
        %v1370 = vpop.f32.mrb[0].mxu0
        %1371 = vdwg.mxu0
        %v1373 = vsel %vm912, %v1110, 0
        %v1376 = vsel %vm912, %v1111, 0
        %v1379 = vsel %vm912, %v1112, 0
        %v1382 = vsel %vm912, %v1113, 0
        %v1385 = vsel %vm912, %v1126, 0
        %v1388 = vsel %vm912, %v1127, 0
        %v1391 = vsel %vm912, %v1128, 0
        %v1394 = vsel %vm912, %v1129, 0
        %1396 = vmatprep.subr.mxu0 0.0
        %1397 = vmatpush1.xpose.msra.mxu0 %v1385
        %1398 = vmatprep.subr.mxu0 0.0
        %1399 = vmatpush1.xpose.msra.mxu0 %v1388
        %1400 = vmatprep.subr.mxu0 0.0
        %1401 = vmatpush1.xpose.msra.mxu0 %v1391
        %1402 = vmatprep.subr.mxu0 0.0
        %1403 = vmatpush1.xpose.msra.mxu0 %v1394
        %1404 = vmatprep.subr.mxu0 0.0
        %1405 = vmatpush1.xpose.msra.mxu0 0.0
        %1406 = vmatprep.subr.mxu0 0.0
        %1407 = vmatpush1.xpose.msra.mxu0 0.0
        %1408 = vmatprep.subr.mxu0 0.0
        %1409 = vmatpush1.xpose.msra.mxu0 0.0
        %1410 = vmatprep.subr.mxu0 0.0
        %1411 = vmatpush1.xpose.msra.mxu0 0.0
        %1412 = vmatprep.subr.mxu0 0.0
        %1413 = vmatpush1.xpose.msra.mxu0 0.0
        %1414 = vmatprep.subr.mxu0 0.0
        %1415 = vmatpush1.xpose.msra.mxu0 0.0
        %1416 = vmatprep.subr.mxu0 0.0
        %1417 = vmatpush1.xpose.msra.mxu0 0.0
        %1418 = vmatprep.subr.mxu0 0.0
        %1419 = vmatpush1.xpose.msra.mxu0 0.0
        %1420 = vmatprep.subr.mxu0 0.0
        %1421 = vmatpush1.xpose.msra.mxu0 0.0
        %1422 = vmatprep.subr.mxu0 0.0
        %1423 = vmatpush1.xpose.msra.mxu0 0.0
        %1424 = vmatprep.subr.mxu0 0.0
        %1425 = vmatpush1.xpose.msra.mxu0 0.0
        %1426 = vmatprep.subr.mxu0 0.0
        %1427 = vmatpush1.xpose.msra.mxu0 0.0
        %1428 = vmatprep.subr.mxu0 0.0
        %1429 = vmatpush1.xpose.msra.mxu0 0.0
        %1430 = vmatprep.subr.mxu0 0.0
        %1431 = vmatpush1.xpose.msra.mxu0 0.0
        %1432 = vmatprep.subr.mxu0 0.0
        %1433 = vmatpush1.xpose.msra.mxu0 0.0
        %1434 = vmatprep.subr.mxu0 0.0
        %1435 = vmatpush1.xpose.msra.mxu0 0.0
        %1436 = vmatprep.subr.mxu0 0.0
        %1437 = vmatpush1.xpose.msra.mxu0 0.0
        %1438 = vmatprep.subr.mxu0 0.0
        %1439 = vmatpush1.xpose.msra.mxu0 0.0
        %1440 = vmatprep.subr.mxu0 0.0
        %1441 = vmatpush1.xpose.msra.mxu0 0.0
        %1442 = vmatprep.subr.mxu0 0.0
        %1443 = vmatpush1.xpose.msra.mxu0 0.0
        %1444 = vmatprep.subr.mxu0 0.0
        %1445 = vmatpush1.xpose.msra.mxu0 0.0
        %1446 = vmatprep.subr.mxu0 0.0
        %1447 = vmatpush1.xpose.msra.mxu0 0.0
        %1448 = vmatprep.subr.mxu0 0.0
        %1449 = vmatpush1.xpose.msra.mxu0 0.0
        %1450 = vmatprep.subr.mxu0 0.0
        %1451 = vmatpush1.xpose.msra.mxu0 0.0
        %1452 = vmatprep.subr.mxu0 0.0
        %1453 = vmatpush1.xpose.msra.mxu0 0.0
        %1454 = vmatprep.subr.mxu0 0.0
        %1455 = vmatpush1.xpose.msra.mxu0 0.0
        %1456 = vmatprep.subr.mxu0 0.0
        %1457 = vmatpush1.xpose.msra.mxu0 0.0
        %1458 = vmatprep.subr.mxu0 0.0
        %1459 = vmatpush1.xpose.msra.mxu0 0.0
        %1460 = vmatprep.mubr.f32.mxu0 0.0
        %1461 = vmatmul.mubr.f32.gmra.mrb[0].mxu0 %v1373
        %v1462 = vpop.f32.mrb[0].mxu0
        %v1463 = vadd.f32 %v1150, %v1462
        %v1464 = vpop.f32.mrb[0].mxu0
        %1465 = vmatprep.mubr.f32.mxu0 0.0
        %1466 = vmatmul.mubr.f32.gmra.mrb[0].mxu0 %v1376
        %v1467 = vpop.f32.mrb[0].mxu0
        %v1468 = vadd.f32 %v1151, %v1467
        %v1469 = vpop.f32.mrb[0].mxu0
        %1470 = vmatprep.mubr.f32.mxu0 0.0
        %1471 = vmatmul.mubr.f32.gmra.mrb[0].mxu0 %v1379
        %v1472 = vpop.f32.mrb[0].mxu0
        %v1473 = vadd.f32 %v1152, %v1472
        %v1474 = vpop.f32.mrb[0].mxu0
        %1475 = vmatprep.mubr.f32.mxu0 0.0
        %1476 = vmatmul.mubr.f32.gmra.mrb[0].mxu0 %v1382
        %v1477 = vpop.f32.mrb[0].mxu0
        %v1478 = vadd.f32 %v1153, %v1477
        %v1479 = vpop.f32.mrb[0].mxu0
        %1480 = vdwg.mxu0
        %v1482 = vsel %vm912, %v1114, 0
        %v1485 = vsel %vm912, %v1115, 0
        %v1488 = vsel %vm912, %v1116, 0
        %v1491 = vsel %vm912, %v1117, 0
        %v1494 = vsel %vm912, %v1130, 0
        %v1497 = vsel %vm912, %v1131, 0
        %v1500 = vsel %vm912, %v1132, 0
        %v1503 = vsel %vm912, %v1133, 0
        %1505 = vmatprep.subr.mxu0 0.0
        %1506 = vmatpush1.xpose.msra.mxu0 %v1494
        %1507 = vmatprep.subr.mxu0 0.0
        %1508 = vmatpush1.xpose.msra.mxu0 %v1497
        %1509 = vmatprep.subr.mxu0 0.0
        %1510 = vmatpush1.xpose.msra.mxu0 %v1500
        %1511 = vmatprep.subr.mxu0 0.0
        %1512 = vmatpush1.xpose.msra.mxu0 %v1503
        %1513 = vmatprep.subr.mxu0 0.0
        %1514 = vmatpush1.xpose.msra.mxu0 0.0
        %1515 = vmatprep.subr.mxu0 0.0
        %1516 = vmatpush1.xpose.msra.mxu0 0.0
        %1517 = vmatprep.subr.mxu0 0.0
        %1518 = vmatpush1.xpose.msra.mxu0 0.0
        %1519 = vmatprep.subr.mxu0 0.0
        %1520 = vmatpush1.xpose.msra.mxu0 0.0
        %1521 = vmatprep.subr.mxu0 0.0
        %1522 = vmatpush1.xpose.msra.mxu0 0.0
        %1523 = vmatprep.subr.mxu0 0.0
        %1524 = vmatpush1.xpose.msra.mxu0 0.0
        %1525 = vmatprep.subr.mxu0 0.0
        %1526 = vmatpush1.xpose.msra.mxu0 0.0
        %1527 = vmatprep.subr.mxu0 0.0
        %1528 = vmatpush1.xpose.msra.mxu0 0.0
        %1529 = vmatprep.subr.mxu0 0.0
        %1530 = vmatpush1.xpose.msra.mxu0 0.0
        %1531 = vmatprep.subr.mxu0 0.0
        %1532 = vmatpush1.xpose.msra.mxu0 0.0
        %1533 = vmatprep.subr.mxu0 0.0
        %1534 = vmatpush1.xpose.msra.mxu0 0.0
        %1535 = vmatprep.subr.mxu0 0.0
        %1536 = vmatpush1.xpose.msra.mxu0 0.0
        %1537 = vmatprep.subr.mxu0 0.0
        %1538 = vmatpush1.xpose.msra.mxu0 0.0
        %1539 = vmatprep.subr.mxu0 0.0
        %1540 = vmatpush1.xpose.msra.mxu0 0.0
        %1541 = vmatprep.subr.mxu0 0.0
        %1542 = vmatpush1.xpose.msra.mxu0 0.0
        %1543 = vmatprep.subr.mxu0 0.0
        %1544 = vmatpush1.xpose.msra.mxu0 0.0
        %1545 = vmatprep.subr.mxu0 0.0
        %1546 = vmatpush1.xpose.msra.mxu0 0.0
        %1547 = vmatprep.subr.mxu0 0.0
        %1548 = vmatpush1.xpose.msra.mxu0 0.0
        %1549 = vmatprep.subr.mxu0 0.0
        %1550 = vmatpush1.xpose.msra.mxu0 0.0
        %1551 = vmatprep.subr.mxu0 0.0
        %1552 = vmatpush1.xpose.msra.mxu0 0.0
        %1553 = vmatprep.subr.mxu0 0.0
        %1554 = vmatpush1.xpose.msra.mxu0 0.0
        %1555 = vmatprep.subr.mxu0 0.0
        %1556 = vmatpush1.xpose.msra.mxu0 0.0
        %1557 = vmatprep.subr.mxu0 0.0
        %1558 = vmatpush1.xpose.msra.mxu0 0.0
        %1559 = vmatprep.subr.mxu0 0.0
        %1560 = vmatpush1.xpose.msra.mxu0 0.0
        %1561 = vmatprep.subr.mxu0 0.0
        %1562 = vmatpush1.xpose.msra.mxu0 0.0
        %1563 = vmatprep.subr.mxu0 0.0
        %1564 = vmatpush1.xpose.msra.mxu0 0.0
        %1565 = vmatprep.subr.mxu0 0.0
        %1566 = vmatpush1.xpose.msra.mxu0 0.0
        %1567 = vmatprep.subr.mxu0 0.0
        %1568 = vmatpush1.xpose.msra.mxu0 0.0
        %1569 = vmatprep.mubr.f32.mxu0 0.0
        %1570 = vmatmul.mubr.f32.gmra.mrb[0].mxu0 %v1482
        %v1571 = vpop.f32.mrb[0].mxu0
        %v1572 = vadd.f32 %v1150, %v1571
        %v1573 = vpop.f32.mrb[0].mxu0
        %1574 = vmatprep.mubr.f32.mxu0 0.0
        %1575 = vmatmul.mubr.f32.gmra.mrb[0].mxu0 %v1485
        %v1576 = vpop.f32.mrb[0].mxu0
        %v1577 = vadd.f32 %v1151, %v1576
        %v1578 = vpop.f32.mrb[0].mxu0
        %1579 = vmatprep.mubr.f32.mxu0 0.0
        %1580 = vmatmul.mubr.f32.gmra.mrb[0].mxu0 %v1488
        %v1581 = vpop.f32.mrb[0].mxu0
        %v1582 = vadd.f32 %v1152, %v1581
        %v1583 = vpop.f32.mrb[0].mxu0
        %1584 = vmatprep.mubr.f32.mxu0 0.0
        %1585 = vmatmul.mubr.f32.gmra.mrb[0].mxu0 %v1491
        %v1586 = vpop.f32.mrb[0].mxu0
        %v1587 = vadd.f32 %v1153, %v1586
        %v1588 = vpop.f32.mrb[0].mxu0
        %1589 = vdwg.mxu0
        %vm1590 = vcmask 261120
        %v1591 = vsel %vm1590, %v1245, -inf
        %1592 = vmax.xlane.f32.xlu0 %v1591
        %v1593 = vpop.xlane.xlu0 %1592
        %v1594 = vsel %vm1590, %v1250, -inf
        %1595 = vmax.xlane.f32.xlu0 %v1594
        %v1596 = vpop.xlane.xlu0 %1595
        %v1597 = vsel %vm1590, %v1255, -inf
        %1598 = vmax.xlane.f32.xlu0 %v1597
        %v1599 = vpop.xlane.xlu0 %1598
        %v1600 = vsel %vm1590, %v1260, -inf
        %1601 = vmax.xlane.f32.xlu0 %v1600
        %v1602 = vpop.xlane.xlu0 %1601
        %v1603 = vsel %vm1590, %v1354, -inf
        %1604 = vmax.xlane.f32.xlu0 %v1603
        %v1605 = vpop.xlane.xlu0 %1604
        %v1606 = vsel %vm1590, %v1359, -inf
        %1607 = vmax.xlane.f32.xlu0 %v1606
        %v1608 = vpop.xlane.xlu0 %1607
        %v1609 = vsel %vm1590, %v1364, -inf
        %1610 = vmax.xlane.f32.xlu0 %v1609
        %v1611 = vpop.xlane.xlu0 %1610
        %v1612 = vsel %vm1590, %v1369, -inf
        %1613 = vmax.xlane.f32.xlu0 %v1612
        %v1614 = vpop.xlane.xlu0 %1613
        %v1615 = vsel %vm1590, %v1463, -inf
        %1616 = vmax.xlane.f32.xlu0 %v1615
        %v1617 = vpop.xlane.xlu0 %1616
        %v1618 = vsel %vm1590, %v1468, -inf
        %1619 = vmax.xlane.f32.xlu0 %v1618
        %v1620 = vpop.xlane.xlu0 %1619
        %v1621 = vsel %vm1590, %v1473, -inf
        %1622 = vmax.xlane.f32.xlu0 %v1621
        %v1623 = vpop.xlane.xlu0 %1622
        %v1624 = vsel %vm1590, %v1478, -inf
        %1625 = vmax.xlane.f32.xlu0 %v1624
        %v1626 = vpop.xlane.xlu0 %1625
        %v1627 = vsel %vm1590, %v1572, -inf
        %1628 = vmax.xlane.f32.xlu0 %v1627
        %v1629 = vpop.xlane.xlu0 %1628
        %v1630 = vsel %vm1590, %v1577, -inf
        %1631 = vmax.xlane.f32.xlu0 %v1630
        %v1632 = vpop.xlane.xlu0 %1631
        %v1633 = vsel %vm1590, %v1582, -inf
        %1634 = vmax.xlane.f32.xlu0 %v1633
        %v1635 = vpop.xlane.xlu0 %1634
        %v1636 = vsel %vm1590, %v1587, -inf
        %1637 = vmax.xlane.f32.xlu0 %v1636
        %v1638 = vpop.xlane.xlu0 %1637
        %v1639 = vsub.f32 %v1245, %v1593
        %v1640 = vsub.f32 %v1250, %v1596
        %v1641 = vsub.f32 %v1255, %v1599
        %v1642 = vsub.f32 %v1260, %v1602
        %v1643 = vsub.f32 %v1354, %v1605
        %v1644 = vsub.f32 %v1359, %v1608
        %v1645 = vsub.f32 %v1364, %v1611
        %v1646 = vsub.f32 %v1369, %v1614
        %v1647 = vsub.f32 %v1463, %v1617
        %v1648 = vsub.f32 %v1468, %v1620
        %v1649 = vsub.f32 %v1473, %v1623
        %v1650 = vsub.f32 %v1478, %v1626
        %v1651 = vsub.f32 %v1572, %v1629
        %v1652 = vsub.f32 %v1577, %v1632
        %v1653 = vsub.f32 %v1582, %v1635
        %v1654 = vsub.f32 %v1587, %v1638
        %v1655 = vmul.f32 %v1639, 1.442695
        %v1656 = vpow.pop %v1655
        %v1657 = vmul.f32 %v1640, 1.442695
        %v1658 = vpow.pop %v1657
        %v1659 = vmul.f32 %v1641, 1.442695
        %v1660 = vpow.pop %v1659
        %v1661 = vmul.f32 %v1642, 1.442695
        %v1662 = vpow.pop %v1661
        %v1663 = vmul.f32 %v1643, 1.442695
        %v1664 = vpow.pop %v1663
        %v1665 = vmul.f32 %v1644, 1.442695
        %v1666 = vpow.pop %v1665
        %v1667 = vmul.f32 %v1645, 1.442695
        %v1668 = vpow.pop %v1667
        %v1669 = vmul.f32 %v1646, 1.442695
        %v1670 = vpow.pop %v1669
        %v1671 = vmul.f32 %v1647, 1.442695
        %v1672 = vpow.pop %v1671
        %v1673 = vmul.f32 %v1648, 1.442695
        %v1674 = vpow.pop %v1673
        %v1675 = vmul.f32 %v1649, 1.442695
        %v1676 = vpow.pop %v1675
        %v1677 = vmul.f32 %v1650, 1.442695
        %v1678 = vpow.pop %v1677
        %v1679 = vmul.f32 %v1651, 1.442695
        %v1680 = vpow.pop %v1679
        %v1681 = vmul.f32 %v1652, 1.442695
        %v1682 = vpow.pop %v1681
        %v1683 = vmul.f32 %v1653, 1.442695
        %v1684 = vpow.pop %v1683
        %v1685 = vmul.f32 %v1654, 1.442695
        %v1686 = vpow.pop %v1685
        %v1687 = vsel %vm1590, %v1656, 0.0
        %1688 = vadd.xlane.f32.xlu0 %v1687
        %v1689 = vpop.xlane.xlu0 %1688
        %v1690 = vsel %vm1590, %v1658, 0.0
        %1691 = vadd.xlane.f32.xlu0 %v1690
        %v1692 = vpop.xlane.xlu0 %1691
        %v1693 = vsel %vm1590, %v1660, 0.0
        %1694 = vadd.xlane.f32.xlu0 %v1693
        %v1695 = vpop.xlane.xlu0 %1694
        %v1696 = vsel %vm1590, %v1662, 0.0
        %1697 = vadd.xlane.f32.xlu0 %v1696
        %v1698 = vpop.xlane.xlu0 %1697
        %v1699 = vsel %vm1590, %v1664, 0.0
        %1700 = vadd.xlane.f32.xlu0 %v1699
        %v1701 = vpop.xlane.xlu0 %1700
        %v1702 = vsel %vm1590, %v1666, 0.0
        %1703 = vadd.xlane.f32.xlu0 %v1702
        %v1704 = vpop.xlane.xlu0 %1703
        %v1705 = vsel %vm1590, %v1668, 0.0
        %1706 = vadd.xlane.f32.xlu0 %v1705
        %v1707 = vpop.xlane.xlu0 %1706
        %v1708 = vsel %vm1590, %v1670, 0.0
        %1709 = vadd.xlane.f32.xlu0 %v1708
        %v1710 = vpop.xlane.xlu0 %1709
        %v1711 = vsel %vm1590, %v1672, 0.0
        %1712 = vadd.xlane.f32.xlu0 %v1711
        %v1713 = vpop.xlane.xlu0 %1712
        %v1714 = vsel %vm1590, %v1674, 0.0
        %1715 = vadd.xlane.f32.xlu0 %v1714
        %v1716 = vpop.xlane.xlu0 %1715
        %v1717 = vsel %vm1590, %v1676, 0.0
        %1718 = vadd.xlane.f32.xlu0 %v1717
        %v1719 = vpop.xlane.xlu0 %1718
        %v1720 = vsel %vm1590, %v1678, 0.0
        %1721 = vadd.xlane.f32.xlu0 %v1720
        %v1722 = vpop.xlane.xlu0 %1721
        %v1723 = vsel %vm1590, %v1680, 0.0
        %1724 = vadd.xlane.f32.xlu0 %v1723
        %v1725 = vpop.xlane.xlu0 %1724
        %v1726 = vsel %vm1590, %v1682, 0.0
        %1727 = vadd.xlane.f32.xlu0 %v1726
        %v1728 = vpop.xlane.xlu0 %1727
        %v1729 = vsel %vm1590, %v1684, 0.0
        %1730 = vadd.xlane.f32.xlu0 %v1729
        %v1731 = vpop.xlane.xlu0 %1730
        %v1732 = vsel %vm1590, %v1686, 0.0
        %1733 = vadd.xlane.f32.xlu0 %v1732
        %v1734 = vpop.xlane.xlu0 %1733
        %v1735 = vrcp.pop %v1689
        %v1736 = vmul.f32 %v1656, %v1735
        %v1737 = vrcp.pop %v1692
        %v1738 = vmul.f32 %v1658, %v1737
        %v1739 = vrcp.pop %v1695
        %v1740 = vmul.f32 %v1660, %v1739
        %v1741 = vrcp.pop %v1698
        %v1742 = vmul.f32 %v1662, %v1741
        %v1743 = vrcp.pop %v1701
        %v1744 = vmul.f32 %v1664, %v1743
        %v1745 = vrcp.pop %v1704
        %v1746 = vmul.f32 %v1666, %v1745
        %v1747 = vrcp.pop %v1707
        %v1748 = vmul.f32 %v1668, %v1747
        %v1749 = vrcp.pop %v1710
        %v1750 = vmul.f32 %v1670, %v1749
        %v1751 = vrcp.pop %v1713
        %v1752 = vmul.f32 %v1672, %v1751
        %v1753 = vrcp.pop %v1716
        %v1754 = vmul.f32 %v1674, %v1753
        %v1755 = vrcp.pop %v1719
        %v1756 = vmul.f32 %v1676, %v1755
        %v1757 = vrcp.pop %v1722
        %v1758 = vmul.f32 %v1678, %v1757
        %v1759 = vrcp.pop %v1725
        %v1760 = vmul.f32 %v1680, %v1759
        %v1761 = vrcp.pop %v1728
        %v1762 = vmul.f32 %v1682, %v1761
        %v1763 = vrcp.pop %v1731
        %v1764 = vmul.f32 %v1684, %v1763
        %v1765 = vrcp.pop %v1734
        %v1766 = vmul.f32 %v1686, %v1765
        %v1768 = vsel %vm1590, %v1736, 0
        %v1771 = vsel %vm1590, %v1738, 0
        %v1774 = vsel %vm1590, %v1740, 0
        %v1777 = vsel %vm1590, %v1742, 0
        %1779 = vmatprep.subr.mxu0 0.0
        %1780 = vmatpush1.msra.mxu0 %v1134
        %1781 = vmatprep.subr.mxu0 0.0
        %1782 = vmatpush1.msra.mxu0 %v1135
        %1783 = vmatprep.subr.mxu0 0.0
        %1784 = vmatpush1.msra.mxu0 %v1136
        %1785 = vmatprep.subr.mxu0 0.0
        %1786 = vmatpush1.msra.mxu0 %v1137
        %1787 = vmatprep.subr.mxu0 0.0
        %1788 = vmatpush1.msra.mxu0 0.0
        %1789 = vmatprep.subr.mxu0 0.0
        %1790 = vmatpush1.msra.mxu0 0.0
        %1791 = vmatprep.subr.mxu0 0.0
        %1792 = vmatpush1.msra.mxu0 0.0
        %1793 = vmatprep.subr.mxu0 0.0
        %1794 = vmatpush1.msra.mxu0 0.0
        %1795 = vmatprep.subr.mxu0 0.0
        %1796 = vmatpush1.msra.mxu0 0.0
        %1797 = vmatprep.subr.mxu0 0.0
        %1798 = vmatpush1.msra.mxu0 0.0
        %1799 = vmatprep.subr.mxu0 0.0
        %1800 = vmatpush1.msra.mxu0 0.0
        %1801 = vmatprep.subr.mxu0 0.0
        %1802 = vmatpush1.msra.mxu0 0.0
        %1803 = vmatprep.subr.mxu0 0.0
        %1804 = vmatpush1.msra.mxu0 0.0
        %1805 = vmatprep.subr.mxu0 0.0
        %1806 = vmatpush1.msra.mxu0 0.0
        %1807 = vmatprep.subr.mxu0 0.0
        %1808 = vmatpush1.msra.mxu0 0.0
        %1809 = vmatprep.subr.mxu0 0.0
        %1810 = vmatpush1.msra.mxu0 0.0
        %1811 = vmatprep.subr.mxu0 0.0
        %1812 = vmatpush1.msra.mxu0 0.0
        %1813 = vmatprep.subr.mxu0 0.0
        %1814 = vmatpush1.msra.mxu0 0.0
        %1815 = vmatprep.subr.mxu0 0.0
        %1816 = vmatpush1.msra.mxu0 0.0
        %1817 = vmatprep.subr.mxu0 0.0
        %1818 = vmatpush1.msra.mxu0 0.0
        %1819 = vmatprep.subr.mxu0 0.0
        %1820 = vmatpush1.msra.mxu0 0.0
        %1821 = vmatprep.subr.mxu0 0.0
        %1822 = vmatpush1.msra.mxu0 0.0
        %1823 = vmatprep.subr.mxu0 0.0
        %1824 = vmatpush1.msra.mxu0 0.0
        %1825 = vmatprep.subr.mxu0 0.0
        %1826 = vmatpush1.msra.mxu0 0.0
        %1827 = vmatprep.subr.mxu0 0.0
        %1828 = vmatpush1.msra.mxu0 0.0
        %1829 = vmatprep.subr.mxu0 0.0
        %1830 = vmatpush1.msra.mxu0 0.0
        %1831 = vmatprep.subr.mxu0 0.0
        %1832 = vmatpush1.msra.mxu0 0.0
        %1833 = vmatprep.subr.mxu0 0.0
        %1834 = vmatpush1.msra.mxu0 0.0
        %1835 = vmatprep.subr.mxu0 0.0
        %1836 = vmatpush1.msra.mxu0 0.0
        %1837 = vmatprep.subr.mxu0 0.0
        %1838 = vmatpush1.msra.mxu0 0.0
        %1839 = vmatprep.subr.mxu0 0.0
        %1840 = vmatpush1.msra.mxu0 0.0
        %1841 = vmatprep.subr.mxu0 0.0
        %1842 = vmatpush1.msra.mxu0 0.0
        %1843 = vmatprep.mubr.f32.mxu0 0.0
        %1844 = vmatmul.mubr.f32.gmra.mrb[0].mxu0 %v1768
        %v1845 = vpop.f32.mrb[0].mxu0
        %v1846 = vadd.f32 0.0, %v1845
        %v1847 = vpop.f32.mrb[0].mxu0
        %1848 = vmatprep.mubr.f32.mxu0 0.0
        %1849 = vmatmul.mubr.f32.gmra.mrb[0].mxu0 %v1771
        %v1850 = vpop.f32.mrb[0].mxu0
        %v1851 = vadd.f32 0.0, %v1850
        %v1852 = vpop.f32.mrb[0].mxu0
        %1853 = vmatprep.mubr.f32.mxu0 0.0
        %1854 = vmatmul.mubr.f32.gmra.mrb[0].mxu0 %v1774
        %v1855 = vpop.f32.mrb[0].mxu0
        %v1856 = vadd.f32 0.0, %v1855
        %v1857 = vpop.f32.mrb[0].mxu0
        %1858 = vmatprep.mubr.f32.mxu0 0.0
        %1859 = vmatmul.mubr.f32.gmra.mrb[0].mxu0 %v1777
        %v1860 = vpop.f32.mrb[0].mxu0
        %v1861 = vadd.f32 0.0, %v1860
        %v1862 = vpop.f32.mrb[0].mxu0
        %1863 = vdwg.mxu0
        %v1865 = vsel %vm1590, %v1744, 0
        %v1868 = vsel %vm1590, %v1746, 0
        %v1871 = vsel %vm1590, %v1748, 0
        %v1874 = vsel %vm1590, %v1750, 0
        %1876 = vmatprep.subr.mxu0 0.0
        %1877 = vmatpush1.msra.mxu0 %v1138
        %1878 = vmatprep.subr.mxu0 0.0
        %1879 = vmatpush1.msra.mxu0 %v1139
        %1880 = vmatprep.subr.mxu0 0.0
        %1881 = vmatpush1.msra.mxu0 %v1140
        %1882 = vmatprep.subr.mxu0 0.0
        %1883 = vmatpush1.msra.mxu0 %v1141
        %1884 = vmatprep.subr.mxu0 0.0
        %1885 = vmatpush1.msra.mxu0 0.0
        %1886 = vmatprep.subr.mxu0 0.0
        %1887 = vmatpush1.msra.mxu0 0.0
        %1888 = vmatprep.subr.mxu0 0.0
        %1889 = vmatpush1.msra.mxu0 0.0
        %1890 = vmatprep.subr.mxu0 0.0
        %1891 = vmatpush1.msra.mxu0 0.0
        %1892 = vmatprep.subr.mxu0 0.0
        %1893 = vmatpush1.msra.mxu0 0.0
        %1894 = vmatprep.subr.mxu0 0.0
        %1895 = vmatpush1.msra.mxu0 0.0
        %1896 = vmatprep.subr.mxu0 0.0
        %1897 = vmatpush1.msra.mxu0 0.0
        %1898 = vmatprep.subr.mxu0 0.0
        %1899 = vmatpush1.msra.mxu0 0.0
        %1900 = vmatprep.subr.mxu0 0.0
        %1901 = vmatpush1.msra.mxu0 0.0
        %1902 = vmatprep.subr.mxu0 0.0
        %1903 = vmatpush1.msra.mxu0 0.0
        %1904 = vmatprep.subr.mxu0 0.0
        %1905 = vmatpush1.msra.mxu0 0.0
        %1906 = vmatprep.subr.mxu0 0.0
        %1907 = vmatpush1.msra.mxu0 0.0
        %1908 = vmatprep.subr.mxu0 0.0
        %1909 = vmatpush1.msra.mxu0 0.0
        %1910 = vmatprep.subr.mxu0 0.0
        %1911 = vmatpush1.msra.mxu0 0.0
        %1912 = vmatprep.subr.mxu0 0.0
        %1913 = vmatpush1.msra.mxu0 0.0
        %1914 = vmatprep.subr.mxu0 0.0
        %1915 = vmatpush1.msra.mxu0 0.0
        %1916 = vmatprep.subr.mxu0 0.0
        %1917 = vmatpush1.msra.mxu0 0.0
        %1918 = vmatprep.subr.mxu0 0.0
        %1919 = vmatpush1.msra.mxu0 0.0
        %1920 = vmatprep.subr.mxu0 0.0
        %1921 = vmatpush1.msra.mxu0 0.0
        %1922 = vmatprep.subr.mxu0 0.0
        %1923 = vmatpush1.msra.mxu0 0.0
        %1924 = vmatprep.subr.mxu0 0.0
        %1925 = vmatpush1.msra.mxu0 0.0
        %1926 = vmatprep.subr.mxu0 0.0
        %1927 = vmatpush1.msra.mxu0 0.0
        %1928 = vmatprep.subr.mxu0 0.0
        %1929 = vmatpush1.msra.mxu0 0.0
        %1930 = vmatprep.subr.mxu0 0.0
        %1931 = vmatpush1.msra.mxu0 0.0
        %1932 = vmatprep.subr.mxu0 0.0
        %1933 = vmatpush1.msra.mxu0 0.0
        %1934 = vmatprep.subr.mxu0 0.0
        %1935 = vmatpush1.msra.mxu0 0.0
        %1936 = vmatprep.subr.mxu0 0.0
        %1937 = vmatpush1.msra.mxu0 0.0
        %1938 = vmatprep.subr.mxu0 0.0
        %1939 = vmatpush1.msra.mxu0 0.0
        %1940 = vmatprep.mubr.f32.mxu0 0.0
        %1941 = vmatmul.mubr.f32.gmra.mrb[0].mxu0 %v1865
        %v1942 = vpop.f32.mrb[0].mxu0
        %v1943 = vadd.f32 0.0, %v1942
        %v1944 = vpop.f32.mrb[0].mxu0
        %1945 = vmatprep.mubr.f32.mxu0 0.0
        %1946 = vmatmul.mubr.f32.gmra.mrb[0].mxu0 %v1868
        %v1947 = vpop.f32.mrb[0].mxu0
        %v1948 = vadd.f32 0.0, %v1947
        %v1949 = vpop.f32.mrb[0].mxu0
        %1950 = vmatprep.mubr.f32.mxu0 0.0
        %1951 = vmatmul.mubr.f32.gmra.mrb[0].mxu0 %v1871
        %v1952 = vpop.f32.mrb[0].mxu0
        %v1953 = vadd.f32 0.0, %v1952
        %v1954 = vpop.f32.mrb[0].mxu0
        %1955 = vmatprep.mubr.f32.mxu0 0.0
        %1956 = vmatmul.mubr.f32.gmra.mrb[0].mxu0 %v1874
        %v1957 = vpop.f32.mrb[0].mxu0
        %v1958 = vadd.f32 0.0, %v1957
        %v1959 = vpop.f32.mrb[0].mxu0
        %1960 = vdwg.mxu0
        %v1962 = vsel %vm1590, %v1752, 0
        %v1965 = vsel %vm1590, %v1754, 0
        %v1968 = vsel %vm1590, %v1756, 0
        %v1971 = vsel %vm1590, %v1758, 0
        %1973 = vmatprep.subr.mxu0 0.0
        %1974 = vmatpush1.msra.mxu0 %v1142
        %1975 = vmatprep.subr.mxu0 0.0
        %1976 = vmatpush1.msra.mxu0 %v1143
        %1977 = vmatprep.subr.mxu0 0.0
        %1978 = vmatpush1.msra.mxu0 %v1144
        %1979 = vmatprep.subr.mxu0 0.0
        %1980 = vmatpush1.msra.mxu0 %v1145
        %1981 = vmatprep.subr.mxu0 0.0
        %1982 = vmatpush1.msra.mxu0 0.0
        %1983 = vmatprep.subr.mxu0 0.0
        %1984 = vmatpush1.msra.mxu0 0.0
        %1985 = vmatprep.subr.mxu0 0.0
        %1986 = vmatpush1.msra.mxu0 0.0
        %1987 = vmatprep.subr.mxu0 0.0
        %1988 = vmatpush1.msra.mxu0 0.0
        %1989 = vmatprep.subr.mxu0 0.0
        %1990 = vmatpush1.msra.mxu0 0.0
        %1991 = vmatprep.subr.mxu0 0.0
        %1992 = vmatpush1.msra.mxu0 0.0
        %1993 = vmatprep.subr.mxu0 0.0
        %1994 = vmatpush1.msra.mxu0 0.0
        %1995 = vmatprep.subr.mxu0 0.0
        %1996 = vmatpush1.msra.mxu0 0.0
        %1997 = vmatprep.subr.mxu0 0.0
        %1998 = vmatpush1.msra.mxu0 0.0
        %1999 = vmatprep.subr.mxu0 0.0
        %2000 = vmatpush1.msra.mxu0 0.0
        %2001 = vmatprep.subr.mxu0 0.0
        %2002 = vmatpush1.msra.mxu0 0.0
        %2003 = vmatprep.subr.mxu0 0.0
        %2004 = vmatpush1.msra.mxu0 0.0
        %2005 = vmatprep.subr.mxu0 0.0
        %2006 = vmatpush1.msra.mxu0 0.0
        %2007 = vmatprep.subr.mxu0 0.0
        %2008 = vmatpush1.msra.mxu0 0.0
        %2009 = vmatprep.subr.mxu0 0.0
        %2010 = vmatpush1.msra.mxu0 0.0
        %2011 = vmatprep.subr.mxu0 0.0
        %2012 = vmatpush1.msra.mxu0 0.0
        %2013 = vmatprep.subr.mxu0 0.0
        %2014 = vmatpush1.msra.mxu0 0.0
        %2015 = vmatprep.subr.mxu0 0.0
        %2016 = vmatpush1.msra.mxu0 0.0
        %2017 = vmatprep.subr.mxu0 0.0
        %2018 = vmatpush1.msra.mxu0 0.0
        %2019 = vmatprep.subr.mxu0 0.0
        %2020 = vmatpush1.msra.mxu0 0.0
        %2021 = vmatprep.subr.mxu0 0.0
        %2022 = vmatpush1.msra.mxu0 0.0
        %2023 = vmatprep.subr.mxu0 0.0
        %2024 = vmatpush1.msra.mxu0 0.0
        %2025 = vmatprep.subr.mxu0 0.0
        %2026 = vmatpush1.msra.mxu0 0.0
        %2027 = vmatprep.subr.mxu0 0.0
        %2028 = vmatpush1.msra.mxu0 0.0
        %2029 = vmatprep.subr.mxu0 0.0
        %2030 = vmatpush1.msra.mxu0 0.0
        %2031 = vmatprep.subr.mxu0 0.0
        %2032 = vmatpush1.msra.mxu0 0.0
        %2033 = vmatprep.subr.mxu0 0.0
        %2034 = vmatpush1.msra.mxu0 0.0
        %2035 = vmatprep.subr.mxu0 0.0
        %2036 = vmatpush1.msra.mxu0 0.0
        %2037 = vmatprep.mubr.f32.mxu0 0.0
        %2038 = vmatmul.mubr.f32.gmra.mrb[0].mxu0 %v1962
        %v2039 = vpop.f32.mrb[0].mxu0
        %v2040 = vadd.f32 0.0, %v2039
        %v2041 = vpop.f32.mrb[0].mxu0
        %2042 = vmatprep.mubr.f32.mxu0 0.0
        %2043 = vmatmul.mubr.f32.gmra.mrb[0].mxu0 %v1965
        %v2044 = vpop.f32.mrb[0].mxu0
        %v2045 = vadd.f32 0.0, %v2044
        %v2046 = vpop.f32.mrb[0].mxu0
        %2047 = vmatprep.mubr.f32.mxu0 0.0
        %2048 = vmatmul.mubr.f32.gmra.mrb[0].mxu0 %v1968
        %v2049 = vpop.f32.mrb[0].mxu0
        %v2050 = vadd.f32 0.0, %v2049
        %v2051 = vpop.f32.mrb[0].mxu0
        %2052 = vmatprep.mubr.f32.mxu0 0.0
        %2053 = vmatmul.mubr.f32.gmra.mrb[0].mxu0 %v1971
        %v2054 = vpop.f32.mrb[0].mxu0
        %v2055 = vadd.f32 0.0, %v2054
        %v2056 = vpop.f32.mrb[0].mxu0
        %2057 = vdwg.mxu0
        %v2059 = vsel %vm1590, %v1760, 0
        %v2062 = vsel %vm1590, %v1762, 0
        %v2065 = vsel %vm1590, %v1764, 0
        %v2068 = vsel %vm1590, %v1766, 0
        %2070 = vmatprep.subr.mxu0 0.0
        %2071 = vmatpush1.msra.mxu0 %v1146
        %2072 = vmatprep.subr.mxu0 0.0
        %2073 = vmatpush1.msra.mxu0 %v1147
        %2074 = vmatprep.subr.mxu0 0.0
        %2075 = vmatpush1.msra.mxu0 %v1148
        %2076 = vmatprep.subr.mxu0 0.0
        %2077 = vmatpush1.msra.mxu0 %v1149
        %2078 = vmatprep.subr.mxu0 0.0
        %2079 = vmatpush1.msra.mxu0 0.0
        %2080 = vmatprep.subr.mxu0 0.0
        %2081 = vmatpush1.msra.mxu0 0.0
        %2082 = vmatprep.subr.mxu0 0.0
        %2083 = vmatpush1.msra.mxu0 0.0
        %2084 = vmatprep.subr.mxu0 0.0
        %2085 = vmatpush1.msra.mxu0 0.0
        %2086 = vmatprep.subr.mxu0 0.0
        %2087 = vmatpush1.msra.mxu0 0.0
        %2088 = vmatprep.subr.mxu0 0.0
        %2089 = vmatpush1.msra.mxu0 0.0
        %2090 = vmatprep.subr.mxu0 0.0
        %2091 = vmatpush1.msra.mxu0 0.0
        %2092 = vmatprep.subr.mxu0 0.0
        %2093 = vmatpush1.msra.mxu0 0.0
        %2094 = vmatprep.subr.mxu0 0.0
        %2095 = vmatpush1.msra.mxu0 0.0
        %2096 = vmatprep.subr.mxu0 0.0
        %2097 = vmatpush1.msra.mxu0 0.0
        %2098 = vmatprep.subr.mxu0 0.0
        %2099 = vmatpush1.msra.mxu0 0.0
        %2100 = vmatprep.subr.mxu0 0.0
        %2101 = vmatpush1.msra.mxu0 0.0
        %2102 = vmatprep.subr.mxu0 0.0
        %2103 = vmatpush1.msra.mxu0 0.0
        %2104 = vmatprep.subr.mxu0 0.0
        %2105 = vmatpush1.msra.mxu0 0.0
        %2106 = vmatprep.subr.mxu0 0.0
        %2107 = vmatpush1.msra.mxu0 0.0
        %2108 = vmatprep.subr.mxu0 0.0
        %2109 = vmatpush1.msra.mxu0 0.0
        %2110 = vmatprep.subr.mxu0 0.0
        %2111 = vmatpush1.msra.mxu0 0.0
        %2112 = vmatprep.subr.mxu0 0.0
        %2113 = vmatpush1.msra.mxu0 0.0
        %2114 = vmatprep.subr.mxu0 0.0
        %2115 = vmatpush1.msra.mxu0 0.0
        %2116 = vmatprep.subr.mxu0 0.0
        %2117 = vmatpush1.msra.mxu0 0.0
        %2118 = vmatprep.subr.mxu0 0.0
        %2119 = vmatpush1.msra.mxu0 0.0
        %2120 = vmatprep.subr.mxu0 0.0
        %2121 = vmatpush1.msra.mxu0 0.0
        %2122 = vmatprep.subr.mxu0 0.0
        %2123 = vmatpush1.msra.mxu0 0.0
        %2124 = vmatprep.subr.mxu0 0.0
        %2125 = vmatpush1.msra.mxu0 0.0
        %2126 = vmatprep.subr.mxu0 0.0
        %2127 = vmatpush1.msra.mxu0 0.0
        %2128 = vmatprep.subr.mxu0 0.0
        %2129 = vmatpush1.msra.mxu0 0.0
        %2130 = vmatprep.subr.mxu0 0.0
        %2131 = vmatpush1.msra.mxu0 0.0
        %2132 = vmatprep.subr.mxu0 0.0
        %2133 = vmatpush1.msra.mxu0 0.0
        %2134 = vmatprep.mubr.f32.mxu0 0.0
        %2135 = vmatmul.mubr.f32.gmra.mrb[0].mxu0 %v2059
        %v2136 = vpop.f32.mrb[0].mxu0
        %v2137 = vadd.f32 0.0, %v2136
        %v2138 = vpop.f32.mrb[0].mxu0
        %2139 = vmatprep.mubr.f32.mxu0 0.0
        %2140 = vmatmul.mubr.f32.gmra.mrb[0].mxu0 %v2062
        %v2141 = vpop.f32.mrb[0].mxu0
        %v2142 = vadd.f32 0.0, %v2141
        %v2143 = vpop.f32.mrb[0].mxu0
        %2144 = vmatprep.mubr.f32.mxu0 0.0
        %2145 = vmatmul.mubr.f32.gmra.mrb[0].mxu0 %v2065
        %v2146 = vpop.f32.mrb[0].mxu0
        %v2147 = vadd.f32 0.0, %v2146
        %v2148 = vpop.f32.mrb[0].mxu0
        %2149 = vmatprep.mubr.f32.mxu0 0.0
        %2150 = vmatmul.mubr.f32.gmra.mrb[0].mxu0 %v2068
        %v2151 = vpop.f32.mrb[0].mxu0
        %v2152 = vadd.f32 0.0, %v2151
        %v2153 = vpop.f32.mrb[0].mxu0
        %2154 = vdwg.mxu0
        %2155 = vst.msk [vmem:[#allocation6] sm:$0xff] %vm912, %v1846
        %2156 = vst.msk [vmem:[#allocation6 + $0x8] sm:$0xff] %vm912, %v1851
        %2157 = vst.msk [vmem:[#allocation6 + $0x10] sm:$0xff] %vm912, %v1856
        %2158 = vst.msk [vmem:[#allocation6 + $0x18] sm:$0xff] %vm912, %v1861
        %2163 = vrot.lane.b32.xlu0 %v1943, 16
        %v2164 = vpop.permute.xlu0 %2163
        %2165 = vrot.lane.b32.xlu0 %v1948, 16
        %v2166 = vpop.permute.xlu0 %2165
        %2167 = vrot.lane.b32.xlu0 %v1953, 16
        %v2168 = vpop.permute.xlu0 %2167
        %2169 = vrot.lane.b32.xlu0 %v1958, 16
        %v2170 = vpop.permute.xlu0 %2169
        %vm2175 = vcmask 261248
        %2176 = vst.msk [vmem:[#allocation6] sm:$0xff] %vm2175, %v2164
        %2177 = vst.msk [vmem:[#allocation6 + $0x8] sm:$0xff] %vm2175, %v2166
        %2178 = vst.msk [vmem:[#allocation6 + $0x10] sm:$0xff] %vm2175, %v2168
        %2179 = vst.msk [vmem:[#allocation6 + $0x18] sm:$0xff] %vm2175, %v2170
        %2184 = vrot.lane.b32.xlu0 %v2040, 32
        %v2185 = vpop.permute.xlu0 %2184
        %2186 = vrot.lane.b32.xlu0 %v2045, 32
        %v2187 = vpop.permute.xlu0 %2186
        %2188 = vrot.lane.b32.xlu0 %v2050, 32
        %v2189 = vpop.permute.xlu0 %2188
        %2190 = vrot.lane.b32.xlu0 %v2055, 32
        %v2191 = vpop.permute.xlu0 %2190
        %vm2196 = vcmask 392448
        %2197 = vst.msk [vmem:[#allocation6] sm:$0xff] %vm2196, %v2185
        %2198 = vst.msk [vmem:[#allocation6 + $0x8] sm:$0xff] %vm2196, %v2187
        %2199 = vst.msk [vmem:[#allocation6 + $0x10] sm:$0xff] %vm2196, %v2189
        %2200 = vst.msk [vmem:[#allocation6 + $0x18] sm:$0xff] %vm2196, %v2191
        %2205 = vrot.lane.b32.xlu0 %v2137, 48
        %v2206 = vpop.permute.xlu0 %2205
        %2207 = vrot.lane.b32.xlu0 %v2142, 48
        %v2208 = vpop.permute.xlu0 %2207
        %2209 = vrot.lane.b32.xlu0 %v2147, 48
        %v2210 = vpop.permute.xlu0 %2209
        %2211 = vrot.lane.b32.xlu0 %v2152, 48
        %v2212 = vpop.permute.xlu0 %2211
        %vm2217 = vcmask 523648
        %2218 = vst.msk [vmem:[#allocation6] sm:$0xff] %vm2217, %v2206
        %2219 = vst.msk [vmem:[#allocation6 + $0x8] sm:$0xff] %vm2217, %v2208
        %2220 = vst.msk [vmem:[#allocation6 + $0x10] sm:$0xff] %vm2217, %v2210
        %2221 = vst.msk [vmem:[#allocation6 + $0x18] sm:$0xff] %vm2217, %v2212
        %v2222 = vld [vmem:[#allocation6] sm:$0xff]
        %v2223 = vld [vmem:[#allocation6 + $0x8] sm:$0xff]
        %v2224 = vld [vmem:[#allocation6 + $0x10] sm:$0xff]
        %v2225 = vld [vmem:[#allocation6 + $0x18] sm:$0xff]
        %v2226 = vld [vmem:[%s659] sm:$0xff]
        %v2227 = vld [vmem:[%s659 + $0x8] sm:$0xff]
        %v2228 = vld [vmem:[%s659 + $0x10] sm:$0xff]
        %v2229 = vld [vmem:[%s659 + $0x18] sm:$0xff]
        %v2230 = vld [vmem:[%s659 + $0x20] sm:$0xff]
        %v2231 = vld [vmem:[%s659 + $0x28] sm:$0xff]
        %v2232 = vld [vmem:[%s659 + $0x30] sm:$0xff]
        %v2233 = vld [vmem:[%s659 + $0x38] sm:$0xff]
        %v2235 = vsel %vm705, %v2222, 0
        %v2238 = vsel %vm705, %v2223, 0
        %v2241 = vsel %vm705, %v2224, 0
        %v2244 = vsel %vm705, %v2225, 0
        %2246 = vmatprep.subr.mxu0 0.0
        %2247 = vmatpush1.msra.mxu0 %v2226
        %2248 = vmatprep.subr.mxu0 0.0
        %2249 = vmatpush1.msra.mxu0 %v2227
        %2250 = vmatprep.subr.mxu0 0.0
        %2251 = vmatpush1.msra.mxu0 %v2228
        %2252 = vmatprep.subr.mxu0 0.0
        %2253 = vmatpush1.msra.mxu0 %v2229
        %2254 = vmatprep.subr.mxu0 0.0
        %2255 = vmatpush1.msra.mxu0 %v2230
        %2256 = vmatprep.subr.mxu0 0.0
        %2257 = vmatpush1.msra.mxu0 %v2231
        %2258 = vmatprep.subr.mxu0 0.0
        %2259 = vmatpush1.msra.mxu0 %v2232
        %2260 = vmatprep.subr.mxu0 0.0
        %2261 = vmatpush1.msra.mxu0 %v2233
        %2262 = vmatprep.subr.mxu0 0.0
        %2263 = vmatpush1.msra.mxu0 0.0
        %2264 = vmatprep.subr.mxu0 0.0
        %2265 = vmatpush1.msra.mxu0 0.0
        %2266 = vmatprep.subr.mxu0 0.0
        %2267 = vmatpush1.msra.mxu0 0.0
        %2268 = vmatprep.subr.mxu0 0.0
        %2269 = vmatpush1.msra.mxu0 0.0
        %2270 = vmatprep.subr.mxu0 0.0
        %2271 = vmatpush1.msra.mxu0 0.0
        %2272 = vmatprep.subr.mxu0 0.0
        %2273 = vmatpush1.msra.mxu0 0.0
        %2274 = vmatprep.subr.mxu0 0.0
        %2275 = vmatpush1.msra.mxu0 0.0
        %2276 = vmatprep.subr.mxu0 0.0
        %2277 = vmatpush1.msra.mxu0 0.0
        %2278 = vmatprep.subr.mxu0 0.0
        %2279 = vmatpush1.msra.mxu0 0.0
        %2280 = vmatprep.subr.mxu0 0.0
        %2281 = vmatpush1.msra.mxu0 0.0
        %2282 = vmatprep.subr.mxu0 0.0
        %2283 = vmatpush1.msra.mxu0 0.0
        %2284 = vmatprep.subr.mxu0 0.0
        %2285 = vmatpush1.msra.mxu0 0.0
        %2286 = vmatprep.subr.mxu0 0.0
        %2287 = vmatpush1.msra.mxu0 0.0
        %2288 = vmatprep.subr.mxu0 0.0
        %2289 = vmatpush1.msra.mxu0 0.0
        %2290 = vmatprep.subr.mxu0 0.0
        %2291 = vmatpush1.msra.mxu0 0.0
        %2292 = vmatprep.subr.mxu0 0.0
        %2293 = vmatpush1.msra.mxu0 0.0
        %2294 = vmatprep.subr.mxu0 0.0
        %2295 = vmatpush1.msra.mxu0 0.0
        %2296 = vmatprep.subr.mxu0 0.0
        %2297 = vmatpush1.msra.mxu0 0.0
        %2298 = vmatprep.subr.mxu0 0.0
        %2299 = vmatpush1.msra.mxu0 0.0
        %2300 = vmatprep.subr.mxu0 0.0
        %2301 = vmatpush1.msra.mxu0 0.0
        %2302 = vmatprep.subr.mxu0 0.0
        %2303 = vmatpush1.msra.mxu0 0.0
        %2304 = vmatprep.subr.mxu0 0.0
        %2305 = vmatpush1.msra.mxu0 0.0
        %2306 = vmatprep.subr.mxu0 0.0
        %2307 = vmatpush1.msra.mxu0 0.0
        %2308 = vmatprep.subr.mxu0 0.0
        %2309 = vmatpush1.msra.mxu0 0.0
        %2310 = vmatprep.mubr.f32.mxu0 0.0
        %2311 = vmatmul.mubr.f32.gmra.mrb[0].mxu0 %v2235
        %v2312 = vpop.f32.mrb[0].mxu0
        %v2313 = vadd.f32 0.0, %v2312
        %v2314 = vpop.f32.mrb[0].mxu0
        %2315 = vmatprep.mubr.f32.mxu0 0.0
        %2316 = vmatmul.mubr.f32.gmra.mrb[0].mxu0 %v2238
        %v2317 = vpop.f32.mrb[0].mxu0
        %v2318 = vadd.f32 0.0, %v2317
        %v2319 = vpop.f32.mrb[0].mxu0
        %2320 = vmatprep.mubr.f32.mxu0 0.0
        %2321 = vmatmul.mubr.f32.gmra.mrb[0].mxu0 %v2241
        %v2322 = vpop.f32.mrb[0].mxu0
        %v2323 = vadd.f32 0.0, %v2322
        %v2324 = vpop.f32.mrb[0].mxu0
        %2325 = vmatprep.mubr.f32.mxu0 0.0
        %2326 = vmatmul.mubr.f32.gmra.mrb[0].mxu0 %v2244
        %v2327 = vpop.f32.mrb[0].mxu0
        %v2328 = vadd.f32 0.0, %v2327
        %v2329 = vpop.f32.mrb[0].mxu0
        %2330 = vdwg.mxu0
        %v2331 = vadd.f32 %v699, %v2313
        %v2332 = vadd.f32 %v700, %v2318
        %v2333 = vadd.f32 %v701, %v2323
        %v2334 = vadd.f32 %v702, %v2328
        %v2335 = vld [vmem:[%s662] sm:$0x1]
        %v2337 = vlaneseq
        %v2338 = vshrl.u32 %v2337, 7
        %v2339 = vsub.s32 0, %v2338
        %v2340 = vrot.slane %v2335, %v2339
        %v2342 = vadd.f32 %v2331, %v2340
        %v2343 = vadd.f32 %v2332, %v2340
        %v2344 = vadd.f32 %v2333, %v2340
        %v2345 = vadd.f32 %v2334, %v2340
        %v2346 = vld [vmem:[%s665] sm:$0x1]
        %v2347 = vld [vmem:[%s668] sm:$0x1]
        %v2348 = vsel %vm705, %v2342, 0.0
        %2349 = vadd.xlane.f32.xlu0 %v2348
        %v2350 = vpop.xlane.xlu0 %2349
        %v2351 = vsel %vm705, %v2343, 0.0
        %2352 = vadd.xlane.f32.xlu0 %v2351
        %v2353 = vpop.xlane.xlu0 %2352
        %v2354 = vsel %vm705, %v2344, 0.0
        %2355 = vadd.xlane.f32.xlu0 %v2354
        %v2356 = vpop.xlane.xlu0 %2355
        %v2357 = vsel %vm705, %v2345, 0.0
        %2358 = vadd.xlane.f32.xlu0 %v2357
        %v2359 = vpop.xlane.xlu0 %2358
        %v2360 = vmul.f32 %v2350, %v718
        %v2361 = vmul.f32 %v2353, %v718
        %v2362 = vmul.f32 %v2356, %v718
        %v2363 = vmul.f32 %v2359, %v718
        %v2364 = vsub.f32 %v2342, %v2360
        %v2365 = vsub.f32 %v2343, %v2361
        %v2366 = vsub.f32 %v2344, %v2362
        %v2367 = vsub.f32 %v2345, %v2363
        %v2368 = vmul.f32 %v2364, %v2364
        %v2369 = vmul.f32 %v2365, %v2365
        %v2370 = vmul.f32 %v2366, %v2366
        %v2371 = vmul.f32 %v2367, %v2367
        %v2372 = vsel %vm705, %v2368, 0.0
        %2373 = vadd.xlane.f32.xlu0 %v2372
        %v2374 = vpop.xlane.xlu0 %2373
        %v2375 = vsel %vm705, %v2369, 0.0
        %2376 = vadd.xlane.f32.xlu0 %v2375
        %v2377 = vpop.xlane.xlu0 %2376
        %v2378 = vsel %vm705, %v2370, 0.0
        %2379 = vadd.xlane.f32.xlu0 %v2378
        %v2380 = vpop.xlane.xlu0 %2379
        %v2381 = vsel %vm705, %v2371, 0.0
        %2382 = vadd.xlane.f32.xlu0 %v2381
        %v2383 = vpop.xlane.xlu0 %2382
        %v2384 = vmul.f32 %v2374, %v718
        %v2385 = vmul.f32 %v2377, %v718
        %v2386 = vmul.f32 %v2380, %v718
        %v2387 = vmul.f32 %v2383, %v718
        %v2388 = vadd.f32 %v2384, 1e-05
        %v2389 = vadd.f32 %v2385, 1e-05
        %v2390 = vadd.f32 %v2386, 1e-05
        %v2391 = vadd.f32 %v2387, 1e-05
        %v2392 = vrsqrt.pop %v2388
        %v2393 = vrsqrt.pop %v2389
        %v2394 = vrsqrt.pop %v2390
        %v2395 = vrsqrt.pop %v2391
        %v2396 = vmul.f32 %v2364, %v2392
        %v2397 = vmul.f32 %v2365, %v2393
        %v2398 = vmul.f32 %v2366, %v2394
        %v2399 = vmul.f32 %v2367, %v2395
        %v2401 = vlaneseq
        %v2402 = vshrl.u32 %v2401, 7
        %v2403 = vsub.s32 0, %v2402
        %v2404 = vrot.slane %v2346, %v2403
        %v2406 = vmul.f32 %v2396, %v2404
        %v2407 = vmul.f32 %v2397, %v2404
        %v2408 = vmul.f32 %v2398, %v2404
        %v2409 = vmul.f32 %v2399, %v2404
        %v2411 = vlaneseq
        %v2412 = vshrl.u32 %v2411, 7
        %v2413 = vsub.s32 0, %v2412
        %v2414 = vrot.slane %v2347, %v2413
        %v2416 = vadd.f32 %v2406, %v2414
        %v2417 = vadd.f32 %v2407, %v2414
        %v2418 = vadd.f32 %v2408, %v2414
        %v2419 = vadd.f32 %v2409, %v2414
        %v2420 = vld [vmem:[%s673] sm:$0xff]
        %v2421 = vld [vmem:[%s673 + $0x8] sm:$0xff]
        %v2422 = vld [vmem:[%s673 + $0x10] sm:$0xff]
        %v2423 = vld [vmem:[%s673 + $0x18] sm:$0xff]
        %v2424 = vld [vmem:[%s673 + $0x20] sm:$0xff]
        %v2425 = vld [vmem:[%s673 + $0x28] sm:$0xff]
        %v2426 = vld [vmem:[%s673 + $0x30] sm:$0xff]
        %v2427 = vld [vmem:[%s673 + $0x38] sm:$0xff]
        %v2428 = vld [vmem:[%s673 + $0x40] sm:$0xff]
        %v2429 = vld [vmem:[%s673 + $0x48] sm:$0xff]
        %v2430 = vld [vmem:[%s673 + $0x50] sm:$0xff]
        %v2431 = vld [vmem:[%s673 + $0x58] sm:$0xff]
        %v2432 = vld [vmem:[%s673 + $0x60] sm:$0xff]
        %v2433 = vld [vmem:[%s673 + $0x68] sm:$0xff]
        %v2434 = vld [vmem:[%s673 + $0x70] sm:$0xff]
        %v2435 = vld [vmem:[%s673 + $0x78] sm:$0xff]
        %v2436 = vld [vmem:[%s677] sm:$0x3]
        %v2438 = vlaneseq
        %v2439 = vshrl.u32 %v2438, 7
        %v2440 = vsub.s32 0, %v2439
        %v2441 = vrot.slane %v2436, %v2440
        %v2442 = vlaneseq
        %v2443 = vshrl.u32 %v2442, 7
        %v2444 = vsub.s32 1, %v2443
        %v2445 = vrot.slane %v2436, %v2444
        %v2449 = vsel %vm705, %v2416, 0
        %v2452 = vsel %vm705, %v2417, 0
        %v2455 = vsel %vm705, %v2418, 0
        %v2458 = vsel %vm705, %v2419, 0
        %2460 = vmatprep.subr.mxu0 %v2421
        %2461 = vmatpush1.msra.mxu0 %v2420
        %2462 = vmatprep.subr.mxu0 %v2423
        %2463 = vmatpush1.msra.mxu0 %v2422
        %2464 = vmatprep.subr.mxu0 %v2425
        %2465 = vmatpush1.msra.mxu0 %v2424
        %2466 = vmatprep.subr.mxu0 %v2427
        %2467 = vmatpush1.msra.mxu0 %v2426
        %2468 = vmatprep.subr.mxu0 %v2429
        %2469 = vmatpush1.msra.mxu0 %v2428
        %2470 = vmatprep.subr.mxu0 %v2431
        %2471 = vmatpush1.msra.mxu0 %v2430
        %2472 = vmatprep.subr.mxu0 %v2433
        %2473 = vmatpush1.msra.mxu0 %v2432
        %2474 = vmatprep.subr.mxu0 %v2435
        %2475 = vmatpush1.msra.mxu0 %v2434
        %2476 = vmatprep.subr.mxu0 0.0
        %2477 = vmatpush1.msra.mxu0 0.0
        %2478 = vmatprep.subr.mxu0 0.0
        %2479 = vmatpush1.msra.mxu0 0.0
        %2480 = vmatprep.subr.mxu0 0.0
        %2481 = vmatpush1.msra.mxu0 0.0
        %2482 = vmatprep.subr.mxu0 0.0
        %2483 = vmatpush1.msra.mxu0 0.0
        %2484 = vmatprep.subr.mxu0 0.0
        %2485 = vmatpush1.msra.mxu0 0.0
        %2486 = vmatprep.subr.mxu0 0.0
        %2487 = vmatpush1.msra.mxu0 0.0
        %2488 = vmatprep.subr.mxu0 0.0
        %2489 = vmatpush1.msra.mxu0 0.0
        %2490 = vmatprep.subr.mxu0 0.0
        %2491 = vmatpush1.msra.mxu0 0.0
        %2492 = vmatprep.subr.mxu0 0.0
        %2493 = vmatpush1.msra.mxu0 0.0
        %2494 = vmatprep.subr.mxu0 0.0
        %2495 = vmatpush1.msra.mxu0 0.0
        %2496 = vmatprep.subr.mxu0 0.0
        %2497 = vmatpush1.msra.mxu0 0.0
        %2498 = vmatprep.subr.mxu0 0.0
        %2499 = vmatpush1.msra.mxu0 0.0
        %2500 = vmatprep.subr.mxu0 0.0
        %2501 = vmatpush1.msra.mxu0 0.0
        %2502 = vmatprep.subr.mxu0 0.0
        %2503 = vmatpush1.msra.mxu0 0.0
        %2504 = vmatprep.subr.mxu0 0.0
        %2505 = vmatpush1.msra.mxu0 0.0
        %2506 = vmatprep.subr.mxu0 0.0
        %2507 = vmatpush1.msra.mxu0 0.0
        %2508 = vmatprep.subr.mxu0 0.0
        %2509 = vmatpush1.msra.mxu0 0.0
        %2510 = vmatprep.subr.mxu0 0.0
        %2511 = vmatpush1.msra.mxu0 0.0
        %2512 = vmatprep.subr.mxu0 0.0
        %2513 = vmatpush1.msra.mxu0 0.0
        %2514 = vmatprep.subr.mxu0 0.0
        %2515 = vmatpush1.msra.mxu0 0.0
        %2516 = vmatprep.subr.mxu0 0.0
        %2517 = vmatpush1.msra.mxu0 0.0
        %2518 = vmatprep.subr.mxu0 0.0
        %2519 = vmatpush1.msra.mxu0 0.0
        %2520 = vmatprep.subr.mxu0 0.0
        %2521 = vmatpush1.msra.mxu0 0.0
        %2522 = vmatprep.subr.mxu0 0.0
        %2523 = vmatpush1.msra.mxu0 0.0
        %2524 = vmatprep.mubr.f32.mxu0 0.0
        %2525 = vmatmul.mubr.f32.gmra.mrb[0].mxu0 %v2449
        %v2526 = vpop.f32.mrb[0].mxu0
        %v2527 = vadd.f32 %v2441, %v2526
        %v2528 = vpop.f32.mrb[0].mxu0
        %v2529 = vadd.f32 %v2445, %v2528
        %2530 = vmatprep.mubr.f32.mxu0 0.0
        %2531 = vmatmul.mubr.f32.gmra.mrb[0].mxu0 %v2452
        %v2532 = vpop.f32.mrb[0].mxu0
        %v2533 = vadd.f32 %v2441, %v2532
        %v2534 = vpop.f32.mrb[0].mxu0
        %v2535 = vadd.f32 %v2445, %v2534
        %2536 = vmatprep.mubr.f32.mxu0 0.0
        %2537 = vmatmul.mubr.f32.gmra.mrb[0].mxu0 %v2455
        %v2538 = vpop.f32.mrb[0].mxu0
        %v2539 = vadd.f32 %v2441, %v2538
        %v2540 = vpop.f32.mrb[0].mxu0
        %v2541 = vadd.f32 %v2445, %v2540
        %2542 = vmatprep.mubr.f32.mxu0 0.0
        %2543 = vmatmul.mubr.f32.gmra.mrb[0].mxu0 %v2458
        %v2544 = vpop.f32.mrb[0].mxu0
        %v2545 = vadd.f32 %v2441, %v2544
        %v2546 = vpop.f32.mrb[0].mxu0
        %v2547 = vadd.f32 %v2445, %v2546
        %2548 = vdwg.mxu0
        %v2549 = vmul.f32 %v2527, 1.702
        %v2550 = vmul.f32 %v2529, 1.702
        %v2551 = vmul.f32 %v2533, 1.702
        %v2552 = vmul.f32 %v2535, 1.702
        %v2553 = vmul.f32 %v2539, 1.702
        %v2554 = vmul.f32 %v2541, 1.702
        %v2555 = vmul.f32 %v2545, 1.702
        %v2556 = vmul.f32 %v2547, 1.702
        %v2557 = vxor.u32 %v2549, 2147483648
        %v2558 = vxor.u32 %v2550, 2147483648
        %v2559 = vxor.u32 %v2551, 2147483648
        %v2560 = vxor.u32 %v2552, 2147483648
        %v2561 = vxor.u32 %v2553, 2147483648
        %v2562 = vxor.u32 %v2554, 2147483648
        %v2563 = vxor.u32 %v2555, 2147483648
        %v2564 = vxor.u32 %v2556, 2147483648
        %v2565 = vmul.f32 %v2557, 1.442695
        %v2566 = vpow.pop %v2565
        %v2567 = vmul.f32 %v2558, 1.442695
        %v2568 = vpow.pop %v2567
        %v2569 = vmul.f32 %v2559, 1.442695
        %v2570 = vpow.pop %v2569
        %v2571 = vmul.f32 %v2560, 1.442695
        %v2572 = vpow.pop %v2571
        %v2573 = vmul.f32 %v2561, 1.442695
        %v2574 = vpow.pop %v2573
        %v2575 = vmul.f32 %v2562, 1.442695
        %v2576 = vpow.pop %v2575
        %v2577 = vmul.f32 %v2563, 1.442695
        %v2578 = vpow.pop %v2577
        %v2579 = vmul.f32 %v2564, 1.442695
        %v2580 = vpow.pop %v2579
        %v2581 = vadd.f32 %v2566, 1.0
        %v2582 = vadd.f32 %v2568, 1.0
        %v2583 = vadd.f32 %v2570, 1.0
        %v2584 = vadd.f32 %v2572, 1.0
        %v2585 = vadd.f32 %v2574, 1.0
        %v2586 = vadd.f32 %v2576, 1.0
        %v2587 = vadd.f32 %v2578, 1.0
        %v2588 = vadd.f32 %v2580, 1.0
        %v2589 = vrcp.pop %v2581
        %v2590 = vmul.f32 1.0, %v2589
        %v2591 = vrcp.pop %v2582
        %v2592 = vmul.f32 1.0, %v2591
        %v2593 = vrcp.pop %v2583
        %v2594 = vmul.f32 1.0, %v2593
        %v2595 = vrcp.pop %v2584
        %v2596 = vmul.f32 1.0, %v2595
        %v2597 = vrcp.pop %v2585
        %v2598 = vmul.f32 1.0, %v2597
        %v2599 = vrcp.pop %v2586
        %v2600 = vmul.f32 1.0, %v2599
        %v2601 = vrcp.pop %v2587
        %v2602 = vmul.f32 1.0, %v2601
        %v2603 = vrcp.pop %v2588
        %v2604 = vmul.f32 1.0, %v2603
        %v2605 = vmul.f32 %v2527, %v2590
        %v2606 = vmul.f32 %v2529, %v2592
        %v2607 = vmul.f32 %v2533, %v2594
        %v2608 = vmul.f32 %v2535, %v2596
        %v2609 = vmul.f32 %v2539, %v2598
        %v2610 = vmul.f32 %v2541, %v2600
        %v2611 = vmul.f32 %v2545, %v2602
        %v2612 = vmul.f32 %v2547, %v2604
        %v2613 = vld [vmem:[%s682] sm:$0xff]
        %v2614 = vld [vmem:[%s682 + $0x8] sm:$0xff]
        %v2615 = vld [vmem:[%s682 + $0x10] sm:$0xff]
        %v2616 = vld [vmem:[%s682 + $0x18] sm:$0xff]
        %v2617 = vld [vmem:[%s682 + $0x20] sm:$0xff]
        %v2618 = vld [vmem:[%s682 + $0x28] sm:$0xff]
        %v2619 = vld [vmem:[%s682 + $0x30] sm:$0xff]
        %v2620 = vld [vmem:[%s682 + $0x38] sm:$0xff]
        %v2621 = vld [vmem:[%s682 + $0x40] sm:$0xff]
        %v2622 = vld [vmem:[%s682 + $0x48] sm:$0xff]
        %v2623 = vld [vmem:[%s682 + $0x50] sm:$0xff]
        %v2624 = vld [vmem:[%s682 + $0x58] sm:$0xff]
        %v2625 = vld [vmem:[%s682 + $0x60] sm:$0xff]
        %v2626 = vld [vmem:[%s682 + $0x68] sm:$0xff]
        %v2627 = vld [vmem:[%s682 + $0x70] sm:$0xff]
        %v2628 = vld [vmem:[%s682 + $0x78] sm:$0xff]
        %v2629 = vld [vmem:[%s682 + $0x80] sm:$0xff]
        %v2630 = vld [vmem:[%s682 + $0x88] sm:$0xff]
        %v2631 = vld [vmem:[%s682 + $0x90] sm:$0xff]
        %v2632 = vld [vmem:[%s682 + $0x98] sm:$0xff]
        %v2633 = vld [vmem:[%s682 + $0xa0] sm:$0xff]
        %v2634 = vld [vmem:[%s682 + $0xa8] sm:$0xff]
        %v2635 = vld [vmem:[%s682 + $0xb0] sm:$0xff]
        %v2636 = vld [vmem:[%s682 + $0xb8] sm:$0xff]
        %v2637 = vld [vmem:[%s682 + $0xc0] sm:$0xff]
        %v2638 = vld [vmem:[%s682 + $0xc8] sm:$0xff]
        %v2639 = vld [vmem:[%s682 + $0xd0] sm:$0xff]
        %v2640 = vld [vmem:[%s682 + $0xd8] sm:$0xff]
        %v2641 = vld [vmem:[%s682 + $0xe0] sm:$0xff]
        %v2642 = vld [vmem:[%s682 + $0xe8] sm:$0xff]
        %v2643 = vld [vmem:[%s682 + $0xf0] sm:$0xff]
        %v2644 = vld [vmem:[%s682 + $0xf8] sm:$0xff]
        %2645 = vmatprep.subr.mxu0 0.0
        %2646 = vmatpush1.msra.mxu0 %v2613
        %2647 = vmatprep.subr.mxu0 0.0
        %2648 = vmatpush1.msra.mxu0 %v2614
        %2649 = vmatprep.subr.mxu0 0.0
        %2650 = vmatpush1.msra.mxu0 %v2615
        %2651 = vmatprep.subr.mxu0 0.0
        %2652 = vmatpush1.msra.mxu0 %v2616
        %2653 = vmatprep.subr.mxu0 0.0
        %2654 = vmatpush1.msra.mxu0 %v2617
        %2655 = vmatprep.subr.mxu0 0.0
        %2656 = vmatpush1.msra.mxu0 %v2618
        %2657 = vmatprep.subr.mxu0 0.0
        %2658 = vmatpush1.msra.mxu0 %v2619
        %2659 = vmatprep.subr.mxu0 0.0
        %2660 = vmatpush1.msra.mxu0 %v2620
        %2661 = vmatprep.subr.mxu0 0.0
        %2662 = vmatpush1.msra.mxu0 %v2621
        %2663 = vmatprep.subr.mxu0 0.0
        %2664 = vmatpush1.msra.mxu0 %v2622
        %2665 = vmatprep.subr.mxu0 0.0
        %2666 = vmatpush1.msra.mxu0 %v2623
        %2667 = vmatprep.subr.mxu0 0.0
        %2668 = vmatpush1.msra.mxu0 %v2624
        %2669 = vmatprep.subr.mxu0 0.0
        %2670 = vmatpush1.msra.mxu0 %v2625
        %2671 = vmatprep.subr.mxu0 0.0
        %2672 = vmatpush1.msra.mxu0 %v2626
        %2673 = vmatprep.subr.mxu0 0.0
        %2674 = vmatpush1.msra.mxu0 %v2627
        %2675 = vmatprep.subr.mxu0 0.0
        %2676 = vmatpush1.msra.mxu0 %v2628
        %2677 = vmatprep.subr.mxu0 0.0
        %2678 = vmatpush1.msra.mxu0 %v2629
        %2679 = vmatprep.subr.mxu0 0.0
        %2680 = vmatpush1.msra.mxu0 %v2630
        %2681 = vmatprep.subr.mxu0 0.0
        %2682 = vmatpush1.msra.mxu0 %v2631
        %2683 = vmatprep.subr.mxu0 0.0
        %2684 = vmatpush1.msra.mxu0 %v2632
        %2685 = vmatprep.subr.mxu0 0.0
        %2686 = vmatpush1.msra.mxu0 %v2633
        %2687 = vmatprep.subr.mxu0 0.0
        %2688 = vmatpush1.msra.mxu0 %v2634
        %2689 = vmatprep.subr.mxu0 0.0
        %2690 = vmatpush1.msra.mxu0 %v2635
        %2691 = vmatprep.subr.mxu0 0.0
        %2692 = vmatpush1.msra.mxu0 %v2636
        %2693 = vmatprep.subr.mxu0 0.0
        %2694 = vmatpush1.msra.mxu0 %v2637
        %2695 = vmatprep.subr.mxu0 0.0
        %2696 = vmatpush1.msra.mxu0 %v2638
        %2697 = vmatprep.subr.mxu0 0.0
        %2698 = vmatpush1.msra.mxu0 %v2639
        %2699 = vmatprep.subr.mxu0 0.0
        %2700 = vmatpush1.msra.mxu0 %v2640
        %2701 = vmatprep.subr.mxu0 0.0
        %2702 = vmatpush1.msra.mxu0 %v2641
        %2703 = vmatprep.subr.mxu0 0.0
        %2704 = vmatpush1.msra.mxu0 %v2642
        %2705 = vmatprep.subr.mxu0 0.0
        %2706 = vmatpush1.msra.mxu0 %v2643
        %2707 = vmatprep.subr.mxu0 0.0
        %2708 = vmatpush1.msra.mxu0 %v2644
        %2709 = vmatprep.mubr.f32.mxu0 %v2606
        %2710 = vmatmul.mubr.f32.gmra.mrb[0].mxu0 %v2605
        %v2711 = vpop.f32.mrb[0].mxu0
        %v2712 = vadd.f32 0.0, %v2711
        %v2713 = vpop.f32.mrb[0].mxu0
        %2714 = vmatprep.mubr.f32.mxu0 %v2608
        %2715 = vmatmul.mubr.f32.gmra.mrb[0].mxu0 %v2607
        %v2716 = vpop.f32.mrb[0].mxu0
        %v2717 = vadd.f32 0.0, %v2716
        %v2718 = vpop.f32.mrb[0].mxu0
        %2719 = vmatprep.mubr.f32.mxu0 %v2610
        %2720 = vmatmul.mubr.f32.gmra.mrb[0].mxu0 %v2609
        %v2721 = vpop.f32.mrb[0].mxu0
        %v2722 = vadd.f32 0.0, %v2721
        %v2723 = vpop.f32.mrb[0].mxu0
        %2724 = vmatprep.mubr.f32.mxu0 %v2612
        %2725 = vmatmul.mubr.f32.gmra.mrb[0].mxu0 %v2611
        %v2726 = vpop.f32.mrb[0].mxu0
        %v2727 = vadd.f32 0.0, %v2726
        %v2728 = vpop.f32.mrb[0].mxu0
        %2729 = vdwg.mxu0
        %v2730 = vadd.f32 %v2342, %v2712
        %v2731 = vadd.f32 %v2343, %v2717
        %v2732 = vadd.f32 %v2344, %v2722
        %v2733 = vadd.f32 %v2345, %v2727
        %v2734 = vld [vmem:[%s685] sm:$0x1]
        %v2736 = vlaneseq
        %v2737 = vshrl.u32 %v2736, 7
        %v2738 = vsub.s32 0, %v2737
        %v2739 = vrot.slane %v2734, %v2738
        %v2741 = vadd.f32 %v2730, %v2739
        %v2742 = vadd.f32 %v2731, %v2739
        %v2743 = vadd.f32 %v2732, %v2739
        %v2744 = vadd.f32 %v2733, %v2739
        %2745 = vst.msk [vmem:[#allocation2] sm:$0xff] %vm705, %v2741
        %2746 = vst.msk [vmem:[#allocation2 + $0x8] sm:$0xff] %vm705, %v2742
        %2747 = vst.msk [vmem:[#allocation2 + $0x10] sm:$0xff] %vm705, %v2743
        %2748 = vst.msk [vmem:[#allocation2 + $0x18] sm:$0xff] %vm705, %v2744
        %p2749 = scmp.eq.s32.totalorder %s28, 1
        // Predicated region
        $region89: #{clip_forward.1} parent=83 // pred_check
          %p2750 = pneg %p2749
        $region90: #{clip_forward.1} parent=83 // pred_check_branch
          %2752 = sbr.rel (%p2750) target = $region92
        $region91: #{clip_forward.1} parent=83 // pred_region
          %v2753 = vld [vmem:[%s14] sm:$0x1]
          %v2754 = vld [vmem:[%s15] sm:$0x1]
          %v2755 = vsel %vm705, %v2741, 0.0
          %2756 = vadd.xlane.f32.xlu0 %v2755
          %v2757 = vpop.xlane.xlu0 %2756
          %v2758 = vsel %vm705, %v2742, 0.0
          %2759 = vadd.xlane.f32.xlu0 %v2758
          %v2760 = vpop.xlane.xlu0 %2759
          %v2761 = vsel %vm705, %v2743, 0.0
          %2762 = vadd.xlane.f32.xlu0 %v2761
          %v2763 = vpop.xlane.xlu0 %2762
          %v2764 = vsel %vm705, %v2744, 0.0
          %2765 = vadd.xlane.f32.xlu0 %v2764
          %v2766 = vpop.xlane.xlu0 %2765
          %v2767 = vmul.f32 %v2757, %v718
          %v2768 = vmul.f32 %v2760, %v718
          %v2769 = vmul.f32 %v2763, %v718
          %v2770 = vmul.f32 %v2766, %v718
          %v2771 = vsub.f32 %v2741, %v2767
          %v2772 = vsub.f32 %v2742, %v2768
          %v2773 = vsub.f32 %v2743, %v2769
          %v2774 = vsub.f32 %v2744, %v2770
          %v2775 = vmul.f32 %v2771, %v2771
          %v2776 = vmul.f32 %v2772, %v2772
          %v2777 = vmul.f32 %v2773, %v2773
          %v2778 = vmul.f32 %v2774, %v2774
          %v2779 = vsel %vm705, %v2775, 0.0
          %2780 = vadd.xlane.f32.xlu0 %v2779
          %v2781 = vpop.xlane.xlu0 %2780
          %v2782 = vsel %vm705, %v2776, 0.0
          %2783 = vadd.xlane.f32.xlu0 %v2782
          %v2784 = vpop.xlane.xlu0 %2783
          %v2785 = vsel %vm705, %v2777, 0.0
          %2786 = vadd.xlane.f32.xlu0 %v2785
          %v2787 = vpop.xlane.xlu0 %2786
          %v2788 = vsel %vm705, %v2778, 0.0
          %2789 = vadd.xlane.f32.xlu0 %v2788
          %v2790 = vpop.xlane.xlu0 %2789
          %v2791 = vmul.f32 %v2781, %v718
          %v2792 = vmul.f32 %v2784, %v718
          %v2793 = vmul.f32 %v2787, %v718
          %v2794 = vmul.f32 %v2790, %v718
          %v2795 = vadd.f32 %v2791, 1e-05
          %v2796 = vadd.f32 %v2792, 1e-05
          %v2797 = vadd.f32 %v2793, 1e-05
          %v2798 = vadd.f32 %v2794, 1e-05
          %v2799 = vrsqrt.pop %v2795
          %v2800 = vrsqrt.pop %v2796
          %v2801 = vrsqrt.pop %v2797
          %v2802 = vrsqrt.pop %v2798
          %v2803 = vmul.f32 %v2771, %v2799
          %v2804 = vmul.f32 %v2772, %v2800
          %v2805 = vmul.f32 %v2773, %v2801
          %v2806 = vmul.f32 %v2774, %v2802
          %v2808 = vlaneseq
          %v2809 = vshrl.u32 %v2808, 7
          %v2810 = vsub.s32 0, %v2809
          %v2811 = vrot.slane %v2753, %v2810
          %v2813 = vmul.f32 %v2803, %v2811
          %v2814 = vmul.f32 %v2804, %v2811
          %v2815 = vmul.f32 %v2805, %v2811
          %v2816 = vmul.f32 %v2806, %v2811
          %v2818 = vlaneseq
          %v2819 = vshrl.u32 %v2818, 7
          %v2820 = vsub.s32 0, %v2819
          %v2821 = vrot.slane %v2754, %v2820
          %v2823 = vadd.f32 %v2813, %v2821
          %v2824 = vadd.f32 %v2814, %v2821
          %v2825 = vadd.f32 %v2815, %v2821
          %v2826 = vadd.f32 %v2816, %v2821
          %2827 = vst.msk [vmem:[#allocation7] sm:$0xff] %vm705, %v2823
          %2828 = vst.msk [vmem:[#allocation7 + $0x8] sm:$0xff] %vm705, %v2824
          %2829 = vst.msk [vmem:[#allocation7 + $0x10] sm:$0xff] %vm705, %v2825
          %2830 = vst.msk [vmem:[#allocation7 + $0x18] sm:$0xff] %vm705, %v2826
        $region92: #{clip_forward.1} parent=83 // pred_fallthru
          _
        // Predicated region
        $region93: #{clip_forward.1} parent=83 // pred_check
          %p2831 = pneg %p437
        $region94: #{clip_forward.1} parent=83 // pred_check_branch
          %2833 = sbr.rel (%p2831) target = $region96
        $region95: #{clip_forward.1} parent=83 // pred_region
          %s2835 = ssub.s32 512, 512
          %2836 = vsyncadd [#allocation8], %s2835
          %s2837 = sshll.u32 [#allocation7], 4
          %s2838 = int_to_ptr.vmem [resolvable:$true] %s2837
          %2843 = dma.vmem_to_hbm [thread:$0]  %s2838, 512, %s16, [#allocation8], 128, 128, 8
        $region96: #{clip_forward.1} parent=83 // pred_fallthru
          _
        // Predicated region
        $region97: #{clip_forward.1} parent=83 // pred_check
          %p2844 = pneg %p437
        $region98: #{clip_forward.1} parent=83 // pred_check_branch
          %2846 = sbr.rel (%p2844) target = $region100
        $region99: #{clip_forward.1} parent=83 // pred_region
          %2847 = dma.done [#allocation8], 512
        $region100: #{clip_forward.1} parent=83 // pred_fallthru
          _
      $region84: #{clip_forward.1} parent=5 // pred_fallthru
        _
      %p2848 = scmp.le.s32.totalorder 2, %s23
      // Predicated region
      $region101: #{clip_forward.1} parent=5 // pred_check
        %p2849 = pneg %p2848
      $region102: #{clip_forward.1} parent=5 // pred_check_branch
        %2851 = sbr.rel (%p2849) target = $region104
      $region103: #{clip_forward.1} parent=5 // pred_region
        %s2852 = ssub.s32 %s23, 2
      $region104: #{clip_forward.1} parent=5 // pred_fallthru
        _
    $region6: #{clip_forward.1} parent=1 // loop_footer
      %s27 = sadd.s32 1, %s23
    $region7: #{clip_forward.1} parent=1 // loop_footer_branch
      %22 = sbr.rel target = $region3
    $region8: #{clip_forward.1} parent=1 // loop_exit
      _
    %2853 = vsyncpa [#allocation8], 1
    %s2854 = scalar_lea.sflag [#allocation8], 1
    %2855 = vsyncpa %s2854, 1

</llo_original>
